<compile_context>
chip_gen: v7x
topology: tpu7x:2x2x1
jax: 0.10.0
libtpu: 0.0.40
codegen_flags: <defaults>
</compile_context>

<pallas_src>
import functools

import jax
import jax.numpy as jnp
from jax import lax
from jax.experimental import pallas as pl
from jax.experimental.pallas import tpu as pltpu


COMPUTE_DTYPE = jnp.bfloat16      # MXU operand dtype (f32 accumulation everywhere)
C_PAD = 128                       # lane-dense output-channel padding
VMEM_LIMIT = 32 * 1024 * 1024     # < v7x 64 MiB physical, > v5e 16 MiB default


def _row_tile(m, max_rows, split_above):
    """Row tile: full extent for small m; otherwise a multiple of 8, capped at
    max_rows, and guaranteeing >= 2 grid steps so v7x's two TensorCores both work."""
    if m <= split_above:
        return min(m, max_rows)
    half = -(-m // 2)            # ceil(m / 2)
    half = -(-half // 8) * 8     # round up to a multiple of 8
    return min(half, max_rows)


# ----------------------------- Pallas kernels ------------------------------ #

def _conv_pool_relu_kernel(p_ref, w_ref, b_ref, o_ref):
    """Fused conv (matmul over 6x6 superset patches) + maxpool2x2 + bias + ReLU.

    p : (TM, Kp)       stride-2 6x6 patches, columns ordered (c, r6, c6), zero padded
    w : (Kp, 4*C_PAD)  merged weight: column block j <-> pool offset (dy,dx)=(j//2,j%2),
                       holding the 5x5 conv weight shifted to (dy,dx) in the 6x6 window
    b : (1, C_PAD)     zero-padded bias (f32)
    o : (TM, C_PAD)    relu(maxpool2(conv(.)+b)), lane-dense
    """
    acc = jnp.dot(p_ref[...], w_ref[...], preferred_element_type=jnp.float32)  # (TM, 512)
    # Max over the 4 pool-window positions: 128-aligned lane slices are free.
    # Bias and ReLU commute with the max, so they are applied once afterwards.
    m = jnp.maximum(jnp.maximum(acc[:, 0 * C_PAD:1 * C_PAD], acc[:, 1 * C_PAD:2 * C_PAD]),
                    jnp.maximum(acc[:, 2 * C_PAD:3 * C_PAD], acc[:, 3 * C_PAD:4 * C_PAD]))
    o_ref[...] = jnp.maximum(m + b_ref[...], 0.0).astype(o_ref.dtype)


def conv_pool_relu(patches, w, b, *, out_dtype=COMPUTE_DTYPE,
                   max_rows=2048, split_above=1024):
    """patches: (M, Kp); w: (Kp, 4*C_PAD); b: (1, C_PAD) f32  ->  (M, C_PAD)."""
    M, Kp = patches.shape
    C4 = w.shape[1]
    TM = _row_tile(M, max_rows, split_above)
    return pl.pallas_call(
        _conv_pool_relu_kernel,
        out_shape=jax.ShapeDtypeStruct((M, C_PAD), out_dtype),
        grid=(pl.cdiv(M, TM),),
        in_specs=[pl.BlockSpec((TM, Kp), lambda i: (i, 0)),
                  pl.BlockSpec((Kp, C4), lambda i: (0, 0)),
                  pl.BlockSpec((1, C_PAD), lambda i: (0, 0))],
        out_specs=pl.BlockSpec((TM, C_PAD), lambda i: (i, 0)),
        compiler_params=pltpu.CompilerParams(
            dimension_semantics=("parallel",),
            vmem_limit_bytes=VMEM_LIMIT),
    )(patches, w, b)


def _fc_tail_kernel(x_ref, w1_ref, b1_ref, w2_ref, b2_ref, o_ref, *, n_classes):
    """Fused fc1 + ReLU + fc2 + log_softmax (padded logit lanes masked out)."""
    h = jnp.dot(x_ref[...], w1_ref[...], preferred_element_type=jnp.float32)
    h = jnp.maximum(h + b1_ref[...], 0.0)
    # TODO(synk): F.dropout / Dropout2d implemented as identity (inference semantics).
    logits = jnp.dot(h.astype(w2_ref.dtype), w2_ref[...],
                     preferred_element_type=jnp.float32) + b2_ref[...]
    lane = lax.broadcasted_iota(jnp.int32, logits.shape, 1)
    logits = jnp.where(lane < n_classes, logits, jnp.float32(-1e30))
    m = jnp.max(logits, axis=-1, keepdims=True)
    z = logits - m
    lse = jnp.log(jnp.sum(jnp.exp(z), axis=-1, keepdims=True))
    o_ref[...] = (z - lse).astype(o_ref.dtype)


def fc_tail(h, w1, b1, w2, b2, *, n_classes=10, max_rows=1024, split_above=512):
    """h: (N, 16*C_PAD); w1: (16*C_PAD, C_PAD); w2: (C_PAD, C_PAD); biases (1, C_PAD)."""
    N, K = h.shape
    TM = _row_tile(N, max_rows, split_above)
    return pl.pallas_call(
        functools.partial(_fc_tail_kernel, n_classes=n_classes),
        out_shape=jax.ShapeDtypeStruct((N, C_PAD), jnp.float32),
        grid=(pl.cdiv(N, TM),),
        in_specs=[
            pl.BlockSpec((TM, K), lambda i: (i, 0)),
            pl.BlockSpec((K, C_PAD), lambda i: (0, 0)),
            pl.BlockSpec((1, C_PAD), lambda i: (0, 0)),
            pl.BlockSpec((C_PAD, C_PAD), lambda i: (0, 0)),
            pl.BlockSpec((1, C_PAD), lambda i: (0, 0)),
        ],
        out_specs=pl.BlockSpec((TM, C_PAD), lambda i: (i, 0)),
        compiler_params=pltpu.CompilerParams(
            dimension_semantics=("parallel",),
            vmem_limit_bytes=VMEM_LIMIT),
    )(h, w1, b1, w2, b2)


# ------------------------------ plain-JAX glue ------------------------------ #

def pooled_conv_patches(x_nhwc, k, pad_to, dtype):
    """One 6x6 / stride-2 patch extraction covering all four positions of each
    2x2 maxpool window of a VALID kxk convolution.

    Returns (N*P*P, pad_to), P = (H-k+1)//2. Column q = c*36 + r*6 + s holds
    x[n, 2*ph + r, 2*pw + s, c]; columns >= C*36 are zero padding.
    """
    N, H, W, C = x_nhwc.shape
    kp = k + 1                                   # 6x6 superset window
    P = (H - k + 1) // 2                         # pooled output size (12 / 4)
    pt = lax.conv_general_dilated_patches(
        x_nhwc.astype(dtype), filter_shape=(kp, kp), window_strides=(2, 2),
        padding="VALID", dimension_numbers=("NHWC", "HWIO", "NHWC"))
    pt = pt.reshape(N * P * P, C * kp * kp)      # free reshape
    if pad_to > C * kp * kp:
        pt = jnp.pad(pt, ((0, 0), (0, pad_to - C * kp * kp)))
    return pt


def prepare_params(params, compute_dtype=COMPUTE_DTYPE):
    """One-time fold of all weights into kernel layouts:
      * conv weights -> (Kp, 4*C_PAD) merged pool-offset weights for the 6x6-patch matmul
      * fc1 weight   -> (16*C_PAD, C_PAD): the NCHW flatten + 128-lane channel padding of
        the conv2 output is folded in, so no transpose/slice is needed between kernels
      * biases       -> (1, C_PAD) f32
    """
    def merged_conv_weight(w, rows_pad):
        cout, cin, k, _ = w.shape
        kp = k + 1
        wt = jnp.transpose(w, (1, 2, 3, 0)).astype(jnp.float32)     # (cin, kh, kw, cout)
        blocks = []
        for dy in range(2):
            for dx in range(2):
                blk = jnp.zeros((cin, kp, kp, cout), jnp.float32)
                blk = blk.at[:, dy:dy + k, dx:dx + k, :].set(wt)
                blk = blk.reshape(cin * kp * kp, cout)
                blocks.append(jnp.pad(blk, ((0, 0), (0, C_PAD - cout))))
        wm = jnp.concatenate(blocks, axis=1)                        # (cin*36, 4*C_PAD)
        wm = jnp.pad(wm, ((0, rows_pad - wm.shape[0]), (0, 0)))
        return wm.astype(compute_dtype)

    def pad_bias(b):
        return jnp.pad(b, (0, C_PAD - b.shape[0])).reshape(1, C_PAD).astype(jnp.float32)

    # torch flatten feature f = c*16 + ph*4 + pw on the NCHW (20,4,4) activation;
    # our fc input feature  = (ph*4 + pw)*C_PAD + c  (lane-padded conv2 output).
    f1 = params["fc1_w"].T.reshape(20, 4, 4, -1)                    # [c, ph, pw, o]
    f1 = jnp.transpose(f1, (1, 2, 0, 3))                            # [ph, pw, c, o]
    f1 = jnp.pad(f1, ((0, 0), (0, 0), (0, C_PAD - 20), (0, C_PAD - f1.shape[-1])))
    fw1 = f1.reshape(16 * C_PAD, C_PAD).astype(compute_dtype)       # (2048, 128)

    fw2 = jnp.pad(params["fc2_w"].T,
                  ((0, C_PAD - params["fc2_w"].shape[1]),
                   (0, C_PAD - params["fc2_w"].shape[0]))).astype(compute_dtype)

    return {
        "w1m": merged_conv_weight(params["conv1_w"], 128),          # (128, 512)
        "b1": pad_bias(params["conv1_b"]),
        "w2m": merged_conv_weight(params["conv2_w"], 384),          # (384, 512)
        "b2": pad_bias(params["conv2_b"]),
        "fw1": fw1,                                                 # (2048, 128)
        "fb1": pad_bias(params["fc1_b"]),
        "fw2": fw2,                                                 # (128, 128)
        "fb2": pad_bias(params["fc2_b"]),
    }


def net_forward(x, prepped, compute_dtype=COMPUTE_DTYPE):
    """Forward pass matching torch Net.forward in eval mode. x: (N, 1, 28, 28)."""
    N = x.shape[0]
    # NCHW with C==1 -> NHWC is a pure reshape (no data movement).
    xh = x.reshape(N, 28, 28, 1).astype(compute_dtype)

    # conv1 (1->10, k=5) + maxpool2 + relu, fused in one Pallas kernel.
    p1 = pooled_conv_patches(xh, k=5, pad_to=prepped["w1m"].shape[0],
                             dtype=compute_dtype)                   # (N*144, 128)
    y1 = conv_pool_relu(p1, prepped["w1m"], prepped["b1"])          # (N*144, 128)

    # conv2 (10->20, k=5) + maxpool2 + relu (Dropout2d = identity in eval).
    y1_nhwc = y1[:, :10].reshape(N, 12, 12, 10)
    p2 = pooled_conv_patches(y1_nhwc, k=5, pad_to=prepped["w2m"].shape[0],
                             dtype=compute_dtype)                   # (N*16, 384)
    y2 = conv_pool_relu(p2, prepped["w2m"], prepped["b2"])          # (N*16, 128)

    # Flatten is folded into prepped["fw1"]: the lane-padded conv2 output is
    # consumed directly via a free reshape (no transpose, no narrow slice).
    h = y2.reshape(N, 16 * C_PAD)                                   # (N, 2048)
    out = fc_tail(h, prepped["fw1"], prepped["fb1"],
                  prepped["fw2"], prepped["fb2"], n_classes=10)     # (N, 128) f32
    return out[:, :10]                                              # API-boundary slice


# ------------------------------- reference --------------------------------- #

def net_reference(x, params):
    """Pure-JAX f32 reference of torch Net.forward (eval mode)."""
    def conv(z, w, b):
        dn = lax.conv_dimension_numbers(z.shape, w.shape, ("NCHW", "OIHW", "NCHW"))
        return lax.conv_general_dilated(z, w, (1, 1), "VALID",
                                        dimension_numbers=dn) + b[None, :, None, None]

    def pool_relu(z):
        z = lax.reduce_window(z, -jnp.inf, lax.max, (1, 1, 2, 2), (1, 1, 2, 2), "VALID")
        return jnp.maximum(z, 0.0)

    y = pool_relu(conv(x, params["conv1_w"], params["conv1_b"]))
    y = pool_relu(conv(y, params["conv2_w"], params["conv2_b"]))
    h = y.reshape(y.shape[0], -1)                                   # NCHW flatten -> (N, 320)
    h = jnp.maximum(h @ params["fc1_w"].T + params["fc1_b"], 0.0)
    logits = h @ params["fc2_w"].T + params["fc2_b"]
    return jax.nn.log_softmax(logits, axis=-1)


def init_params(key):
    ks = jax.random.split(key, 8)
    s = 0.1
    return {
        "conv1_w": s * jax.random.normal(ks[0], (10, 1, 5, 5), jnp.float32),
        "conv1_b": s * jax.random.normal(ks[1], (10,), jnp.float32),
        "conv2_w": s * jax.random.normal(ks[2], (20, 10, 5, 5), jnp.float32),
        "conv2_b": s * jax.random.normal(ks[3], (20,), jnp.float32),
        "fc1_w": s * jax.random.normal(ks[4], (50, 320), jnp.float32),
        "fc1_b": s * jax.random.normal(ks[5], (50,), jnp.float32),
        "fc2_w": s * jax.random.normal(ks[6], (10, 50), jnp.float32),
        "fc2_b": s * jax.random.normal(ks[7], (10,), jnp.float32),
    }


if __name__ == "__main__":
    key = jax.random.PRNGKey(0)
    k_x, k_p = jax.random.split(key)
    # The module's view(-1, 320) forces MNIST spatial size: (N, 1, 28, 28).
    x = jax.random.normal(k_x, (2, 1, 28, 28), jnp.float32)
    params = init_params(k_p)
    prepped = prepare_params(params)

    fwd = jax.jit(net_forward)
    out = jax.block_until_ready(fwd(x, prepped))

    assert out.shape == (2, 10)
    assert bool(jnp.all(jnp.isfinite(out)))
    # log_softmax sanity: probabilities sum to 1 per row.
    prob_sums = jnp.sum(jnp.exp(out), axis=-1)
    assert bool(jnp.all(jnp.abs(prob_sums - 1.0) < 1e-3))
    # Numerics vs a pure-JAX f32 reference (loose tolerance for bf16 MXU operands).
    ref = net_reference(x, params)
    max_diff = float(jnp.max(jnp.abs(out - ref)))
    assert max_diff < 0.3, f"max |log_prob - reference| = {max_diff}"
    print("KERNEL_OK")
</pallas_src>

<mosaic_0001>
module attributes {stable_mosaic.version = 11 : i64} {
  func.func @_conv_pool_relu_kernel(%arg0: i32, %arg1: memref<288x128xbf16, #tpu.memory_space<vmem>>, %arg2: memref<128x512xbf16, #tpu.memory_space<vmem>>, %arg3: memref<1x128xf32, #tpu.memory_space<vmem>>, %arg4: memref<288x128xbf16, #tpu.memory_space<vmem>>) attributes {dimension_semantics = [#tpu.dimension_semantics<parallel>], iteration_bounds = array<i64: 1>, scalar_prefetch = 0 : i64, scratch_operands = 0 : i64, tpu.core_type = #tpu.core_type<tc>, window_params = [{transform_indices = @transform_0, window_bounds = array<i64: 288, 128>}, {pipeline_mode = #tpu.pipeline_mode<synchronous>, transform_indices = @transform_1, window_bounds = array<i64: 128, 512>}, {pipeline_mode = #tpu.pipeline_mode<synchronous>, transform_indices = @transform_2, window_bounds = array<i64: 1, 128>}, {transform_indices = @transform_3, window_bounds = array<i64: 288, 128>}]} {
    %c0 = arith.constant 0 : index
    %c0_0 = arith.constant 0 : index
    %0 = vector.load %arg1[%c0, %c0_0] : memref<288x128xbf16, #tpu.memory_space<vmem>>, vector<288x128xbf16>
    %c0_1 = arith.constant 0 : index
    %c0_2 = arith.constant 0 : index
    %1 = vector.load %arg2[%c0_1, %c0_2] : memref<128x512xbf16, #tpu.memory_space<vmem>>, vector<128x512xbf16>
    %cst = arith.constant dense<0.000000e+00> : vector<288x512xf32>
    %2 = tpu.matmul %0, %1, %cst {dimension_numbers = #tpu.dot_dimension_numbers<[1], [0], [0], [1], [0, 0, 1, 1], [], []>} : vector<288x128xbf16>, vector<128x512xbf16>, vector<288x512xf32> -> vector<288x512xf32>
    %3 = vector.extract_strided_slice %2 {offsets = [0, 0], sizes = [288, 128], strides = [1, 1]} : vector<288x512xf32> to vector<288x128xf32>
    %4 = vector.extract_strided_slice %2 {offsets = [0, 128], sizes = [288, 128], strides = [1, 1]} : vector<288x512xf32> to vector<288x128xf32>
    %5 = arith.maximumf %3, %4 : vector<288x128xf32>
    %6 = vector.extract_strided_slice %2 {offsets = [0, 256], sizes = [288, 128], strides = [1, 1]} : vector<288x512xf32> to vector<288x128xf32>
    %7 = vector.extract_strided_slice %2 {offsets = [0, 384], sizes = [288, 128], strides = [1, 1]} : vector<288x512xf32> to vector<288x128xf32>
    %8 = arith.maximumf %6, %7 : vector<288x128xf32>
    %9 = arith.maximumf %5, %8 : vector<288x128xf32>
    %c0_3 = arith.constant 0 : index
    %c0_4 = arith.constant 0 : index
    %10 = vector.load %arg3[%c0_3, %c0_4] : memref<1x128xf32, #tpu.memory_space<vmem>>, vector<1x128xf32>
    %11 = vector.broadcast %10 : vector<1x128xf32> to vector<288x128xf32>
    %12 = arith.addf %9, %11 : vector<288x128xf32>
    %cst_5 = arith.constant 0.000000e+00 : f32
    %13 = vector.broadcast %cst_5 : f32 to vector<288x128xf32>
    %14 = arith.maximumf %12, %13 : vector<288x128xf32>
    %15 = arith.truncf %14 : vector<288x128xf32> to vector<288x128xbf16>
    %c0_6 = arith.constant 0 : index
    %c0_7 = arith.constant 0 : index
    %16 = vector.load %arg4[%c0_6, %c0_7] : memref<288x128xbf16, #tpu.memory_space<vmem>>, vector<288x128xbf16>
    tpu.vector_store %arg4[%c0_6, %c0_7], %15 {strides = array<i32>} : memref<288x128xbf16, #tpu.memory_space<vmem>>, vector<288x128xbf16>,
    return
  }
  func.func @transform_0(%arg0: i32) -> (i32, i32) {
    %c0_i32 = arith.constant 0 : i32
    %c0_i32_0 = arith.constant 0 : i32
    return %arg0, %c0_i32 : i32, i32
  }
  func.func @transform_1(%arg0: i32) -> (i32, i32) {
    %c0_i32 = arith.constant 0 : i32
    %c0_i32_0 = arith.constant 0 : i32
    %c0_i32_1 = arith.constant 0 : i32
    return %c0_i32, %c0_i32_0 : i32, i32
  }
  func.func @transform_2(%arg0: i32) -> (i32, i32) {
    %c0_i32 = arith.constant 0 : i32
    %c0_i32_0 = arith.constant 0 : i32
    %c0_i32_1 = arith.constant 0 : i32
    return %c0_i32, %c0_i32_0 : i32, i32
  }
  func.func @transform_3(%arg0: i32) -> (i32, i32) {
    %c0_i32 = arith.constant 0 : i32
    %c0_i32_0 = arith.constant 0 : i32
    return %arg0, %c0_i32 : i32, i32
  }
}

module attributes {stable_mosaic.version = 11 : i64} {
  func.func @_fc_tail_kernel(%arg0: i32, %arg1: memref<2x2048xbf16, #tpu.memory_space<vmem>>, %arg2: memref<2048x128xbf16, #tpu.memory_space<vmem>>, %arg3: memref<1x128xf32, #tpu.memory_space<vmem>>, %arg4: memref<128x128xbf16, #tpu.memory_space<vmem>>, %arg5: memref<1x128xf32, #tpu.memory_space<vmem>>, %arg6: memref<2x128xf32, #tpu.memory_space<vmem>>) attributes {dimension_semantics = [#tpu.dimension_semantics<parallel>], iteration_bounds = array<i64: 1>, scalar_prefetch = 0 : i64, scratch_operands = 0 : i64, tpu.core_type = #tpu.core_type<tc>, window_params = [{transform_indices = @transform_0, window_bounds = array<i64: 2, 2048>}, {pipeline_mode = #tpu.pipeline_mode<synchronous>, transform_indices = @transform_1, window_bounds = array<i64: 2048, 128>}, {pipeline_mode = #tpu.pipeline_mode<synchronous>, transform_indices = @transform_2, window_bounds = array<i64: 1, 128>}, {pipeline_mode = #tpu.pipeline_mode<synchronous>, transform_indices = @transform_3, window_bounds = array<i64: 128, 128>}, {pipeline_mode = #tpu.pipeline_mode<synchronous>, transform_indices = @transform_4, window_bounds = array<i64: 1, 128>}, {transform_indices = @transform_5, window_bounds = array<i64: 2, 128>}]} {
    %c0 = arith.constant 0 : index
    %c0_0 = arith.constant 0 : index
    %0 = vector.load %arg1[%c0, %c0_0] : memref<2x2048xbf16, #tpu.memory_space<vmem>>, vector<2x2048xbf16>
    %c0_1 = arith.constant 0 : index
    %c0_2 = arith.constant 0 : index
    %1 = vector.load %arg2[%c0_1, %c0_2] : memref<2048x128xbf16, #tpu.memory_space<vmem>>, vector<2048x128xbf16>
    %cst = arith.constant dense<0.000000e+00> : vector<2x128xf32>
    %2 = tpu.matmul %0, %1, %cst {dimension_numbers = #tpu.dot_dimension_numbers<[1], [0], [0], [1], [0, 0, 1, 1], [], []>} : vector<2x2048xbf16>, vector<2048x128xbf16>, vector<2x128xf32> -> vector<2x128xf32>
    %c0_3 = arith.constant 0 : index
    %c0_4 = arith.constant 0 : index
    %3 = vector.load %arg3[%c0_3, %c0_4] : memref<1x128xf32, #tpu.memory_space<vmem>>, vector<1x128xf32>
    %4 = vector.broadcast %3 : vector<1x128xf32> to vector<2x128xf32>
    %5 = arith.addf %2, %4 : vector<2x128xf32>
    %cst_5 = arith.constant 0.000000e+00 : f32
    %6 = vector.broadcast %cst_5 : f32 to vector<2x128xf32>
    %7 = arith.maximumf %5, %6 : vector<2x128xf32>
    %8 = arith.truncf %7 : vector<2x128xf32> to vector<2x128xbf16>
    %c0_6 = arith.constant 0 : index
    %c0_7 = arith.constant 0 : index
    %9 = vector.load %arg4[%c0_6, %c0_7] : memref<128x128xbf16, #tpu.memory_space<vmem>>, vector<128x128xbf16>
    %cst_8 = arith.constant dense<0.000000e+00> : vector<2x128xf32>
    %10 = tpu.matmul %8, %9, %cst_8 {dimension_numbers = #tpu.dot_dimension_numbers<[1], [0], [0], [1], [0, 0, 1, 1], [], []>} : vector<2x128xbf16>, vector<128x128xbf16>, vector<2x128xf32> -> vector<2x128xf32>
    %c0_9 = arith.constant 0 : index
    %c0_10 = arith.constant 0 : index
    %11 = vector.load %arg5[%c0_9, %c0_10] : memref<1x128xf32, #tpu.memory_space<vmem>>, vector<1x128xf32>
    %12 = vector.broadcast %11 : vector<1x128xf32> to vector<2x128xf32>
    %13 = arith.addf %10, %12 : vector<2x128xf32>
    %14 = tpu.iota {dimensions = array<i32: 1>} : vector<2x128xi32>
    %c10_i32 = arith.constant 10 : i32
    %15 = vector.broadcast %c10_i32 : i32 to vector<2x128xi32>
    %16 = arith.cmpi slt, %14, %15 : vector<2x128xi32>
    %cst_11 = arith.constant -1.000000e+30 : f32
    %17 = vector.broadcast %cst_11 : f32 to vector<2x128xf32>
    %18 = arith.select %16, %13, %17 : vector<2x128xi1>, vector<2x128xf32>
    %cst_12 = arith.constant dense<0xFF800000> : vector<2xf32>
    %19 = vector.multi_reduction <maximumf>, %18, %cst_12 [1] : vector<2x128xf32> to vector<2xf32>
    %20 = vector.shape_cast %19 : vector<2xf32> to vector<2x1xf32>
    %21 = vector.broadcast %20 : vector<2x1xf32> to vector<2x128xf32>
    %22 = arith.subf %18, %21 : vector<2x128xf32>
    %23 = math.exp %22 : vector<2x128xf32>
    %cst_13 = arith.constant dense<0.000000e+00> : vector<2xf32>
    %24 = vector.multi_reduction <add>, %23, %cst_13 [1] : vector<2x128xf32> to vector<2xf32>
    %25 = vector.shape_cast %24 : vector<2xf32> to vector<2x1xf32>
    %26 = math.log %25 : vector<2x1xf32>
    %27 = vector.broadcast %26 : vector<2x1xf32> to vector<2x128xf32>
    %28 = arith.subf %22, %27 : vector<2x128xf32>
    %c0_14 = arith.constant 0 : index
    %c0_15 = arith.constant 0 : index
    %29 = vector.load %arg6[%c0_14, %c0_15] : memref<2x128xf32, #tpu.memory_space<vmem>>, vector<2x128xf32>
    tpu.vector_store %arg6[%c0_14, %c0_15], %28 {strides = array<i32>} : memref<2x128xf32, #tpu.memory_space<vmem>>, vector<2x128xf32>,
    return
  }
  func.func @transform_0(%arg0: i32) -> (i32, i32) {
    %c0_i32 = arith.constant 0 : i32
    %c0_i32_0 = arith.constant 0 : i32
    return %arg0, %c0_i32 : i32, i32
  }
  func.func @transform_1(%arg0: i32) -> (i32, i32) {
    %c0_i32 = arith.constant 0 : i32
    %c0_i32_0 = arith.constant 0 : i32
    %c0_i32_1 = arith.constant 0 : i32
    return %c0_i32, %c0_i32_0 : i32, i32
  }
  func.func @transform_2(%arg0: i32) -> (i32, i32) {
    %c0_i32 = arith.constant 0 : i32
    %c0_i32_0 = arith.constant 0 : i32
    %c0_i32_1 = arith.constant 0 : i32
    return %c0_i32, %c0_i32_0 : i32, i32
  }
  func.func @transform_3(%arg0: i32) -> (i32, i32) {
    %c0_i32 = arith.constant 0 : i32
    %c0_i32_0 = arith.constant 0 : i32
    %c0_i32_1 = arith.constant 0 : i32
    return %c0_i32, %c0_i32_0 : i32, i32
  }
  func.func @transform_4(%arg0: i32) -> (i32, i32) {
    %c0_i32 = arith.constant 0 : i32
    %c0_i32_0 = arith.constant 0 : i32
    %c0_i32_1 = arith.constant 0 : i32
    return %c0_i32, %c0_i32_0 : i32, i32
  }
  func.func @transform_5(%arg0: i32) -> (i32, i32) {
    %c0_i32 = arith.constant 0 : i32
    %c0_i32_0 = arith.constant 0 : i32
    return %arg0, %c0_i32 : i32, i32
  }
}

module attributes {stable_mosaic.version = 11 : i64} {
  func.func @_conv_pool_relu_kernel(%arg0: i32, %arg1: memref<32x384xbf16, #tpu.memory_space<vmem>>, %arg2: memref<384x512xbf16, #tpu.memory_space<vmem>>, %arg3: memref<1x128xf32, #tpu.memory_space<vmem>>, %arg4: memref<32x128xbf16, #tpu.memory_space<vmem>>) attributes {dimension_semantics = [#tpu.dimension_semantics<parallel>], iteration_bounds = array<i64: 1>, scalar_prefetch = 0 : i64, scratch_operands = 0 : i64, tpu.core_type = #tpu.core_type<tc>, window_params = [{transform_indices = @transform_0, window_bounds = array<i64: 32, 384>}, {pipeline_mode = #tpu.pipeline_mode<synchronous>, transform_indices = @transform_1, window_bounds = array<i64: 384, 512>}, {pipeline_mode = #tpu.pipeline_mode<synchronous>, transform_indices = @transform_2, window_bounds = array<i64: 1, 128>}, {transform_indices = @transform_3, window_bounds = array<i64: 32, 128>}]} {
    %c0 = arith.constant 0 : index
    %c0_0 = arith.constant 0 : index
    %0 = vector.load %arg1[%c0, %c0_0] : memref<32x384xbf16, #tpu.memory_space<vmem>>, vector<32x384xbf16>
    %c0_1 = arith.constant 0 : index
    %c0_2 = arith.constant 0 : index
    %1 = vector.load %arg2[%c0_1, %c0_2] : memref<384x512xbf16, #tpu.memory_space<vmem>>, vector<384x512xbf16>
    %cst = arith.constant dense<0.000000e+00> : vector<32x512xf32>
    %2 = tpu.matmul %0, %1, %cst {dimension_numbers = #tpu.dot_dimension_numbers<[1], [0], [0], [1], [0, 0, 1, 1], [], []>} : vector<32x384xbf16>, vector<384x512xbf16>, vector<32x512xf32> -> vector<32x512xf32>
    %3 = vector.extract_strided_slice %2 {offsets = [0, 0], sizes = [32, 128], strides = [1, 1]} : vector<32x512xf32> to vector<32x128xf32>
    %4 = vector.extract_strided_slice %2 {offsets = [0, 128], sizes = [32, 128], strides = [1, 1]} : vector<32x512xf32> to vector<32x128xf32>
    %5 = arith.maximumf %3, %4 : vector<32x128xf32>
    %6 = vector.extract_strided_slice %2 {offsets = [0, 256], sizes = [32, 128], strides = [1, 1]} : vector<32x512xf32> to vector<32x128xf32>
    %7 = vector.extract_strided_slice %2 {offsets = [0, 384], sizes = [32, 128], strides = [1, 1]} : vector<32x512xf32> to vector<32x128xf32>
    %8 = arith.maximumf %6, %7 : vector<32x128xf32>
    %9 = arith.maximumf %5, %8 : vector<32x128xf32>
    %c0_3 = arith.constant 0 : index
    %c0_4 = arith.constant 0 : index
    %10 = vector.load %arg3[%c0_3, %c0_4] : memref<1x128xf32, #tpu.memory_space<vmem>>, vector<1x128xf32>
    %11 = vector.broadcast %10 : vector<1x128xf32> to vector<32x128xf32>
    %12 = arith.addf %9, %11 : vector<32x128xf32>
    %cst_5 = arith.constant 0.000000e+00 : f32
    %13 = vector.broadcast %cst_5 : f32 to vector<32x128xf32>
    %14 = arith.maximumf %12, %13 : vector<32x128xf32>
    %15 = arith.truncf %14 : vector<32x128xf32> to vector<32x128xbf16>
    %c0_6 = arith.constant 0 : index
    %c0_7 = arith.constant 0 : index
    %16 = vector.load %arg4[%c0_6, %c0_7] : memref<32x128xbf16, #tpu.memory_space<vmem>>, vector<32x128xbf16>
    tpu.vector_store %arg4[%c0_6, %c0_7], %15 {strides = array<i32>} : memref<32x128xbf16, #tpu.memory_space<vmem>>, vector<32x128xbf16>,
    return
  }
  func.func @transform_0(%arg0: i32) -> (i32, i32) {
    %c0_i32 = arith.constant 0 : i32
    %c0_i32_0 = arith.constant 0 : i32
    return %arg0, %c0_i32 : i32, i32
  }
  func.func @transform_1(%arg0: i32) -> (i32, i32) {
    %c0_i32 = arith.constant 0 : i32
    %c0_i32_0 = arith.constant 0 : i32
    %c0_i32_1 = arith.constant 0 : i32
    return %c0_i32, %c0_i32_0 : i32, i32
  }
  func.func @transform_2(%arg0: i32) -> (i32, i32) {
    %c0_i32 = arith.constant 0 : i32
    %c0_i32_0 = arith.constant 0 : i32
    %c0_i32_1 = arith.constant 0 : i32
    return %c0_i32, %c0_i32_0 : i32, i32
  }
  func.func @transform_3(%arg0: i32) -> (i32, i32) {
    %c0_i32 = arith.constant 0 : i32
    %c0_i32_0 = arith.constant 0 : i32
    return %arg0, %c0_i32 : i32, i32
  }
}

</mosaic_0001>

<llo_original>
// kernel: net_forward.3
$region0: #{net_forward.3}
  #allocation0 [shape = 'u32[]', space=smem, size = 0x4, offset = 0x4, fixed_abs, tag = 'smem constant byte address 0x4 - core index']
  #allocation1 [shape = 'u32[144,128]{1,0:T(1,128)}', space=vmem, size = 0x12000, scoped, tag = 'internal scratch']
  %s0 = inlined_call_operand.vmem [shape: bf16[288,128], index: 0, kind: input, shape index: {}]
  %s1 = inlined_call_operand.vmem [shape: bf16[128,512], index: 1, kind: input, shape index: {}]
  %s2 = inlined_call_operand.vmem [shape: f32[1,128], index: 2, kind: input, shape index: {}]
  %s3 = inlined_call_operand.vmem [shape: bf16[288,128], index: 3, kind: output, shape index: {}]
  %s4 = sld [smem:[#allocation0]]
  $region22: #{net_forward.3} parent=0
    _
  %s6 = ssub.s32 1, %s4
  %s7 = scalar_select 0, %s6, %s4
  // Predicated region
  $region2: #{net_forward.3} parent=0 // pred_check
    _
  $region3: #{net_forward.3} parent=0 // pred_check_branch
    %9 = sbr.rel (0) target = $region5
  $region4: #{net_forward.3} parent=0 // pred_region
    _
  $region5: #{net_forward.3} parent=0 // pred_fallthru
    _
  // Predicated region
  $region6: #{net_forward.3} parent=0 // pred_check
    _
  $region7: #{net_forward.3} parent=0 // pred_check_branch
    %11 = sbr.rel (0) target = $region9
  $region8: #{net_forward.3} parent=0 // pred_region
    _
  $region9: #{net_forward.3} parent=0 // pred_fallthru
    _
  // Predicated region
  $region10: #{net_forward.3} parent=0 // pred_check
    _
  $region11: #{net_forward.3} parent=0 // pred_check_branch
    %13 = sbr.rel (0) target = $region13
  $region12: #{net_forward.3} parent=0 // pred_region
    _
  $region13: #{net_forward.3} parent=0 // pred_fallthru
    _
  %v15 = vld [vmem:[%s0] sm:$0xf]
  %v16 = vld [vmem:[%s0 + $0x4] sm:$0xf]
  %v17 = vld [vmem:[%s0 + $0x8] sm:$0xf]
  %v18 = vld [vmem:[%s0 + $0xc] sm:$0xf]
  %v19 = vld [vmem:[%s0 + $0x10] sm:$0xf]
  %v20 = vld [vmem:[%s0 + $0x14] sm:$0xf]
  %v21 = vld [vmem:[%s0 + $0x18] sm:$0xf]
  %v22 = vld [vmem:[%s0 + $0x1c] sm:$0xf]
  %v23 = vld [vmem:[%s0 + $0x20] sm:$0xf]
  %v24 = vld [vmem:[%s0 + $0x24] sm:$0xf]
  %v25 = vld [vmem:[%s0 + $0x28] sm:$0xf]
  %v26 = vld [vmem:[%s0 + $0x2c] sm:$0xf]
  %v27 = vld [vmem:[%s0 + $0x30] sm:$0xf]
  %v28 = vld [vmem:[%s0 + $0x34] sm:$0xf]
  %v29 = vld [vmem:[%s0 + $0x38] sm:$0xf]
  %v30 = vld [vmem:[%s0 + $0x3c] sm:$0xf]
  %v31 = vld [vmem:[%s0 + $0x40] sm:$0xf]
  %v32 = vld [vmem:[%s0 + $0x44] sm:$0xf]
  %v33 = vld [vmem:[%s0 + $0x48] sm:$0xf]
  %v34 = vld [vmem:[%s0 + $0x4c] sm:$0xf]
  %v35 = vld [vmem:[%s0 + $0x50] sm:$0xf]
  %v36 = vld [vmem:[%s0 + $0x54] sm:$0xf]
  %v37 = vld [vmem:[%s0 + $0x58] sm:$0xf]
  %v38 = vld [vmem:[%s0 + $0x5c] sm:$0xf]
  %v39 = vld [vmem:[%s0 + $0x60] sm:$0xf]
  %v40 = vld [vmem:[%s0 + $0x64] sm:$0xf]
  %v41 = vld [vmem:[%s0 + $0x68] sm:$0xf]
  %v42 = vld [vmem:[%s0 + $0x6c] sm:$0xf]
  %v43 = vld [vmem:[%s0 + $0x70] sm:$0xf]
  %v44 = vld [vmem:[%s0 + $0x74] sm:$0xf]
  %v45 = vld [vmem:[%s0 + $0x78] sm:$0xf]
  %v46 = vld [vmem:[%s0 + $0x7c] sm:$0xf]
  %v47 = vld [vmem:[%s0 + $0x80] sm:$0xf]
  %v48 = vld [vmem:[%s0 + $0x84] sm:$0xf]
  %v49 = vld [vmem:[%s0 + $0x88] sm:$0xf]
  %v50 = vld [vmem:[%s0 + $0x8c] sm:$0xf]
  %v51 = vld [vmem:[%s1] sm:$0xff]
  %v52 = vld [vmem:[%s1 + $0x8] sm:$0xff]
  %v53 = vld [vmem:[%s1 + $0x10] sm:$0xff]
  %v54 = vld [vmem:[%s1 + $0x18] sm:$0xff]
  %v55 = vld [vmem:[%s1 + $0x20] sm:$0xff]
  %v56 = vld [vmem:[%s1 + $0x28] sm:$0xff]
  %v57 = vld [vmem:[%s1 + $0x30] sm:$0xff]
  %v58 = vld [vmem:[%s1 + $0x38] sm:$0xff]
  %v59 = vld [vmem:[%s1 + $0x40] sm:$0xff]
  %v60 = vld [vmem:[%s1 + $0x48] sm:$0xff]
  %v61 = vld [vmem:[%s1 + $0x50] sm:$0xff]
  %v62 = vld [vmem:[%s1 + $0x58] sm:$0xff]
  %v63 = vld [vmem:[%s1 + $0x60] sm:$0xff]
  %v64 = vld [vmem:[%s1 + $0x68] sm:$0xff]
  %v65 = vld [vmem:[%s1 + $0x70] sm:$0xff]
  %v66 = vld [vmem:[%s1 + $0x78] sm:$0xff]
  %v67 = vld [vmem:[%s1 + $0x80] sm:$0xff]
  %v68 = vld [vmem:[%s1 + $0x88] sm:$0xff]
  %v69 = vld [vmem:[%s1 + $0x90] sm:$0xff]
  %v70 = vld [vmem:[%s1 + $0x98] sm:$0xff]
  %v71 = vld [vmem:[%s1 + $0xa0] sm:$0xff]
  %v72 = vld [vmem:[%s1 + $0xa8] sm:$0xff]
  %v73 = vld [vmem:[%s1 + $0xb0] sm:$0xff]
  %v74 = vld [vmem:[%s1 + $0xb8] sm:$0xff]
  %v75 = vld [vmem:[%s1 + $0xc0] sm:$0xff]
  %v76 = vld [vmem:[%s1 + $0xc8] sm:$0xff]
  %v77 = vld [vmem:[%s1 + $0xd0] sm:$0xff]
  %v78 = vld [vmem:[%s1 + $0xd8] sm:$0xff]
  %v79 = vld [vmem:[%s1 + $0xe0] sm:$0xff]
  %v80 = vld [vmem:[%s1 + $0xe8] sm:$0xff]
  %v81 = vld [vmem:[%s1 + $0xf0] sm:$0xff]
  %v82 = vld [vmem:[%s1 + $0xf8] sm:$0xff]
  %v119 = vunpack.c.l.b16 %v15
  %v120 = vunpack.c.l.b16 %v16
  %v121 = vunpack.c.l.b16 %v17
  %v122 = vunpack.c.l.b16 %v18
  %v123 = vunpack.c.l.b16 %v19
  %v124 = vunpack.c.l.b16 %v20
  %v125 = vunpack.c.l.b16 %v21
  %v126 = vunpack.c.l.b16 %v22
  %v127 = vunpack.c.l.b16 %v23
  %v128 = vunpack.c.l.b16 %v24
  %v129 = vunpack.c.l.b16 %v25
  %v130 = vunpack.c.l.b16 %v26
  %v131 = vunpack.c.l.b16 %v27
  %v132 = vunpack.c.l.b16 %v28
  %v133 = vunpack.c.l.b16 %v29
  %v134 = vunpack.c.l.b16 %v30
  %v135 = vunpack.c.l.b16 %v31
  %v136 = vunpack.c.l.b16 %v32
  %v137 = vunpack.c.l.b16 %v33
  %v138 = vunpack.c.l.b16 %v34
  %v139 = vunpack.c.l.b16 %v35
  %v140 = vunpack.c.l.b16 %v36
  %v141 = vunpack.c.l.b16 %v37
  %v142 = vunpack.c.l.b16 %v38
  %v143 = vunpack.c.l.b16 %v39
  %v144 = vunpack.c.l.b16 %v40
  %v145 = vunpack.c.l.b16 %v41
  %v146 = vunpack.c.l.b16 %v42
  %v147 = vunpack.c.l.b16 %v43
  %v148 = vunpack.c.l.b16 %v44
  %v149 = vunpack.c.l.b16 %v45
  %v150 = vunpack.c.l.b16 %v46
  %v151 = vunpack.c.l.b16 %v47
  %v152 = vunpack.c.l.b16 %v48
  %v153 = vunpack.c.l.b16 %v49
  %v154 = vunpack.c.l.b16 %v50
  %v155 = vpack.c.b16 %v120, %v119
  %v156 = vpack.c.b16 %v122, %v121
  %v157 = vpack.c.b16 %v124, %v123
  %v158 = vpack.c.b16 %v126, %v125
  %v159 = vpack.c.b16 %v128, %v127
  %v160 = vpack.c.b16 %v130, %v129
  %v161 = vpack.c.b16 %v132, %v131
  %v162 = vpack.c.b16 %v134, %v133
  %v163 = vpack.c.b16 %v136, %v135
  %v164 = vpack.c.b16 %v138, %v137
  %v165 = vpack.c.b16 %v140, %v139
  %v166 = vpack.c.b16 %v142, %v141
  %v167 = vpack.c.b16 %v144, %v143
  %v168 = vpack.c.b16 %v146, %v145
  %v169 = vpack.c.b16 %v148, %v147
  %v170 = vpack.c.b16 %v150, %v149
  %v171 = vpack.c.b16 %v152, %v151
  %v172 = vpack.c.b16 %v154, %v153
  %v223 = vunpack.c.l.b16 %v51
  %v224 = vunpack.c.h.b16 %v51
  %v225 = vunpack.c.l.b16 %v52
  %v226 = vunpack.c.h.b16 %v52
  %v227 = vunpack.c.l.b16 %v53
  %v228 = vunpack.c.h.b16 %v53
  %v229 = vunpack.c.l.b16 %v54
  %v230 = vunpack.c.h.b16 %v54
  %v231 = vunpack.c.l.b16 %v55
  %v232 = vunpack.c.h.b16 %v55
  %v233 = vunpack.c.l.b16 %v56
  %v234 = vunpack.c.h.b16 %v56
  %v235 = vunpack.c.l.b16 %v57
  %v236 = vunpack.c.h.b16 %v57
  %v237 = vunpack.c.l.b16 %v58
  %v238 = vunpack.c.h.b16 %v58
  %v239 = vunpack.c.l.b16 %v59
  %v240 = vunpack.c.h.b16 %v59
  %v241 = vunpack.c.l.b16 %v60
  %v242 = vunpack.c.h.b16 %v60
  %v243 = vunpack.c.l.b16 %v61
  %v244 = vunpack.c.h.b16 %v61
  %v245 = vunpack.c.l.b16 %v62
  %v246 = vunpack.c.h.b16 %v62
  %v247 = vunpack.c.l.b16 %v63
  %v248 = vunpack.c.h.b16 %v63
  %v249 = vunpack.c.l.b16 %v64
  %v250 = vunpack.c.h.b16 %v64
  %v251 = vunpack.c.l.b16 %v65
  %v252 = vunpack.c.h.b16 %v65
  %v253 = vunpack.c.l.b16 %v66
  %v254 = vunpack.c.h.b16 %v66
  %v255 = vunpack.c.l.b16 %v67
  %v256 = vunpack.c.h.b16 %v67
  %v257 = vunpack.c.l.b16 %v68
  %v258 = vunpack.c.h.b16 %v68
  %v259 = vunpack.c.l.b16 %v69
  %v260 = vunpack.c.h.b16 %v69
  %v261 = vunpack.c.l.b16 %v70
  %v262 = vunpack.c.h.b16 %v70
  %v263 = vunpack.c.l.b16 %v71
  %v264 = vunpack.c.h.b16 %v71
  %v265 = vunpack.c.l.b16 %v72
  %v266 = vunpack.c.h.b16 %v72
  %v267 = vunpack.c.l.b16 %v73
  %v268 = vunpack.c.h.b16 %v73
  %v269 = vunpack.c.l.b16 %v74
  %v270 = vunpack.c.h.b16 %v74
  %v271 = vunpack.c.l.b16 %v75
  %v272 = vunpack.c.h.b16 %v75
  %v273 = vunpack.c.l.b16 %v76
  %v274 = vunpack.c.h.b16 %v76
  %v275 = vunpack.c.l.b16 %v77
  %v276 = vunpack.c.h.b16 %v77
  %v277 = vunpack.c.l.b16 %v78
  %v278 = vunpack.c.h.b16 %v78
  %v279 = vunpack.c.l.b16 %v79
  %v280 = vunpack.c.h.b16 %v79
  %v281 = vunpack.c.l.b16 %v80
  %v282 = vunpack.c.h.b16 %v80
  %v283 = vunpack.c.l.b16 %v81
  %v284 = vunpack.c.h.b16 %v81
  %v285 = vunpack.c.l.b16 %v82
  %v286 = vunpack.c.h.b16 %v82
  %v287 = vpack.c.b16 %v227, %v223
  %v288 = vpack.c.b16 %v228, %v224
  %v289 = vpack.c.b16 %v229, %v225
  %v290 = vpack.c.b16 %v230, %v226
  %v291 = vpack.c.b16 %v235, %v231
  %v292 = vpack.c.b16 %v236, %v232
  %v293 = vpack.c.b16 %v237, %v233
  %v294 = vpack.c.b16 %v238, %v234
  %v295 = vpack.c.b16 %v243, %v239
  %v296 = vpack.c.b16 %v244, %v240
  %v297 = vpack.c.b16 %v245, %v241
  %v298 = vpack.c.b16 %v246, %v242
  %v299 = vpack.c.b16 %v251, %v247
  %v300 = vpack.c.b16 %v252, %v248
  %v301 = vpack.c.b16 %v253, %v249
  %v302 = vpack.c.b16 %v254, %v250
  %v303 = vpack.c.b16 %v259, %v255
  %v304 = vpack.c.b16 %v260, %v256
  %v305 = vpack.c.b16 %v261, %v257
  %v306 = vpack.c.b16 %v262, %v258
  %v307 = vpack.c.b16 %v267, %v263
  %v308 = vpack.c.b16 %v268, %v264
  %v309 = vpack.c.b16 %v269, %v265
  %v310 = vpack.c.b16 %v270, %v266
  %v311 = vpack.c.b16 %v275, %v271
  %v312 = vpack.c.b16 %v276, %v272
  %v313 = vpack.c.b16 %v277, %v273
  %v314 = vpack.c.b16 %v278, %v274
  %v315 = vpack.c.b16 %v283, %v279
  %v316 = vpack.c.b16 %v284, %v280
  %v317 = vpack.c.b16 %v285, %v281
  %v318 = vpack.c.b16 %v286, %v282
  %351 = vmatprep.subr.bf16.mxu0 %v288
  %352 = vmatpush1.bf16.msra.mxu0 %v287
  %353 = vmatprep.subr.bf16.mxu0 %v292
  %354 = vmatpush1.bf16.msra.mxu0 %v291
  %355 = vmatprep.subr.bf16.mxu0 %v296
  %356 = vmatpush1.bf16.msra.mxu0 %v295
  %357 = vmatprep.subr.bf16.mxu0 %v300
  %358 = vmatpush1.bf16.msra.mxu0 %v299
  %359 = vmatprep.subr.bf16.mxu0 %v304
  %360 = vmatpush1.bf16.msra.mxu0 %v303
  %361 = vmatprep.subr.bf16.mxu0 %v308
  %362 = vmatpush1.bf16.msra.mxu0 %v307
  %363 = vmatprep.subr.bf16.mxu0 %v312
  %364 = vmatpush1.bf16.msra.mxu0 %v311
  %365 = vmatprep.subr.bf16.mxu0 %v316
  %366 = vmatpush1.bf16.msra.mxu0 %v315
  %367 = vmatprep.subr.bf16.mxu0 0
  %368 = vmatpush1.bf16.msra.mxu0 0
  %369 = vmatprep.subr.bf16.mxu0 0
  %370 = vmatpush1.bf16.msra.mxu0 0
  %371 = vmatprep.subr.bf16.mxu0 0
  %372 = vmatpush1.bf16.msra.mxu0 0
  %373 = vmatprep.subr.bf16.mxu0 0
  %374 = vmatpush1.bf16.msra.mxu0 0
  %375 = vmatprep.subr.bf16.mxu0 0
  %376 = vmatpush1.bf16.msra.mxu0 0
  %377 = vmatprep.subr.bf16.mxu0 0
  %378 = vmatpush1.bf16.msra.mxu0 0
  %379 = vmatprep.subr.bf16.mxu0 0
  %380 = vmatpush1.bf16.msra.mxu0 0
  %381 = vmatprep.subr.bf16.mxu0 0
  %382 = vmatpush1.bf16.msra.mxu0 0
  %383 = vmatprep.mubr.bf16.mxu0 0
  %384 = vmatmul.mubr.bf16.gmra.mrb[0].mxu0 %v155
  %v385 = vpop.f32.mrb[0].mxu0
  %v386 = vadd.f32 0.0, %v385
  %v387 = vpop.f32.mrb[0].mxu0
  %v388 = vadd.f32 0.0, %v387
  %v389 = vpop.f32.mrb[0].mxu0
  %v390 = vadd.f32 0.0, %v389
  %v391 = vpop.f32.mrb[0].mxu0
  %v392 = vadd.f32 0.0, %v391
  %393 = vmatprep.mubr.bf16.mxu0 0
  %394 = vmatmul.mubr.bf16.gmra.mrb[0].mxu0 %v156
  %v395 = vpop.f32.mrb[0].mxu0
  %v396 = vadd.f32 0.0, %v395
  %v397 = vpop.f32.mrb[0].mxu0
  %v398 = vadd.f32 0.0, %v397
  %v399 = vpop.f32.mrb[0].mxu0
  %v400 = vadd.f32 0.0, %v399
  %v401 = vpop.f32.mrb[0].mxu0
  %v402 = vadd.f32 0.0, %v401
  %403 = vmatprep.mubr.bf16.mxu0 0
  %404 = vmatmul.mubr.bf16.gmra.mrb[0].mxu0 %v157
  %v405 = vpop.f32.mrb[0].mxu0
  %v406 = vadd.f32 0.0, %v405
  %v407 = vpop.f32.mrb[0].mxu0
  %v408 = vadd.f32 0.0, %v407
  %v409 = vpop.f32.mrb[0].mxu0
  %v410 = vadd.f32 0.0, %v409
  %v411 = vpop.f32.mrb[0].mxu0
  %v412 = vadd.f32 0.0, %v411
  %413 = vmatprep.mubr.bf16.mxu0 0
  %414 = vmatmul.mubr.bf16.gmra.mrb[0].mxu0 %v158
  %v415 = vpop.f32.mrb[0].mxu0
  %v416 = vadd.f32 0.0, %v415
  %v417 = vpop.f32.mrb[0].mxu0
  %v418 = vadd.f32 0.0, %v417
  %v419 = vpop.f32.mrb[0].mxu0
  %v420 = vadd.f32 0.0, %v419
  %v421 = vpop.f32.mrb[0].mxu0
  %v422 = vadd.f32 0.0, %v421
  %423 = vmatprep.mubr.bf16.mxu0 0
  %424 = vmatmul.mubr.bf16.gmra.mrb[0].mxu0 %v159
  %v425 = vpop.f32.mrb[0].mxu0
  %v426 = vadd.f32 0.0, %v425
  %v427 = vpop.f32.mrb[0].mxu0
  %v428 = vadd.f32 0.0, %v427
  %v429 = vpop.f32.mrb[0].mxu0
  %v430 = vadd.f32 0.0, %v429
  %v431 = vpop.f32.mrb[0].mxu0
  %v432 = vadd.f32 0.0, %v431
  %433 = vmatprep.mubr.bf16.mxu0 0
  %434 = vmatmul.mubr.bf16.gmra.mrb[0].mxu0 %v160
  %v435 = vpop.f32.mrb[0].mxu0
  %v436 = vadd.f32 0.0, %v435
  %v437 = vpop.f32.mrb[0].mxu0
  %v438 = vadd.f32 0.0, %v437
  %v439 = vpop.f32.mrb[0].mxu0
  %v440 = vadd.f32 0.0, %v439
  %v441 = vpop.f32.mrb[0].mxu0
  %v442 = vadd.f32 0.0, %v441
  %443 = vmatprep.mubr.bf16.mxu0 0
  %444 = vmatmul.mubr.bf16.gmra.mrb[0].mxu0 %v161
  %v445 = vpop.f32.mrb[0].mxu0
  %v446 = vadd.f32 0.0, %v445
  %v447 = vpop.f32.mrb[0].mxu0
  %v448 = vadd.f32 0.0, %v447
  %v449 = vpop.f32.mrb[0].mxu0
  %v450 = vadd.f32 0.0, %v449
  %v451 = vpop.f32.mrb[0].mxu0
  %v452 = vadd.f32 0.0, %v451
  %453 = vmatprep.mubr.bf16.mxu0 0
  %454 = vmatmul.mubr.bf16.gmra.mrb[0].mxu0 %v162
  %v455 = vpop.f32.mrb[0].mxu0
  %v456 = vadd.f32 0.0, %v455
  %v457 = vpop.f32.mrb[0].mxu0
  %v458 = vadd.f32 0.0, %v457
  %v459 = vpop.f32.mrb[0].mxu0
  %v460 = vadd.f32 0.0, %v459
  %v461 = vpop.f32.mrb[0].mxu0
  %v462 = vadd.f32 0.0, %v461
  %463 = vmatprep.mubr.bf16.mxu0 0
  %464 = vmatmul.mubr.bf16.gmra.mrb[0].mxu0 %v163
  %v465 = vpop.f32.mrb[0].mxu0
  %v466 = vadd.f32 0.0, %v465
  %v467 = vpop.f32.mrb[0].mxu0
  %v468 = vadd.f32 0.0, %v467
  %v469 = vpop.f32.mrb[0].mxu0
  %v470 = vadd.f32 0.0, %v469
  %v471 = vpop.f32.mrb[0].mxu0
  %v472 = vadd.f32 0.0, %v471
  %473 = vmatprep.mubr.bf16.mxu0 0
  %474 = vmatmul.mubr.bf16.gmra.mrb[0].mxu0 %v164
  %v475 = vpop.f32.mrb[0].mxu0
  %v476 = vadd.f32 0.0, %v475
  %v477 = vpop.f32.mrb[0].mxu0
  %v478 = vadd.f32 0.0, %v477
  %v479 = vpop.f32.mrb[0].mxu0
  %v480 = vadd.f32 0.0, %v479
  %v481 = vpop.f32.mrb[0].mxu0
  %v482 = vadd.f32 0.0, %v481
  %483 = vmatprep.mubr.bf16.mxu0 0
  %484 = vmatmul.mubr.bf16.gmra.mrb[0].mxu0 %v165
  %v485 = vpop.f32.mrb[0].mxu0
  %v486 = vadd.f32 0.0, %v485
  %v487 = vpop.f32.mrb[0].mxu0
  %v488 = vadd.f32 0.0, %v487
  %v489 = vpop.f32.mrb[0].mxu0
  %v490 = vadd.f32 0.0, %v489
  %v491 = vpop.f32.mrb[0].mxu0
  %v492 = vadd.f32 0.0, %v491
  %493 = vmatprep.mubr.bf16.mxu0 0
  %494 = vmatmul.mubr.bf16.gmra.mrb[0].mxu0 %v166
  %v495 = vpop.f32.mrb[0].mxu0
  %v496 = vadd.f32 0.0, %v495
  %v497 = vpop.f32.mrb[0].mxu0
  %v498 = vadd.f32 0.0, %v497
  %v499 = vpop.f32.mrb[0].mxu0
  %v500 = vadd.f32 0.0, %v499
  %v501 = vpop.f32.mrb[0].mxu0
  %v502 = vadd.f32 0.0, %v501
  %503 = vmatprep.mubr.bf16.mxu0 0
  %504 = vmatmul.mubr.bf16.gmra.mrb[0].mxu0 %v167
  %v505 = vpop.f32.mrb[0].mxu0
  %v506 = vadd.f32 0.0, %v505
  %v507 = vpop.f32.mrb[0].mxu0
  %v508 = vadd.f32 0.0, %v507
  %v509 = vpop.f32.mrb[0].mxu0
  %v510 = vadd.f32 0.0, %v509
  %v511 = vpop.f32.mrb[0].mxu0
  %v512 = vadd.f32 0.0, %v511
  %513 = vmatprep.mubr.bf16.mxu0 0
  %514 = vmatmul.mubr.bf16.gmra.mrb[0].mxu0 %v168
  %v515 = vpop.f32.mrb[0].mxu0
  %v516 = vadd.f32 0.0, %v515
  %v517 = vpop.f32.mrb[0].mxu0
  %v518 = vadd.f32 0.0, %v517
  %v519 = vpop.f32.mrb[0].mxu0
  %v520 = vadd.f32 0.0, %v519
  %v521 = vpop.f32.mrb[0].mxu0
  %v522 = vadd.f32 0.0, %v521
  %523 = vmatprep.mubr.bf16.mxu0 0
  %524 = vmatmul.mubr.bf16.gmra.mrb[0].mxu0 %v169
  %v525 = vpop.f32.mrb[0].mxu0
  %v526 = vadd.f32 0.0, %v525
  %v527 = vpop.f32.mrb[0].mxu0
  %v528 = vadd.f32 0.0, %v527
  %v529 = vpop.f32.mrb[0].mxu0
  %v530 = vadd.f32 0.0, %v529
  %v531 = vpop.f32.mrb[0].mxu0
  %v532 = vadd.f32 0.0, %v531
  %533 = vmatprep.mubr.bf16.mxu0 0
  %534 = vmatmul.mubr.bf16.gmra.mrb[0].mxu0 %v170
  %v535 = vpop.f32.mrb[0].mxu0
  %v536 = vadd.f32 0.0, %v535
  %v537 = vpop.f32.mrb[0].mxu0
  %v538 = vadd.f32 0.0, %v537
  %v539 = vpop.f32.mrb[0].mxu0
  %v540 = vadd.f32 0.0, %v539
  %v541 = vpop.f32.mrb[0].mxu0
  %v542 = vadd.f32 0.0, %v541
  %543 = vmatprep.mubr.bf16.mxu0 0
  %544 = vmatmul.mubr.bf16.gmra.mrb[0].mxu0 %v171
  %v545 = vpop.f32.mrb[0].mxu0
  %v546 = vadd.f32 0.0, %v545
  %v547 = vpop.f32.mrb[0].mxu0
  %v548 = vadd.f32 0.0, %v547
  %v549 = vpop.f32.mrb[0].mxu0
  %v550 = vadd.f32 0.0, %v549
  %v551 = vpop.f32.mrb[0].mxu0
  %v552 = vadd.f32 0.0, %v551
  %553 = vmatprep.mubr.bf16.mxu0 0
  %554 = vmatmul.mubr.bf16.gmra.mrb[0].mxu0 %v172
  %v555 = vpop.f32.mrb[0].mxu0
  %v556 = vadd.f32 0.0, %v555
  %v557 = vpop.f32.mrb[0].mxu0
  %v558 = vadd.f32 0.0, %v557
  %v559 = vpop.f32.mrb[0].mxu0
  %v560 = vadd.f32 0.0, %v559
  %v561 = vpop.f32.mrb[0].mxu0
  %v562 = vadd.f32 0.0, %v561
  %563 = vdwg.mxu0
  %564 = vmatprep.subr.bf16.mxu0 %v290
  %565 = vmatpush1.bf16.msra.mxu0 %v289
  %566 = vmatprep.subr.bf16.mxu0 %v294
  %567 = vmatpush1.bf16.msra.mxu0 %v293
  %568 = vmatprep.subr.bf16.mxu0 %v298
  %569 = vmatpush1.bf16.msra.mxu0 %v297
  %570 = vmatprep.subr.bf16.mxu0 %v302
  %571 = vmatpush1.bf16.msra.mxu0 %v301
  %572 = vmatprep.subr.bf16.mxu0 %v306
  %573 = vmatpush1.bf16.msra.mxu0 %v305
  %574 = vmatprep.subr.bf16.mxu0 %v310
  %575 = vmatpush1.bf16.msra.mxu0 %v309
  %576 = vmatprep.subr.bf16.mxu0 %v314
  %577 = vmatpush1.bf16.msra.mxu0 %v313
  %578 = vmatprep.subr.bf16.mxu0 %v318
  %579 = vmatpush1.bf16.msra.mxu0 %v317
  %580 = vmatprep.subr.bf16.mxu0 0
  %581 = vmatpush1.bf16.msra.mxu0 0
  %582 = vmatprep.subr.bf16.mxu0 0
  %583 = vmatpush1.bf16.msra.mxu0 0
  %584 = vmatprep.subr.bf16.mxu0 0
  %585 = vmatpush1.bf16.msra.mxu0 0
  %586 = vmatprep.subr.bf16.mxu0 0
  %587 = vmatpush1.bf16.msra.mxu0 0
  %588 = vmatprep.subr.bf16.mxu0 0
  %589 = vmatpush1.bf16.msra.mxu0 0
  %590 = vmatprep.subr.bf16.mxu0 0
  %591 = vmatpush1.bf16.msra.mxu0 0
  %592 = vmatprep.subr.bf16.mxu0 0
  %593 = vmatpush1.bf16.msra.mxu0 0
  %594 = vmatprep.subr.bf16.mxu0 0
  %595 = vmatpush1.bf16.msra.mxu0 0
  %596 = vmatprep.mubr.bf16.mxu0 0
  %597 = vmatmul.mubr.bf16.gmra.mrb[0].mxu0 %v155
  %v598 = vpop.f32.mrb[0].mxu0
  %v599 = vadd.f32 0.0, %v598
  %v600 = vpop.f32.mrb[0].mxu0
  %v601 = vadd.f32 0.0, %v600
  %v602 = vpop.f32.mrb[0].mxu0
  %v603 = vadd.f32 0.0, %v602
  %v604 = vpop.f32.mrb[0].mxu0
  %v605 = vadd.f32 0.0, %v604
  %606 = vmatprep.mubr.bf16.mxu0 0
  %607 = vmatmul.mubr.bf16.gmra.mrb[0].mxu0 %v156
  %v608 = vpop.f32.mrb[0].mxu0
  %v609 = vadd.f32 0.0, %v608
  %v610 = vpop.f32.mrb[0].mxu0
  %v611 = vadd.f32 0.0, %v610
  %v612 = vpop.f32.mrb[0].mxu0
  %v613 = vadd.f32 0.0, %v612
  %v614 = vpop.f32.mrb[0].mxu0
  %v615 = vadd.f32 0.0, %v614
  %616 = vmatprep.mubr.bf16.mxu0 0
  %617 = vmatmul.mubr.bf16.gmra.mrb[0].mxu0 %v157
  %v618 = vpop.f32.mrb[0].mxu0
  %v619 = vadd.f32 0.0, %v618
  %v620 = vpop.f32.mrb[0].mxu0
  %v621 = vadd.f32 0.0, %v620
  %v622 = vpop.f32.mrb[0].mxu0
  %v623 = vadd.f32 0.0, %v622
  %v624 = vpop.f32.mrb[0].mxu0
  %v625 = vadd.f32 0.0, %v624
  %626 = vmatprep.mubr.bf16.mxu0 0
  %627 = vmatmul.mubr.bf16.gmra.mrb[0].mxu0 %v158
  %v628 = vpop.f32.mrb[0].mxu0
  %v629 = vadd.f32 0.0, %v628
  %v630 = vpop.f32.mrb[0].mxu0
  %v631 = vadd.f32 0.0, %v630
  %v632 = vpop.f32.mrb[0].mxu0
  %v633 = vadd.f32 0.0, %v632
  %v634 = vpop.f32.mrb[0].mxu0
  %v635 = vadd.f32 0.0, %v634
  %636 = vmatprep.mubr.bf16.mxu0 0
  %637 = vmatmul.mubr.bf16.gmra.mrb[0].mxu0 %v159
  %v638 = vpop.f32.mrb[0].mxu0
  %v639 = vadd.f32 0.0, %v638
  %v640 = vpop.f32.mrb[0].mxu0
  %v641 = vadd.f32 0.0, %v640
  %v642 = vpop.f32.mrb[0].mxu0
  %v643 = vadd.f32 0.0, %v642
  %v644 = vpop.f32.mrb[0].mxu0
  %v645 = vadd.f32 0.0, %v644
  %646 = vmatprep.mubr.bf16.mxu0 0
  %647 = vmatmul.mubr.bf16.gmra.mrb[0].mxu0 %v160
  %v648 = vpop.f32.mrb[0].mxu0
  %v649 = vadd.f32 0.0, %v648
  %v650 = vpop.f32.mrb[0].mxu0
  %v651 = vadd.f32 0.0, %v650
  %v652 = vpop.f32.mrb[0].mxu0
  %v653 = vadd.f32 0.0, %v652
  %v654 = vpop.f32.mrb[0].mxu0
  %v655 = vadd.f32 0.0, %v654
  %656 = vmatprep.mubr.bf16.mxu0 0
  %657 = vmatmul.mubr.bf16.gmra.mrb[0].mxu0 %v161
  %v658 = vpop.f32.mrb[0].mxu0
  %v659 = vadd.f32 0.0, %v658
  %v660 = vpop.f32.mrb[0].mxu0
  %v661 = vadd.f32 0.0, %v660
  %v662 = vpop.f32.mrb[0].mxu0
  %v663 = vadd.f32 0.0, %v662
  %v664 = vpop.f32.mrb[0].mxu0
  %v665 = vadd.f32 0.0, %v664
  %666 = vmatprep.mubr.bf16.mxu0 0
  %667 = vmatmul.mubr.bf16.gmra.mrb[0].mxu0 %v162
  %v668 = vpop.f32.mrb[0].mxu0
  %v669 = vadd.f32 0.0, %v668
  %v670 = vpop.f32.mrb[0].mxu0
  %v671 = vadd.f32 0.0, %v670
  %v672 = vpop.f32.mrb[0].mxu0
  %v673 = vadd.f32 0.0, %v672
  %v674 = vpop.f32.mrb[0].mxu0
  %v675 = vadd.f32 0.0, %v674
  %676 = vmatprep.mubr.bf16.mxu0 0
  %677 = vmatmul.mubr.bf16.gmra.mrb[0].mxu0 %v163
  %v678 = vpop.f32.mrb[0].mxu0
  %v679 = vadd.f32 0.0, %v678
  %v680 = vpop.f32.mrb[0].mxu0
  %v681 = vadd.f32 0.0, %v680
  %v682 = vpop.f32.mrb[0].mxu0
  %v683 = vadd.f32 0.0, %v682
  %v684 = vpop.f32.mrb[0].mxu0
  %v685 = vadd.f32 0.0, %v684
  %686 = vmatprep.mubr.bf16.mxu0 0
  %687 = vmatmul.mubr.bf16.gmra.mrb[0].mxu0 %v164
  %v688 = vpop.f32.mrb[0].mxu0
  %v689 = vadd.f32 0.0, %v688
  %v690 = vpop.f32.mrb[0].mxu0
  %v691 = vadd.f32 0.0, %v690
  %v692 = vpop.f32.mrb[0].mxu0
  %v693 = vadd.f32 0.0, %v692
  %v694 = vpop.f32.mrb[0].mxu0
  %v695 = vadd.f32 0.0, %v694
  %696 = vmatprep.mubr.bf16.mxu0 0
  %697 = vmatmul.mubr.bf16.gmra.mrb[0].mxu0 %v165
  %v698 = vpop.f32.mrb[0].mxu0
  %v699 = vadd.f32 0.0, %v698
  %v700 = vpop.f32.mrb[0].mxu0
  %v701 = vadd.f32 0.0, %v700
  %v702 = vpop.f32.mrb[0].mxu0
  %v703 = vadd.f32 0.0, %v702
  %v704 = vpop.f32.mrb[0].mxu0
  %v705 = vadd.f32 0.0, %v704
  %706 = vmatprep.mubr.bf16.mxu0 0
  %707 = vmatmul.mubr.bf16.gmra.mrb[0].mxu0 %v166
  %v708 = vpop.f32.mrb[0].mxu0
  %v709 = vadd.f32 0.0, %v708
  %v710 = vpop.f32.mrb[0].mxu0
  %v711 = vadd.f32 0.0, %v710
  %v712 = vpop.f32.mrb[0].mxu0
  %v713 = vadd.f32 0.0, %v712
  %v714 = vpop.f32.mrb[0].mxu0
  %v715 = vadd.f32 0.0, %v714
  %716 = vmatprep.mubr.bf16.mxu0 0
  %717 = vmatmul.mubr.bf16.gmra.mrb[0].mxu0 %v167
  %v718 = vpop.f32.mrb[0].mxu0
  %v719 = vadd.f32 0.0, %v718
  %v720 = vpop.f32.mrb[0].mxu0
  %v721 = vadd.f32 0.0, %v720
  %v722 = vpop.f32.mrb[0].mxu0
  %v723 = vadd.f32 0.0, %v722
  %v724 = vpop.f32.mrb[0].mxu0
  %v725 = vadd.f32 0.0, %v724
  %726 = vmatprep.mubr.bf16.mxu0 0
  %727 = vmatmul.mubr.bf16.gmra.mrb[0].mxu0 %v168
  %v728 = vpop.f32.mrb[0].mxu0
  %v729 = vadd.f32 0.0, %v728
  %v730 = vpop.f32.mrb[0].mxu0
  %v731 = vadd.f32 0.0, %v730
  %v732 = vpop.f32.mrb[0].mxu0
  %v733 = vadd.f32 0.0, %v732
  %v734 = vpop.f32.mrb[0].mxu0
  %v735 = vadd.f32 0.0, %v734
  %736 = vmatprep.mubr.bf16.mxu0 0
  %737 = vmatmul.mubr.bf16.gmra.mrb[0].mxu0 %v169
  %v738 = vpop.f32.mrb[0].mxu0
  %v739 = vadd.f32 0.0, %v738
  %v740 = vpop.f32.mrb[0].mxu0
  %v741 = vadd.f32 0.0, %v740
  %v742 = vpop.f32.mrb[0].mxu0
  %v743 = vadd.f32 0.0, %v742
  %v744 = vpop.f32.mrb[0].mxu0
  %v745 = vadd.f32 0.0, %v744
  %746 = vmatprep.mubr.bf16.mxu0 0
  %747 = vmatmul.mubr.bf16.gmra.mrb[0].mxu0 %v170
  %v748 = vpop.f32.mrb[0].mxu0
  %v749 = vadd.f32 0.0, %v748
  %v750 = vpop.f32.mrb[0].mxu0
  %v751 = vadd.f32 0.0, %v750
  %v752 = vpop.f32.mrb[0].mxu0
  %v753 = vadd.f32 0.0, %v752
  %v754 = vpop.f32.mrb[0].mxu0
  %v755 = vadd.f32 0.0, %v754
  %756 = vmatprep.mubr.bf16.mxu0 0
  %757 = vmatmul.mubr.bf16.gmra.mrb[0].mxu0 %v171
  %v758 = vpop.f32.mrb[0].mxu0
  %v759 = vadd.f32 0.0, %v758
  %v760 = vpop.f32.mrb[0].mxu0
  %v761 = vadd.f32 0.0, %v760
  %v762 = vpop.f32.mrb[0].mxu0
  %v763 = vadd.f32 0.0, %v762
  %v764 = vpop.f32.mrb[0].mxu0
  %v765 = vadd.f32 0.0, %v764
  %766 = vmatprep.mubr.bf16.mxu0 0
  %767 = vmatmul.mubr.bf16.gmra.mrb[0].mxu0 %v172
  %v768 = vpop.f32.mrb[0].mxu0
  %v769 = vadd.f32 0.0, %v768
  %v770 = vpop.f32.mrb[0].mxu0
  %v771 = vadd.f32 0.0, %v770
  %v772 = vpop.f32.mrb[0].mxu0
  %v773 = vadd.f32 0.0, %v772
  %v774 = vpop.f32.mrb[0].mxu0
  %v775 = vadd.f32 0.0, %v774
  %776 = vdwg.mxu0
  %v777 = vmax.f32 %v386, %v388
  %v778 = vmax.f32 %v390, %v392
  %v779 = vmax.f32 %v396, %v398
  %v780 = vmax.f32 %v400, %v402
  %v781 = vmax.f32 %v406, %v408
  %v782 = vmax.f32 %v410, %v412
  %v783 = vmax.f32 %v416, %v418
  %v784 = vmax.f32 %v420, %v422
  %v785 = vmax.f32 %v426, %v428
  %v786 = vmax.f32 %v430, %v432
  %v787 = vmax.f32 %v436, %v438
  %v788 = vmax.f32 %v440, %v442
  %v789 = vmax.f32 %v446, %v448
  %v790 = vmax.f32 %v450, %v452
  %v791 = vmax.f32 %v456, %v458
  %v792 = vmax.f32 %v460, %v462
  %v793 = vmax.f32 %v466, %v468
  %v794 = vmax.f32 %v470, %v472
  %v795 = vmax.f32 %v476, %v478
  %v796 = vmax.f32 %v480, %v482
  %v797 = vmax.f32 %v486, %v488
  %v798 = vmax.f32 %v490, %v492
  %v799 = vmax.f32 %v496, %v498
  %v800 = vmax.f32 %v500, %v502
  %v801 = vmax.f32 %v506, %v508
  %v802 = vmax.f32 %v510, %v512
  %v803 = vmax.f32 %v516, %v518
  %v804 = vmax.f32 %v520, %v522
  %v805 = vmax.f32 %v526, %v528
  %v806 = vmax.f32 %v530, %v532
  %v807 = vmax.f32 %v536, %v538
  %v808 = vmax.f32 %v540, %v542
  %v809 = vmax.f32 %v546, %v548
  %v810 = vmax.f32 %v550, %v552
  %v811 = vmax.f32 %v556, %v558
  %v812 = vmax.f32 %v560, %v562
  %v813 = vmax.f32 %v599, %v601
  %v814 = vmax.f32 %v603, %v605
  %v815 = vmax.f32 %v609, %v611
  %v816 = vmax.f32 %v613, %v615
  %v817 = vmax.f32 %v619, %v621
  %v818 = vmax.f32 %v623, %v625
  %v819 = vmax.f32 %v629, %v631
  %v820 = vmax.f32 %v633, %v635
  %v821 = vmax.f32 %v639, %v641
  %v822 = vmax.f32 %v643, %v645
  %v823 = vmax.f32 %v649, %v651
  %v824 = vmax.f32 %v653, %v655
  %v825 = vmax.f32 %v659, %v661
  %v826 = vmax.f32 %v663, %v665
  %v827 = vmax.f32 %v669, %v671
  %v828 = vmax.f32 %v673, %v675
  %v829 = vmax.f32 %v679, %v681
  %v830 = vmax.f32 %v683, %v685
  %v831 = vmax.f32 %v689, %v691
  %v832 = vmax.f32 %v693, %v695
  %v833 = vmax.f32 %v699, %v701
  %v834 = vmax.f32 %v703, %v705
  %v835 = vmax.f32 %v709, %v711
  %v836 = vmax.f32 %v713, %v715
  %v837 = vmax.f32 %v719, %v721
  %v838 = vmax.f32 %v723, %v725
  %v839 = vmax.f32 %v729, %v731
  %v840 = vmax.f32 %v733, %v735
  %v841 = vmax.f32 %v739, %v741
  %v842 = vmax.f32 %v743, %v745
  %v843 = vmax.f32 %v749, %v751
  %v844 = vmax.f32 %v753, %v755
  %v845 = vmax.f32 %v759, %v761
  %v846 = vmax.f32 %v763, %v765
  %v847 = vmax.f32 %v769, %v771
  %v848 = vmax.f32 %v773, %v775
  %v849 = vmax.f32 %v777, %v813
  %v850 = vmax.f32 %v778, %v814
  %v851 = vmax.f32 %v779, %v815
  %v852 = vmax.f32 %v780, %v816
  %v853 = vmax.f32 %v781, %v817
  %v854 = vmax.f32 %v782, %v818
  %v855 = vmax.f32 %v783, %v819
  %v856 = vmax.f32 %v784, %v820
  %v857 = vmax.f32 %v785, %v821
  %v858 = vmax.f32 %v786, %v822
  %v859 = vmax.f32 %v787, %v823
  %v860 = vmax.f32 %v788, %v824
  %v861 = vmax.f32 %v789, %v825
  %v862 = vmax.f32 %v790, %v826
  %v863 = vmax.f32 %v791, %v827
  %v864 = vmax.f32 %v792, %v828
  %v865 = vmax.f32 %v793, %v829
  %v866 = vmax.f32 %v794, %v830
  %v867 = vmax.f32 %v795, %v831
  %v868 = vmax.f32 %v796, %v832
  %v869 = vmax.f32 %v797, %v833
  %v870 = vmax.f32 %v798, %v834
  %v871 = vmax.f32 %v799, %v835
  %v872 = vmax.f32 %v800, %v836
  %v873 = vmax.f32 %v801, %v837
  %v874 = vmax.f32 %v802, %v838
  %v875 = vmax.f32 %v803, %v839
  %v876 = vmax.f32 %v804, %v840
  %v877 = vmax.f32 %v805, %v841
  %v878 = vmax.f32 %v806, %v842
  %v879 = vmax.f32 %v807, %v843
  %v880 = vmax.f32 %v808, %v844
  %v881 = vmax.f32 %v809, %v845
  %v882 = vmax.f32 %v810, %v846
  %v883 = vmax.f32 %v811, %v847
  %v884 = vmax.f32 %v812, %v848
  %v885 = vld [vmem:[%s2] sm:$0x1]
  %v887 = vlaneseq
  %v888 = vshrl.u32 %v887, 7
  %v889 = vsub.s32 0, %v888
  %v890 = vrot.slane %v885, %v889
  %v892 = vadd.f32 %v849, %v890
  %v893 = vadd.f32 %v850, %v890
  %v894 = vadd.f32 %v851, %v890
  %v895 = vadd.f32 %v852, %v890
  %v896 = vadd.f32 %v853, %v890
  %v897 = vadd.f32 %v854, %v890
  %v898 = vadd.f32 %v855, %v890
  %v899 = vadd.f32 %v856, %v890
  %v900 = vadd.f32 %v857, %v890
  %v901 = vadd.f32 %v858, %v890
  %v902 = vadd.f32 %v859, %v890
  %v903 = vadd.f32 %v860, %v890
  %v904 = vadd.f32 %v861, %v890
  %v905 = vadd.f32 %v862, %v890
  %v906 = vadd.f32 %v863, %v890
  %v907 = vadd.f32 %v864, %v890
  %v908 = vadd.f32 %v865, %v890
  %v909 = vadd.f32 %v866, %v890
  %v910 = vadd.f32 %v867, %v890
  %v911 = vadd.f32 %v868, %v890
  %v912 = vadd.f32 %v869, %v890
  %v913 = vadd.f32 %v870, %v890
  %v914 = vadd.f32 %v871, %v890
  %v915 = vadd.f32 %v872, %v890
  %v916 = vadd.f32 %v873, %v890
  %v917 = vadd.f32 %v874, %v890
  %v918 = vadd.f32 %v875, %v890
  %v919 = vadd.f32 %v876, %v890
  %v920 = vadd.f32 %v877, %v890
  %v921 = vadd.f32 %v878, %v890
  %v922 = vadd.f32 %v879, %v890
  %v923 = vadd.f32 %v880, %v890
  %v924 = vadd.f32 %v881, %v890
  %v925 = vadd.f32 %v882, %v890
  %v926 = vadd.f32 %v883, %v890
  %v927 = vadd.f32 %v884, %v890
  %v928 = vmax.f32 %v892, 0.0
  %v929 = vmax.f32 %v893, 0.0
  %v930 = vmax.f32 %v894, 0.0
  %v931 = vmax.f32 %v895, 0.0
  %v932 = vmax.f32 %v896, 0.0
  %v933 = vmax.f32 %v897, 0.0
  %v934 = vmax.f32 %v898, 0.0
  %v935 = vmax.f32 %v899, 0.0
  %v936 = vmax.f32 %v900, 0.0
  %v937 = vmax.f32 %v901, 0.0
  %v938 = vmax.f32 %v902, 0.0
  %v939 = vmax.f32 %v903, 0.0
  %v940 = vmax.f32 %v904, 0.0
  %v941 = vmax.f32 %v905, 0.0
  %v942 = vmax.f32 %v906, 0.0
  %v943 = vmax.f32 %v907, 0.0
  %v944 = vmax.f32 %v908, 0.0
  %v945 = vmax.f32 %v909, 0.0
  %v946 = vmax.f32 %v910, 0.0
  %v947 = vmax.f32 %v911, 0.0
  %v948 = vmax.f32 %v912, 0.0
  %v949 = vmax.f32 %v913, 0.0
  %v950 = vmax.f32 %v914, 0.0
  %v951 = vmax.f32 %v915, 0.0
  %v952 = vmax.f32 %v916, 0.0
  %v953 = vmax.f32 %v917, 0.0
  %v954 = vmax.f32 %v918, 0.0
  %v955 = vmax.f32 %v919, 0.0
  %v956 = vmax.f32 %v920, 0.0
  %v957 = vmax.f32 %v921, 0.0
  %v958 = vmax.f32 %v922, 0.0
  %v959 = vmax.f32 %v923, 0.0
  %v960 = vmax.f32 %v924, 0.0
  %v961 = vmax.f32 %v925, 0.0
  %v962 = vmax.f32 %v926, 0.0
  %v963 = vmax.f32 %v927, 0.0
  %v964 = vpack.c.bf16 %v929, %v928
  %v965 = vpack.c.bf16 %v931, %v930
  %v966 = vpack.c.bf16 %v933, %v932
  %v967 = vpack.c.bf16 %v935, %v934
  %v968 = vpack.c.bf16 %v937, %v936
  %v969 = vpack.c.bf16 %v939, %v938
  %v970 = vpack.c.bf16 %v941, %v940
  %v971 = vpack.c.bf16 %v943, %v942
  %v972 = vpack.c.bf16 %v945, %v944
  %v973 = vpack.c.bf16 %v947, %v946
  %v974 = vpack.c.bf16 %v949, %v948
  %v975 = vpack.c.bf16 %v951, %v950
  %v976 = vpack.c.bf16 %v953, %v952
  %v977 = vpack.c.bf16 %v955, %v954
  %v978 = vpack.c.bf16 %v957, %v956
  %v979 = vpack.c.bf16 %v959, %v958
  %v980 = vpack.c.bf16 %v961, %v960
  %v981 = vpack.c.bf16 %v963, %v962
  %v1000 = vunpack.c.l.b16 %v964
  %v1001 = vunpack.c.h.b16 %v964
  %v1002 = vunpack.c.l.b16 %v965
  %v1003 = vunpack.c.h.b16 %v965
  %v1004 = vunpack.c.l.b16 %v966
  %v1005 = vunpack.c.h.b16 %v966
  %v1006 = vunpack.c.l.b16 %v967
  %v1007 = vunpack.c.h.b16 %v967
  %v1008 = vunpack.c.l.b16 %v968
  %v1009 = vunpack.c.h.b16 %v968
  %v1010 = vunpack.c.l.b16 %v969
  %v1011 = vunpack.c.h.b16 %v969
  %v1012 = vunpack.c.l.b16 %v970
  %v1013 = vunpack.c.h.b16 %v970
  %v1014 = vunpack.c.l.b16 %v971
  %v1015 = vunpack.c.h.b16 %v971
  %v1016 = vunpack.c.l.b16 %v972
  %v1017 = vunpack.c.h.b16 %v972
  %v1018 = vunpack.c.l.b16 %v973
  %v1019 = vunpack.c.h.b16 %v973
  %v1020 = vunpack.c.l.b16 %v974
  %v1021 = vunpack.c.h.b16 %v974
  %v1022 = vunpack.c.l.b16 %v975
  %v1023 = vunpack.c.h.b16 %v975
  %v1024 = vunpack.c.l.b16 %v976
  %v1025 = vunpack.c.h.b16 %v976
  %v1026 = vunpack.c.l.b16 %v977
  %v1027 = vunpack.c.h.b16 %v977
  %v1028 = vunpack.c.l.b16 %v978
  %v1029 = vunpack.c.h.b16 %v978
  %v1030 = vunpack.c.l.b16 %v979
  %v1031 = vunpack.c.h.b16 %v979
  %v1032 = vunpack.c.l.b16 %v980
  %v1033 = vunpack.c.h.b16 %v980
  %v1034 = vunpack.c.l.b16 %v981
  %v1035 = vunpack.c.h.b16 %v981
  %v1036 = vpack.c.b16 %v1000, %v1000
  %v1037 = vpack.c.b16 %v1001, %v1001
  %v1038 = vpack.c.b16 %v1002, %v1002
  %v1039 = vpack.c.b16 %v1003, %v1003
  %v1040 = vpack.c.b16 %v1004, %v1004
  %v1041 = vpack.c.b16 %v1005, %v1005
  %v1042 = vpack.c.b16 %v1006, %v1006
  %v1043 = vpack.c.b16 %v1007, %v1007
  %v1044 = vpack.c.b16 %v1008, %v1008
  %v1045 = vpack.c.b16 %v1009, %v1009
  %v1046 = vpack.c.b16 %v1010, %v1010
  %v1047 = vpack.c.b16 %v1011, %v1011
  %v1048 = vpack.c.b16 %v1012, %v1012
  %v1049 = vpack.c.b16 %v1013, %v1013
  %v1050 = vpack.c.b16 %v1014, %v1014
  %v1051 = vpack.c.b16 %v1015, %v1015
  %v1052 = vpack.c.b16 %v1016, %v1016
  %v1053 = vpack.c.b16 %v1017, %v1017
  %v1054 = vpack.c.b16 %v1018, %v1018
  %v1055 = vpack.c.b16 %v1019, %v1019
  %v1056 = vpack.c.b16 %v1020, %v1020
  %v1057 = vpack.c.b16 %v1021, %v1021
  %v1058 = vpack.c.b16 %v1022, %v1022
  %v1059 = vpack.c.b16 %v1023, %v1023
  %v1060 = vpack.c.b16 %v1024, %v1024
  %v1061 = vpack.c.b16 %v1025, %v1025
  %v1062 = vpack.c.b16 %v1026, %v1026
  %v1063 = vpack.c.b16 %v1027, %v1027
  %v1064 = vpack.c.b16 %v1028, %v1028
  %v1065 = vpack.c.b16 %v1029, %v1029
  %v1066 = vpack.c.b16 %v1030, %v1030
  %v1067 = vpack.c.b16 %v1031, %v1031
  %v1068 = vpack.c.b16 %v1032, %v1032
  %v1069 = vpack.c.b16 %v1033, %v1033
  %v1070 = vpack.c.b16 %v1034, %v1034
  %v1071 = vpack.c.b16 %v1035, %v1035
  %1108 = vst [vmem:[%s3] sm:$0xf] %v1036
  %1109 = vst [vmem:[%s3 + $0x4] sm:$0xf] %v1037
  %1110 = vst [vmem:[%s3 + $0x8] sm:$0xf] %v1038
  %1111 = vst [vmem:[%s3 + $0xc] sm:$0xf] %v1039
  %1112 = vst [vmem:[%s3 + $0x10] sm:$0xf] %v1040
  %1113 = vst [vmem:[%s3 + $0x14] sm:$0xf] %v1041
  %1114 = vst [vmem:[%s3 + $0x18] sm:$0xf] %v1042
  %1115 = vst [vmem:[%s3 + $0x1c] sm:$0xf] %v1043
  %1116 = vst [vmem:[%s3 + $0x20] sm:$0xf] %v1044
  %1117 = vst [vmem:[%s3 + $0x24] sm:$0xf] %v1045
  %1118 = vst [vmem:[%s3 + $0x28] sm:$0xf] %v1046
  %1119 = vst [vmem:[%s3 + $0x2c] sm:$0xf] %v1047
  %1120 = vst [vmem:[%s3 + $0x30] sm:$0xf] %v1048
  %1121 = vst [vmem:[%s3 + $0x34] sm:$0xf] %v1049
  %1122 = vst [vmem:[%s3 + $0x38] sm:$0xf] %v1050
  %1123 = vst [vmem:[%s3 + $0x3c] sm:$0xf] %v1051
  %1124 = vst [vmem:[%s3 + $0x40] sm:$0xf] %v1052
  %1125 = vst [vmem:[%s3 + $0x44] sm:$0xf] %v1053
  %1126 = vst [vmem:[%s3 + $0x48] sm:$0xf] %v1054
  %1127 = vst [vmem:[%s3 + $0x4c] sm:$0xf] %v1055
  %1128 = vst [vmem:[%s3 + $0x50] sm:$0xf] %v1056
  %1129 = vst [vmem:[%s3 + $0x54] sm:$0xf] %v1057
  %1130 = vst [vmem:[%s3 + $0x58] sm:$0xf] %v1058
  %1131 = vst [vmem:[%s3 + $0x5c] sm:$0xf] %v1059
  %1132 = vst [vmem:[%s3 + $0x60] sm:$0xf] %v1060
  %1133 = vst [vmem:[%s3 + $0x64] sm:$0xf] %v1061
  %1134 = vst [vmem:[%s3 + $0x68] sm:$0xf] %v1062
  %1135 = vst [vmem:[%s3 + $0x6c] sm:$0xf] %v1063
  %1136 = vst [vmem:[%s3 + $0x70] sm:$0xf] %v1064
  %1137 = vst [vmem:[%s3 + $0x74] sm:$0xf] %v1065
  %1138 = vst [vmem:[%s3 + $0x78] sm:$0xf] %v1066
  %1139 = vst [vmem:[%s3 + $0x7c] sm:$0xf] %v1067
  %1140 = vst [vmem:[%s3 + $0x80] sm:$0xf] %v1068
  %1141 = vst [vmem:[%s3 + $0x84] sm:$0xf] %v1069
  %1142 = vst [vmem:[%s3 + $0x88] sm:$0xf] %v1070
  %1143 = vst [vmem:[%s3 + $0x8c] sm:$0xf] %v1071
  // Predicated region
  $region14: #{net_forward.3} parent=0 // pred_check
    _
  $region15: #{net_forward.3} parent=0 // pred_check_branch
    %1145 = sbr.rel (0) target = $region17
  $region16: #{net_forward.3} parent=0 // pred_region
    _
  $region17: #{net_forward.3} parent=0 // pred_fallthru
    _
  // Predicated region
  $region18: #{net_forward.3} parent=0 // pred_check
    _
  $region19: #{net_forward.3} parent=0 // pred_check_branch
    %1147 = sbr.rel (0) target = $region21
  $region20: #{net_forward.3} parent=0 // pred_region
    _
  $region21: #{net_forward.3} parent=0 // pred_fallthru
    _

// kernel: net_forward.4
$region0: #{net_forward.4}
  #allocation0 [shape = 'u32[]', space=smem, size = 0x4, offset = 0x4, fixed_abs, tag = 'smem constant byte address 0x4 - core index']
  #allocation1 [shape = 'u32[144,128]{1,0:T(1,128)}', space=vmem, size = 0x12000, scoped, tag = 'internal scratch']
  %s0 = inlined_call_operand.vmem [shape: bf16[32,384], index: 0, kind: input, shape index: {}]
  %s1 = inlined_call_operand.vmem [shape: bf16[384,512], index: 1, kind: input, shape index: {}]
  %s2 = inlined_call_operand.vmem [shape: f32[1,128], index: 2, kind: input, shape index: {}]
  %s3 = inlined_call_operand.vmem [shape: bf16[32,128], index: 3, kind: output, shape index: {}]
  %s4 = sld [smem:[#allocation0]]
  $region22: #{net_forward.4} parent=0
    _
  %s6 = ssub.s32 1, %s4
  %s7 = scalar_select 0, %s6, %s4
  // Predicated region
  $region2: #{net_forward.4} parent=0 // pred_check
    _
  $region3: #{net_forward.4} parent=0 // pred_check_branch
    %9 = sbr.rel (0) target = $region5
  $region4: #{net_forward.4} parent=0 // pred_region
    _
  $region5: #{net_forward.4} parent=0 // pred_fallthru
    _
  // Predicated region
  $region6: #{net_forward.4} parent=0 // pred_check
    _
  $region7: #{net_forward.4} parent=0 // pred_check_branch
    %11 = sbr.rel (0) target = $region9
  $region8: #{net_forward.4} parent=0 // pred_region
    _
  $region9: #{net_forward.4} parent=0 // pred_fallthru
    _
  // Predicated region
  $region10: #{net_forward.4} parent=0 // pred_check
    _
  $region11: #{net_forward.4} parent=0 // pred_check_branch
    %13 = sbr.rel (0) target = $region13
  $region12: #{net_forward.4} parent=0 // pred_region
    _
  $region13: #{net_forward.4} parent=0 // pred_fallthru
    _
  %v15 = vld [vmem:[%s0] sm:$0xff]
  %v16 = vld [vmem:[%s0 + $0x8] sm:$0xf]
  %v17 = vld [vmem:[%s0 + $0xc] sm:$0xff]
  %v18 = vld [vmem:[%s0 + $0x14] sm:$0xf]
  %v19 = vld [vmem:[%s0 + $0x18] sm:$0xff]
  %v20 = vld [vmem:[%s0 + $0x20] sm:$0xf]
  %v21 = vld [vmem:[%s0 + $0x24] sm:$0xff]
  %v22 = vld [vmem:[%s0 + $0x2c] sm:$0xf]
  %v23 = vld [vmem:[%s1] sm:$0xff]
  %v24 = vld [vmem:[%s1 + $0x8] sm:$0xff]
  %v25 = vld [vmem:[%s1 + $0x10] sm:$0xff]
  %v26 = vld [vmem:[%s1 + $0x18] sm:$0xff]
  %v27 = vld [vmem:[%s1 + $0x20] sm:$0xff]
  %v28 = vld [vmem:[%s1 + $0x28] sm:$0xff]
  %v29 = vld [vmem:[%s1 + $0x30] sm:$0xff]
  %v30 = vld [vmem:[%s1 + $0x38] sm:$0xff]
  %v31 = vld [vmem:[%s1 + $0x40] sm:$0xff]
  %v32 = vld [vmem:[%s1 + $0x48] sm:$0xff]
  %v33 = vld [vmem:[%s1 + $0x50] sm:$0xff]
  %v34 = vld [vmem:[%s1 + $0x58] sm:$0xff]
  %v35 = vld [vmem:[%s1 + $0x60] sm:$0xff]
  %v36 = vld [vmem:[%s1 + $0x68] sm:$0xff]
  %v37 = vld [vmem:[%s1 + $0x70] sm:$0xff]
  %v38 = vld [vmem:[%s1 + $0x78] sm:$0xff]
  %v39 = vld [vmem:[%s1 + $0x80] sm:$0xff]
  %v40 = vld [vmem:[%s1 + $0x88] sm:$0xff]
  %v41 = vld [vmem:[%s1 + $0x90] sm:$0xff]
  %v42 = vld [vmem:[%s1 + $0x98] sm:$0xff]
  %v43 = vld [vmem:[%s1 + $0xa0] sm:$0xff]
  %v44 = vld [vmem:[%s1 + $0xa8] sm:$0xff]
  %v45 = vld [vmem:[%s1 + $0xb0] sm:$0xff]
  %v46 = vld [vmem:[%s1 + $0xb8] sm:$0xff]
  %v47 = vld [vmem:[%s1 + $0xc0] sm:$0xff]
  %v48 = vld [vmem:[%s1 + $0xc8] sm:$0xff]
  %v49 = vld [vmem:[%s1 + $0xd0] sm:$0xff]
  %v50 = vld [vmem:[%s1 + $0xd8] sm:$0xff]
  %v51 = vld [vmem:[%s1 + $0xe0] sm:$0xff]
  %v52 = vld [vmem:[%s1 + $0xe8] sm:$0xff]
  %v53 = vld [vmem:[%s1 + $0xf0] sm:$0xff]
  %v54 = vld [vmem:[%s1 + $0xf8] sm:$0xff]
  %v55 = vld [vmem:[%s1 + $0x100] sm:$0xff]
  %v56 = vld [vmem:[%s1 + $0x108] sm:$0xff]
  %v57 = vld [vmem:[%s1 + $0x110] sm:$0xff]
  %v58 = vld [vmem:[%s1 + $0x118] sm:$0xff]
  %v59 = vld [vmem:[%s1 + $0x120] sm:$0xff]
  %v60 = vld [vmem:[%s1 + $0x128] sm:$0xff]
  %v61 = vld [vmem:[%s1 + $0x130] sm:$0xff]
  %v62 = vld [vmem:[%s1 + $0x138] sm:$0xff]
  %v63 = vld [vmem:[%s1 + $0x140] sm:$0xff]
  %v64 = vld [vmem:[%s1 + $0x148] sm:$0xff]
  %v65 = vld [vmem:[%s1 + $0x150] sm:$0xff]
  %v66 = vld [vmem:[%s1 + $0x158] sm:$0xff]
  %v67 = vld [vmem:[%s1 + $0x160] sm:$0xff]
  %v68 = vld [vmem:[%s1 + $0x168] sm:$0xff]
  %v69 = vld [vmem:[%s1 + $0x170] sm:$0xff]
  %v70 = vld [vmem:[%s1 + $0x178] sm:$0xff]
  %v71 = vld [vmem:[%s1 + $0x180] sm:$0xff]
  %v72 = vld [vmem:[%s1 + $0x188] sm:$0xff]
  %v73 = vld [vmem:[%s1 + $0x190] sm:$0xff]
  %v74 = vld [vmem:[%s1 + $0x198] sm:$0xff]
  %v75 = vld [vmem:[%s1 + $0x1a0] sm:$0xff]
  %v76 = vld [vmem:[%s1 + $0x1a8] sm:$0xff]
  %v77 = vld [vmem:[%s1 + $0x1b0] sm:$0xff]
  %v78 = vld [vmem:[%s1 + $0x1b8] sm:$0xff]
  %v79 = vld [vmem:[%s1 + $0x1c0] sm:$0xff]
  %v80 = vld [vmem:[%s1 + $0x1c8] sm:$0xff]
  %v81 = vld [vmem:[%s1 + $0x1d0] sm:$0xff]
  %v82 = vld [vmem:[%s1 + $0x1d8] sm:$0xff]
  %v83 = vld [vmem:[%s1 + $0x1e0] sm:$0xff]
  %v84 = vld [vmem:[%s1 + $0x1e8] sm:$0xff]
  %v85 = vld [vmem:[%s1 + $0x1f0] sm:$0xff]
  %v86 = vld [vmem:[%s1 + $0x1f8] sm:$0xff]
  %v87 = vld [vmem:[%s1 + $0x200] sm:$0xff]
  %v88 = vld [vmem:[%s1 + $0x208] sm:$0xff]
  %v89 = vld [vmem:[%s1 + $0x210] sm:$0xff]
  %v90 = vld [vmem:[%s1 + $0x218] sm:$0xff]
  %v91 = vld [vmem:[%s1 + $0x220] sm:$0xff]
  %v92 = vld [vmem:[%s1 + $0x228] sm:$0xff]
  %v93 = vld [vmem:[%s1 + $0x230] sm:$0xff]
  %v94 = vld [vmem:[%s1 + $0x238] sm:$0xff]
  %v95 = vld [vmem:[%s1 + $0x240] sm:$0xff]
  %v96 = vld [vmem:[%s1 + $0x248] sm:$0xff]
  %v97 = vld [vmem:[%s1 + $0x250] sm:$0xff]
  %v98 = vld [vmem:[%s1 + $0x258] sm:$0xff]
  %v99 = vld [vmem:[%s1 + $0x260] sm:$0xff]
  %v100 = vld [vmem:[%s1 + $0x268] sm:$0xff]
  %v101 = vld [vmem:[%s1 + $0x270] sm:$0xff]
  %v102 = vld [vmem:[%s1 + $0x278] sm:$0xff]
  %v103 = vld [vmem:[%s1 + $0x280] sm:$0xff]
  %v104 = vld [vmem:[%s1 + $0x288] sm:$0xff]
  %v105 = vld [vmem:[%s1 + $0x290] sm:$0xff]
  %v106 = vld [vmem:[%s1 + $0x298] sm:$0xff]
  %v107 = vld [vmem:[%s1 + $0x2a0] sm:$0xff]
  %v108 = vld [vmem:[%s1 + $0x2a8] sm:$0xff]
  %v109 = vld [vmem:[%s1 + $0x2b0] sm:$0xff]
  %v110 = vld [vmem:[%s1 + $0x2b8] sm:$0xff]
  %v111 = vld [vmem:[%s1 + $0x2c0] sm:$0xff]
  %v112 = vld [vmem:[%s1 + $0x2c8] sm:$0xff]
  %v113 = vld [vmem:[%s1 + $0x2d0] sm:$0xff]
  %v114 = vld [vmem:[%s1 + $0x2d8] sm:$0xff]
  %v115 = vld [vmem:[%s1 + $0x2e0] sm:$0xff]
  %v116 = vld [vmem:[%s1 + $0x2e8] sm:$0xff]
  %v117 = vld [vmem:[%s1 + $0x2f0] sm:$0xff]
  %v118 = vld [vmem:[%s1 + $0x2f8] sm:$0xff]
  %v127 = vunpack.c.l.b16 %v15
  %v128 = vunpack.c.h.b16 %v15
  %v129 = vunpack.c.l.b16 %v16
  %v130 = vunpack.c.l.b16 %v17
  %v131 = vunpack.c.h.b16 %v17
  %v132 = vunpack.c.l.b16 %v18
  %v133 = vunpack.c.l.b16 %v19
  %v134 = vunpack.c.h.b16 %v19
  %v135 = vunpack.c.l.b16 %v20
  %v136 = vunpack.c.l.b16 %v21
  %v137 = vunpack.c.h.b16 %v21
  %v138 = vunpack.c.l.b16 %v22
  %v139 = vpack.c.b16 %v130, %v127
  %v140 = vpack.c.b16 %v131, %v128
  %v141 = vpack.c.b16 %v132, %v129
  %v142 = vpack.c.b16 %v136, %v133
  %v143 = vpack.c.b16 %v137, %v134
  %v144 = vpack.c.b16 %v138, %v135
  %v247 = vunpack.c.l.b16 %v23
  %v248 = vunpack.c.h.b16 %v23
  %v249 = vunpack.c.l.b16 %v24
  %v250 = vunpack.c.h.b16 %v24
  %v251 = vunpack.c.l.b16 %v25
  %v252 = vunpack.c.h.b16 %v25
  %v253 = vunpack.c.l.b16 %v26
  %v254 = vunpack.c.h.b16 %v26
  %v255 = vunpack.c.l.b16 %v27
  %v256 = vunpack.c.h.b16 %v27
  %v257 = vunpack.c.l.b16 %v28
  %v258 = vunpack.c.h.b16 %v28
  %v259 = vunpack.c.l.b16 %v29
  %v260 = vunpack.c.h.b16 %v29
  %v261 = vunpack.c.l.b16 %v30
  %v262 = vunpack.c.h.b16 %v30
  %v263 = vunpack.c.l.b16 %v31
  %v264 = vunpack.c.h.b16 %v31
  %v265 = vunpack.c.l.b16 %v32
  %v266 = vunpack.c.h.b16 %v32
  %v267 = vunpack.c.l.b16 %v33
  %v268 = vunpack.c.h.b16 %v33
  %v269 = vunpack.c.l.b16 %v34
  %v270 = vunpack.c.h.b16 %v34
  %v271 = vunpack.c.l.b16 %v35
  %v272 = vunpack.c.h.b16 %v35
  %v273 = vunpack.c.l.b16 %v36
  %v274 = vunpack.c.h.b16 %v36
  %v275 = vunpack.c.l.b16 %v37
  %v276 = vunpack.c.h.b16 %v37
  %v277 = vunpack.c.l.b16 %v38
  %v278 = vunpack.c.h.b16 %v38
  %v279 = vunpack.c.l.b16 %v39
  %v280 = vunpack.c.h.b16 %v39
  %v281 = vunpack.c.l.b16 %v40
  %v282 = vunpack.c.h.b16 %v40
  %v283 = vunpack.c.l.b16 %v41
  %v284 = vunpack.c.h.b16 %v41
  %v285 = vunpack.c.l.b16 %v42
  %v286 = vunpack.c.h.b16 %v42
  %v287 = vunpack.c.l.b16 %v43
  %v288 = vunpack.c.h.b16 %v43
  %v289 = vunpack.c.l.b16 %v44
  %v290 = vunpack.c.h.b16 %v44
  %v291 = vunpack.c.l.b16 %v45
  %v292 = vunpack.c.h.b16 %v45
  %v293 = vunpack.c.l.b16 %v46
  %v294 = vunpack.c.h.b16 %v46
  %v295 = vunpack.c.l.b16 %v47
  %v296 = vunpack.c.h.b16 %v47
  %v297 = vunpack.c.l.b16 %v48
  %v298 = vunpack.c.h.b16 %v48
  %v299 = vunpack.c.l.b16 %v49
  %v300 = vunpack.c.h.b16 %v49
  %v301 = vunpack.c.l.b16 %v50
  %v302 = vunpack.c.h.b16 %v50
  %v303 = vunpack.c.l.b16 %v51
  %v304 = vunpack.c.h.b16 %v51
  %v305 = vunpack.c.l.b16 %v52
  %v306 = vunpack.c.h.b16 %v52
  %v307 = vunpack.c.l.b16 %v53
  %v308 = vunpack.c.h.b16 %v53
  %v309 = vunpack.c.l.b16 %v54
  %v310 = vunpack.c.h.b16 %v54
  %v311 = vunpack.c.l.b16 %v55
  %v312 = vunpack.c.h.b16 %v55
  %v313 = vunpack.c.l.b16 %v56
  %v314 = vunpack.c.h.b16 %v56
  %v315 = vunpack.c.l.b16 %v57
  %v316 = vunpack.c.h.b16 %v57
  %v317 = vunpack.c.l.b16 %v58
  %v318 = vunpack.c.h.b16 %v58
  %v319 = vunpack.c.l.b16 %v59
  %v320 = vunpack.c.h.b16 %v59
  %v321 = vunpack.c.l.b16 %v60
  %v322 = vunpack.c.h.b16 %v60
  %v323 = vunpack.c.l.b16 %v61
  %v324 = vunpack.c.h.b16 %v61
  %v325 = vunpack.c.l.b16 %v62
  %v326 = vunpack.c.h.b16 %v62
  %v327 = vunpack.c.l.b16 %v63
  %v328 = vunpack.c.h.b16 %v63
  %v329 = vunpack.c.l.b16 %v64
  %v330 = vunpack.c.h.b16 %v64
  %v331 = vunpack.c.l.b16 %v65
  %v332 = vunpack.c.h.b16 %v65
  %v333 = vunpack.c.l.b16 %v66
  %v334 = vunpack.c.h.b16 %v66
  %v335 = vunpack.c.l.b16 %v67
  %v336 = vunpack.c.h.b16 %v67
  %v337 = vunpack.c.l.b16 %v68
  %v338 = vunpack.c.h.b16 %v68
  %v339 = vunpack.c.l.b16 %v69
  %v340 = vunpack.c.h.b16 %v69
  %v341 = vunpack.c.l.b16 %v70
  %v342 = vunpack.c.h.b16 %v70
  %v343 = vunpack.c.l.b16 %v71
  %v344 = vunpack.c.h.b16 %v71
  %v345 = vunpack.c.l.b16 %v72
  %v346 = vunpack.c.h.b16 %v72
  %v347 = vunpack.c.l.b16 %v73
  %v348 = vunpack.c.h.b16 %v73
  %v349 = vunpack.c.l.b16 %v74
  %v350 = vunpack.c.h.b16 %v74
  %v351 = vunpack.c.l.b16 %v75
  %v352 = vunpack.c.h.b16 %v75
  %v353 = vunpack.c.l.b16 %v76
  %v354 = vunpack.c.h.b16 %v76
  %v355 = vunpack.c.l.b16 %v77
  %v356 = vunpack.c.h.b16 %v77
  %v357 = vunpack.c.l.b16 %v78
  %v358 = vunpack.c.h.b16 %v78
  %v359 = vunpack.c.l.b16 %v79
  %v360 = vunpack.c.h.b16 %v79
  %v361 = vunpack.c.l.b16 %v80
  %v362 = vunpack.c.h.b16 %v80
  %v363 = vunpack.c.l.b16 %v81
  %v364 = vunpack.c.h.b16 %v81
  %v365 = vunpack.c.l.b16 %v82
  %v366 = vunpack.c.h.b16 %v82
  %v367 = vunpack.c.l.b16 %v83
  %v368 = vunpack.c.h.b16 %v83
  %v369 = vunpack.c.l.b16 %v84
  %v370 = vunpack.c.h.b16 %v84
  %v371 = vunpack.c.l.b16 %v85
  %v372 = vunpack.c.h.b16 %v85
  %v373 = vunpack.c.l.b16 %v86
  %v374 = vunpack.c.h.b16 %v86
  %v375 = vunpack.c.l.b16 %v87
  %v376 = vunpack.c.h.b16 %v87
  %v377 = vunpack.c.l.b16 %v88
  %v378 = vunpack.c.h.b16 %v88
  %v379 = vunpack.c.l.b16 %v89
  %v380 = vunpack.c.h.b16 %v89
  %v381 = vunpack.c.l.b16 %v90
  %v382 = vunpack.c.h.b16 %v90
  %v383 = vunpack.c.l.b16 %v91
  %v384 = vunpack.c.h.b16 %v91
  %v385 = vunpack.c.l.b16 %v92
  %v386 = vunpack.c.h.b16 %v92
  %v387 = vunpack.c.l.b16 %v93
  %v388 = vunpack.c.h.b16 %v93
  %v389 = vunpack.c.l.b16 %v94
  %v390 = vunpack.c.h.b16 %v94
  %v391 = vunpack.c.l.b16 %v95
  %v392 = vunpack.c.h.b16 %v95
  %v393 = vunpack.c.l.b16 %v96
  %v394 = vunpack.c.h.b16 %v96
  %v395 = vunpack.c.l.b16 %v97
  %v396 = vunpack.c.h.b16 %v97
  %v397 = vunpack.c.l.b16 %v98
  %v398 = vunpack.c.h.b16 %v98
  %v399 = vunpack.c.l.b16 %v99
  %v400 = vunpack.c.h.b16 %v99
  %v401 = vunpack.c.l.b16 %v100
  %v402 = vunpack.c.h.b16 %v100
  %v403 = vunpack.c.l.b16 %v101
  %v404 = vunpack.c.h.b16 %v101
  %v405 = vunpack.c.l.b16 %v102
  %v406 = vunpack.c.h.b16 %v102
  %v407 = vunpack.c.l.b16 %v103
  %v408 = vunpack.c.h.b16 %v103
  %v409 = vunpack.c.l.b16 %v104
  %v410 = vunpack.c.h.b16 %v104
  %v411 = vunpack.c.l.b16 %v105
  %v412 = vunpack.c.h.b16 %v105
  %v413 = vunpack.c.l.b16 %v106
  %v414 = vunpack.c.h.b16 %v106
  %v415 = vunpack.c.l.b16 %v107
  %v416 = vunpack.c.h.b16 %v107
  %v417 = vunpack.c.l.b16 %v108
  %v418 = vunpack.c.h.b16 %v108
  %v419 = vunpack.c.l.b16 %v109
  %v420 = vunpack.c.h.b16 %v109
  %v421 = vunpack.c.l.b16 %v110
  %v422 = vunpack.c.h.b16 %v110
  %v423 = vunpack.c.l.b16 %v111
  %v424 = vunpack.c.h.b16 %v111
  %v425 = vunpack.c.l.b16 %v112
  %v426 = vunpack.c.h.b16 %v112
  %v427 = vunpack.c.l.b16 %v113
  %v428 = vunpack.c.h.b16 %v113
  %v429 = vunpack.c.l.b16 %v114
  %v430 = vunpack.c.h.b16 %v114
  %v431 = vunpack.c.l.b16 %v115
  %v432 = vunpack.c.h.b16 %v115
  %v433 = vunpack.c.l.b16 %v116
  %v434 = vunpack.c.h.b16 %v116
  %v435 = vunpack.c.l.b16 %v117
  %v436 = vunpack.c.h.b16 %v117
  %v437 = vunpack.c.l.b16 %v118
  %v438 = vunpack.c.h.b16 %v118
  %v439 = vpack.c.b16 %v251, %v247
  %v440 = vpack.c.b16 %v252, %v248
  %v441 = vpack.c.b16 %v253, %v249
  %v442 = vpack.c.b16 %v254, %v250
  %v443 = vpack.c.b16 %v259, %v255
  %v444 = vpack.c.b16 %v260, %v256
  %v445 = vpack.c.b16 %v261, %v257
  %v446 = vpack.c.b16 %v262, %v258
  %v447 = vpack.c.b16 %v267, %v263
  %v448 = vpack.c.b16 %v268, %v264
  %v449 = vpack.c.b16 %v269, %v265
  %v450 = vpack.c.b16 %v270, %v266
  %v451 = vpack.c.b16 %v275, %v271
  %v452 = vpack.c.b16 %v276, %v272
  %v453 = vpack.c.b16 %v277, %v273
  %v454 = vpack.c.b16 %v278, %v274
  %v455 = vpack.c.b16 %v283, %v279
  %v456 = vpack.c.b16 %v284, %v280
  %v457 = vpack.c.b16 %v285, %v281
  %v458 = vpack.c.b16 %v286, %v282
  %v459 = vpack.c.b16 %v291, %v287
  %v460 = vpack.c.b16 %v292, %v288
  %v461 = vpack.c.b16 %v293, %v289
  %v462 = vpack.c.b16 %v294, %v290
  %v463 = vpack.c.b16 %v299, %v295
  %v464 = vpack.c.b16 %v300, %v296
  %v465 = vpack.c.b16 %v301, %v297
  %v466 = vpack.c.b16 %v302, %v298
  %v467 = vpack.c.b16 %v307, %v303
  %v468 = vpack.c.b16 %v308, %v304
  %v469 = vpack.c.b16 %v309, %v305
  %v470 = vpack.c.b16 %v310, %v306
  %v471 = vpack.c.b16 %v315, %v311
  %v472 = vpack.c.b16 %v316, %v312
  %v473 = vpack.c.b16 %v317, %v313
  %v474 = vpack.c.b16 %v318, %v314
  %v475 = vpack.c.b16 %v323, %v319
  %v476 = vpack.c.b16 %v324, %v320
  %v477 = vpack.c.b16 %v325, %v321
  %v478 = vpack.c.b16 %v326, %v322
  %v479 = vpack.c.b16 %v331, %v327
  %v480 = vpack.c.b16 %v332, %v328
  %v481 = vpack.c.b16 %v333, %v329
  %v482 = vpack.c.b16 %v334, %v330
  %v483 = vpack.c.b16 %v339, %v335
  %v484 = vpack.c.b16 %v340, %v336
  %v485 = vpack.c.b16 %v341, %v337
  %v486 = vpack.c.b16 %v342, %v338
  %v487 = vpack.c.b16 %v347, %v343
  %v488 = vpack.c.b16 %v348, %v344
  %v489 = vpack.c.b16 %v349, %v345
  %v490 = vpack.c.b16 %v350, %v346
  %v491 = vpack.c.b16 %v355, %v351
  %v492 = vpack.c.b16 %v356, %v352
  %v493 = vpack.c.b16 %v357, %v353
  %v494 = vpack.c.b16 %v358, %v354
  %v495 = vpack.c.b16 %v363, %v359
  %v496 = vpack.c.b16 %v364, %v360
  %v497 = vpack.c.b16 %v365, %v361
  %v498 = vpack.c.b16 %v366, %v362
  %v499 = vpack.c.b16 %v371, %v367
  %v500 = vpack.c.b16 %v372, %v368
  %v501 = vpack.c.b16 %v373, %v369
  %v502 = vpack.c.b16 %v374, %v370
  %v503 = vpack.c.b16 %v379, %v375
  %v504 = vpack.c.b16 %v380, %v376
  %v505 = vpack.c.b16 %v381, %v377
  %v506 = vpack.c.b16 %v382, %v378
  %v507 = vpack.c.b16 %v387, %v383
  %v508 = vpack.c.b16 %v388, %v384
  %v509 = vpack.c.b16 %v389, %v385
  %v510 = vpack.c.b16 %v390, %v386
  %v511 = vpack.c.b16 %v395, %v391
  %v512 = vpack.c.b16 %v396, %v392
  %v513 = vpack.c.b16 %v397, %v393
  %v514 = vpack.c.b16 %v398, %v394
  %v515 = vpack.c.b16 %v403, %v399
  %v516 = vpack.c.b16 %v404, %v400
  %v517 = vpack.c.b16 %v405, %v401
  %v518 = vpack.c.b16 %v406, %v402
  %v519 = vpack.c.b16 %v411, %v407
  %v520 = vpack.c.b16 %v412, %v408
  %v521 = vpack.c.b16 %v413, %v409
  %v522 = vpack.c.b16 %v414, %v410
  %v523 = vpack.c.b16 %v419, %v415
  %v524 = vpack.c.b16 %v420, %v416
  %v525 = vpack.c.b16 %v421, %v417
  %v526 = vpack.c.b16 %v422, %v418
  %v527 = vpack.c.b16 %v427, %v423
  %v528 = vpack.c.b16 %v428, %v424
  %v529 = vpack.c.b16 %v429, %v425
  %v530 = vpack.c.b16 %v430, %v426
  %v531 = vpack.c.b16 %v435, %v431
  %v532 = vpack.c.b16 %v436, %v432
  %v533 = vpack.c.b16 %v437, %v433
  %v534 = vpack.c.b16 %v438, %v434
  %631 = vmatprep.subr.bf16.mxu0 %v440
  %632 = vmatpush1.bf16.msra.mxu0 %v439
  %633 = vmatprep.subr.bf16.mxu0 %v444
  %634 = vmatpush1.bf16.msra.mxu0 %v443
  %635 = vmatprep.subr.bf16.mxu0 %v448
  %636 = vmatpush1.bf16.msra.mxu0 %v447
  %637 = vmatprep.subr.bf16.mxu0 %v452
  %638 = vmatpush1.bf16.msra.mxu0 %v451
  %639 = vmatprep.subr.bf16.mxu0 %v456
  %640 = vmatpush1.bf16.msra.mxu0 %v455
  %641 = vmatprep.subr.bf16.mxu0 %v460
  %642 = vmatpush1.bf16.msra.mxu0 %v459
  %643 = vmatprep.subr.bf16.mxu0 %v464
  %644 = vmatpush1.bf16.msra.mxu0 %v463
  %645 = vmatprep.subr.bf16.mxu0 %v468
  %646 = vmatpush1.bf16.msra.mxu0 %v467
  %647 = vmatprep.subr.bf16.mxu0 %v472
  %648 = vmatpush1.bf16.msra.mxu0 %v471
  %649 = vmatprep.subr.bf16.mxu0 %v476
  %650 = vmatpush1.bf16.msra.mxu0 %v475
  %651 = vmatprep.subr.bf16.mxu0 %v480
  %652 = vmatpush1.bf16.msra.mxu0 %v479
  %653 = vmatprep.subr.bf16.mxu0 %v484
  %654 = vmatpush1.bf16.msra.mxu0 %v483
  %655 = vmatprep.subr.bf16.mxu0 %v488
  %656 = vmatpush1.bf16.msra.mxu0 %v487
  %657 = vmatprep.subr.bf16.mxu0 %v492
  %658 = vmatpush1.bf16.msra.mxu0 %v491
  %659 = vmatprep.subr.bf16.mxu0 %v496
  %660 = vmatpush1.bf16.msra.mxu0 %v495
  %661 = vmatprep.subr.bf16.mxu0 %v500
  %662 = vmatpush1.bf16.msra.mxu0 %v499
  %663 = vmatprep.mubr.bf16.mxu0 %v140
  %664 = vmatmul.mubr.bf16.gmra.mrb[0].mxu0 %v139
  %v665 = vpop.f32.mrb[0].mxu0
  %v666 = vadd.f32 0.0, %v665
  %v667 = vpop.f32.mrb[0].mxu0
  %v668 = vadd.f32 0.0, %v667
  %v669 = vpop.f32.mrb[0].mxu0
  %v670 = vadd.f32 0.0, %v669
  %v671 = vpop.f32.mrb[0].mxu0
  %v672 = vadd.f32 0.0, %v671
  %673 = vmatprep.mubr.bf16.mxu0 %v143
  %674 = vmatmul.mubr.bf16.gmra.mrb[0].mxu0 %v142
  %v675 = vpop.f32.mrb[0].mxu0
  %v676 = vadd.f32 0.0, %v675
  %v677 = vpop.f32.mrb[0].mxu0
  %v678 = vadd.f32 0.0, %v677
  %v679 = vpop.f32.mrb[0].mxu0
  %v680 = vadd.f32 0.0, %v679
  %v681 = vpop.f32.mrb[0].mxu0
  %v682 = vadd.f32 0.0, %v681
  %683 = vdwg.mxu0
  %684 = vmatprep.subr.bf16.mxu0 %v504
  %685 = vmatpush1.bf16.msra.mxu0 %v503
  %686 = vmatprep.subr.bf16.mxu0 %v508
  %687 = vmatpush1.bf16.msra.mxu0 %v507
  %688 = vmatprep.subr.bf16.mxu0 %v512
  %689 = vmatpush1.bf16.msra.mxu0 %v511
  %690 = vmatprep.subr.bf16.mxu0 %v516
  %691 = vmatpush1.bf16.msra.mxu0 %v515
  %692 = vmatprep.subr.bf16.mxu0 %v520
  %693 = vmatpush1.bf16.msra.mxu0 %v519
  %694 = vmatprep.subr.bf16.mxu0 %v524
  %695 = vmatpush1.bf16.msra.mxu0 %v523
  %696 = vmatprep.subr.bf16.mxu0 %v528
  %697 = vmatpush1.bf16.msra.mxu0 %v527
  %698 = vmatprep.subr.bf16.mxu0 %v532
  %699 = vmatpush1.bf16.msra.mxu0 %v531
  %700 = vmatprep.subr.bf16.mxu0 0
  %701 = vmatpush1.bf16.msra.mxu0 0
  %702 = vmatprep.subr.bf16.mxu0 0
  %703 = vmatpush1.bf16.msra.mxu0 0
  %704 = vmatprep.subr.bf16.mxu0 0
  %705 = vmatpush1.bf16.msra.mxu0 0
  %706 = vmatprep.subr.bf16.mxu0 0
  %707 = vmatpush1.bf16.msra.mxu0 0
  %708 = vmatprep.subr.bf16.mxu0 0
  %709 = vmatpush1.bf16.msra.mxu0 0
  %710 = vmatprep.subr.bf16.mxu0 0
  %711 = vmatpush1.bf16.msra.mxu0 0
  %712 = vmatprep.subr.bf16.mxu0 0
  %713 = vmatpush1.bf16.msra.mxu0 0
  %714 = vmatprep.subr.bf16.mxu0 0
  %715 = vmatpush1.bf16.msra.mxu0 0
  %716 = vmatprep.mubr.bf16.mxu0 0
  %717 = vmatmul.mubr.bf16.gmra.mrb[0].mxu0 %v141
  %v718 = vpop.f32.mrb[0].mxu0
  %v719 = vadd.f32 %v666, %v718
  %v720 = vpop.f32.mrb[0].mxu0
  %v721 = vadd.f32 %v668, %v720
  %v722 = vpop.f32.mrb[0].mxu0
  %v723 = vadd.f32 %v670, %v722
  %v724 = vpop.f32.mrb[0].mxu0
  %v725 = vadd.f32 %v672, %v724
  %726 = vmatprep.mubr.bf16.mxu0 0
  %727 = vmatmul.mubr.bf16.gmra.mrb[0].mxu0 %v144
  %v728 = vpop.f32.mrb[0].mxu0
  %v729 = vadd.f32 %v676, %v728
  %v730 = vpop.f32.mrb[0].mxu0
  %v731 = vadd.f32 %v678, %v730
  %v732 = vpop.f32.mrb[0].mxu0
  %v733 = vadd.f32 %v680, %v732
  %v734 = vpop.f32.mrb[0].mxu0
  %v735 = vadd.f32 %v682, %v734
  %736 = vdwg.mxu0
  %737 = vmatprep.subr.bf16.mxu0 %v442
  %738 = vmatpush1.bf16.msra.mxu0 %v441
  %739 = vmatprep.subr.bf16.mxu0 %v446
  %740 = vmatpush1.bf16.msra.mxu0 %v445
  %741 = vmatprep.subr.bf16.mxu0 %v450
  %742 = vmatpush1.bf16.msra.mxu0 %v449
  %743 = vmatprep.subr.bf16.mxu0 %v454
  %744 = vmatpush1.bf16.msra.mxu0 %v453
  %745 = vmatprep.subr.bf16.mxu0 %v458
  %746 = vmatpush1.bf16.msra.mxu0 %v457
  %747 = vmatprep.subr.bf16.mxu0 %v462
  %748 = vmatpush1.bf16.msra.mxu0 %v461
  %749 = vmatprep.subr.bf16.mxu0 %v466
  %750 = vmatpush1.bf16.msra.mxu0 %v465
  %751 = vmatprep.subr.bf16.mxu0 %v470
  %752 = vmatpush1.bf16.msra.mxu0 %v469
  %753 = vmatprep.subr.bf16.mxu0 %v474
  %754 = vmatpush1.bf16.msra.mxu0 %v473
  %755 = vmatprep.subr.bf16.mxu0 %v478
  %756 = vmatpush1.bf16.msra.mxu0 %v477
  %757 = vmatprep.subr.bf16.mxu0 %v482
  %758 = vmatpush1.bf16.msra.mxu0 %v481
  %759 = vmatprep.subr.bf16.mxu0 %v486
  %760 = vmatpush1.bf16.msra.mxu0 %v485
  %761 = vmatprep.subr.bf16.mxu0 %v490
  %762 = vmatpush1.bf16.msra.mxu0 %v489
  %763 = vmatprep.subr.bf16.mxu0 %v494
  %764 = vmatpush1.bf16.msra.mxu0 %v493
  %765 = vmatprep.subr.bf16.mxu0 %v498
  %766 = vmatpush1.bf16.msra.mxu0 %v497
  %767 = vmatprep.subr.bf16.mxu0 %v502
  %768 = vmatpush1.bf16.msra.mxu0 %v501
  %769 = vmatprep.mubr.bf16.mxu0 %v140
  %770 = vmatmul.mubr.bf16.gmra.mrb[0].mxu0 %v139
  %v771 = vpop.f32.mrb[0].mxu0
  %v772 = vadd.f32 0.0, %v771
  %v773 = vpop.f32.mrb[0].mxu0
  %v774 = vadd.f32 0.0, %v773
  %v775 = vpop.f32.mrb[0].mxu0
  %v776 = vadd.f32 0.0, %v775
  %v777 = vpop.f32.mrb[0].mxu0
  %v778 = vadd.f32 0.0, %v777
  %779 = vmatprep.mubr.bf16.mxu0 %v143
  %780 = vmatmul.mubr.bf16.gmra.mrb[0].mxu0 %v142
  %v781 = vpop.f32.mrb[0].mxu0
  %v782 = vadd.f32 0.0, %v781
  %v783 = vpop.f32.mrb[0].mxu0
  %v784 = vadd.f32 0.0, %v783
  %v785 = vpop.f32.mrb[0].mxu0
  %v786 = vadd.f32 0.0, %v785
  %v787 = vpop.f32.mrb[0].mxu0
  %v788 = vadd.f32 0.0, %v787
  %789 = vdwg.mxu0
  %790 = vmatprep.subr.bf16.mxu0 %v506
  %791 = vmatpush1.bf16.msra.mxu0 %v505
  %792 = vmatprep.subr.bf16.mxu0 %v510
  %793 = vmatpush1.bf16.msra.mxu0 %v509
  %794 = vmatprep.subr.bf16.mxu0 %v514
  %795 = vmatpush1.bf16.msra.mxu0 %v513
  %796 = vmatprep.subr.bf16.mxu0 %v518
  %797 = vmatpush1.bf16.msra.mxu0 %v517
  %798 = vmatprep.subr.bf16.mxu0 %v522
  %799 = vmatpush1.bf16.msra.mxu0 %v521
  %800 = vmatprep.subr.bf16.mxu0 %v526
  %801 = vmatpush1.bf16.msra.mxu0 %v525
  %802 = vmatprep.subr.bf16.mxu0 %v530
  %803 = vmatpush1.bf16.msra.mxu0 %v529
  %804 = vmatprep.subr.bf16.mxu0 %v534
  %805 = vmatpush1.bf16.msra.mxu0 %v533
  %806 = vmatprep.subr.bf16.mxu0 0
  %807 = vmatpush1.bf16.msra.mxu0 0
  %808 = vmatprep.subr.bf16.mxu0 0
  %809 = vmatpush1.bf16.msra.mxu0 0
  %810 = vmatprep.subr.bf16.mxu0 0
  %811 = vmatpush1.bf16.msra.mxu0 0
  %812 = vmatprep.subr.bf16.mxu0 0
  %813 = vmatpush1.bf16.msra.mxu0 0
  %814 = vmatprep.subr.bf16.mxu0 0
  %815 = vmatpush1.bf16.msra.mxu0 0
  %816 = vmatprep.subr.bf16.mxu0 0
  %817 = vmatpush1.bf16.msra.mxu0 0
  %818 = vmatprep.subr.bf16.mxu0 0
  %819 = vmatpush1.bf16.msra.mxu0 0
  %820 = vmatprep.subr.bf16.mxu0 0
  %821 = vmatpush1.bf16.msra.mxu0 0
  %822 = vmatprep.mubr.bf16.mxu0 0
  %823 = vmatmul.mubr.bf16.gmra.mrb[0].mxu0 %v141
  %v824 = vpop.f32.mrb[0].mxu0
  %v825 = vadd.f32 %v772, %v824
  %v826 = vpop.f32.mrb[0].mxu0
  %v827 = vadd.f32 %v774, %v826
  %v828 = vpop.f32.mrb[0].mxu0
  %v829 = vadd.f32 %v776, %v828
  %v830 = vpop.f32.mrb[0].mxu0
  %v831 = vadd.f32 %v778, %v830
  %832 = vmatprep.mubr.bf16.mxu0 0
  %833 = vmatmul.mubr.bf16.gmra.mrb[0].mxu0 %v144
  %v834 = vpop.f32.mrb[0].mxu0
  %v835 = vadd.f32 %v782, %v834
  %v836 = vpop.f32.mrb[0].mxu0
  %v837 = vadd.f32 %v784, %v836
  %v838 = vpop.f32.mrb[0].mxu0
  %v839 = vadd.f32 %v786, %v838
  %v840 = vpop.f32.mrb[0].mxu0
  %v841 = vadd.f32 %v788, %v840
  %842 = vdwg.mxu0
  %v843 = vmax.f32 %v719, %v721
  %v844 = vmax.f32 %v723, %v725
  %v845 = vmax.f32 %v729, %v731
  %v846 = vmax.f32 %v733, %v735
  %v847 = vmax.f32 %v825, %v827
  %v848 = vmax.f32 %v829, %v831
  %v849 = vmax.f32 %v835, %v837
  %v850 = vmax.f32 %v839, %v841
  %v851 = vmax.f32 %v843, %v847
  %v852 = vmax.f32 %v844, %v848
  %v853 = vmax.f32 %v845, %v849
  %v854 = vmax.f32 %v846, %v850
  %v855 = vld [vmem:[%s2] sm:$0x1]
  %v857 = vlaneseq
  %v858 = vshrl.u32 %v857, 7
  %v859 = vsub.s32 0, %v858
  %v860 = vrot.slane %v855, %v859
  %v862 = vadd.f32 %v851, %v860
  %v863 = vadd.f32 %v852, %v860
  %v864 = vadd.f32 %v853, %v860
  %v865 = vadd.f32 %v854, %v860
  %v866 = vmax.f32 %v862, 0.0
  %v867 = vmax.f32 %v863, 0.0
  %v868 = vmax.f32 %v864, 0.0
  %v869 = vmax.f32 %v865, 0.0
  %v870 = vpack.c.bf16 %v867, %v866
  %v871 = vpack.c.bf16 %v869, %v868
  %v874 = vunpack.c.l.b16 %v870
  %v875 = vunpack.c.h.b16 %v870
  %v876 = vunpack.c.l.b16 %v871
  %v877 = vunpack.c.h.b16 %v871
  %v878 = vpack.c.b16 %v874, %v874
  %v879 = vpack.c.b16 %v875, %v875
  %v880 = vpack.c.b16 %v876, %v876
  %v881 = vpack.c.b16 %v877, %v877
  %886 = vst [vmem:[%s3] sm:$0xf] %v878
  %887 = vst [vmem:[%s3 + $0x4] sm:$0xf] %v879
  %888 = vst [vmem:[%s3 + $0x8] sm:$0xf] %v880
  %889 = vst [vmem:[%s3 + $0xc] sm:$0xf] %v881
  // Predicated region
  $region14: #{net_forward.4} parent=0 // pred_check
    _
  $region15: #{net_forward.4} parent=0 // pred_check_branch
    %891 = sbr.rel (0) target = $region17
  $region16: #{net_forward.4} parent=0 // pred_region
    _
  $region17: #{net_forward.4} parent=0 // pred_fallthru
    _
  // Predicated region
  $region18: #{net_forward.4} parent=0 // pred_check
    _
  $region19: #{net_forward.4} parent=0 // pred_check_branch
    %893 = sbr.rel (0) target = $region21
  $region20: #{net_forward.4} parent=0 // pred_region
    _
  $region21: #{net_forward.4} parent=0 // pred_fallthru
    _

// kernel: net_forward.5
$region0: #{net_forward.5}
  #allocation0 [shape = 'u32[]', space=smem, size = 0x4, offset = 0x4, fixed_abs, tag = 'smem constant byte address 0x4 - core index']
  #allocation1 [shape = 'u32[144,128]{1,0:T(1,128)}', space=vmem, size = 0x12000, scoped, tag = 'internal scratch']
  %s0 = inlined_call_operand.vmem [shape: bf16[2,2048], index: 0, kind: input, shape index: {}]
  %s1 = inlined_call_operand.vmem [shape: bf16[2048,128], index: 1, kind: input, shape index: {}]
  %s2 = inlined_call_operand.vmem [shape: f32[1,128], index: 2, kind: input, shape index: {}]
  %s3 = inlined_call_operand.vmem [shape: bf16[128,128], index: 3, kind: input, shape index: {}]
  %s4 = inlined_call_operand.vmem [shape: f32[1,128], index: 4, kind: input, shape index: {}]
  %s5 = inlined_call_operand.hbm [shape: f32[2,128], index: 5, kind: output, shape index: {}]
  %s6 = sld [smem:[#allocation0]]
  $region30: #{net_forward.5} parent=0
    _
  %s8 = ssub.s32 1, %s6
  %s9 = scalar_select 0, %s8, %s6
  $region1: #{net_forward.5} parent=0
    #allocation2 [shape = 'u8[1024]{0}', space=vmem, size = 0x400, scoped, tag = 'output window, operand 0, single buffered']
    #allocation3 [shape = 's32[1]{0}', space=sflag, size = 0x4, scoped, tag = 'scoped memory for net_forward.5']
    %10 = vsyncpa [#allocation3], 0
    // Predicated region
    $region2: #{net_forward.5} parent=1 // pred_check
      _
    $region3: #{net_forward.5} parent=1 // pred_check_branch
      %12 = sbr.rel (0) target = $region5
    $region4: #{net_forward.5} parent=1 // pred_region
      _
    $region5: #{net_forward.5} parent=1 // pred_fallthru
      _
    // Predicated region
    $region6: #{net_forward.5} parent=1 // pred_check
      _
    $region7: #{net_forward.5} parent=1 // pred_check_branch
      %14 = sbr.rel (0) target = $region9
    $region8: #{net_forward.5} parent=1 // pred_region
      _
    $region9: #{net_forward.5} parent=1 // pred_fallthru
      _
    // Predicated region
    $region10: #{net_forward.5} parent=1 // pred_check
      _
    $region11: #{net_forward.5} parent=1 // pred_check_branch
      %16 = sbr.rel (0) target = $region13
    $region12: #{net_forward.5} parent=1 // pred_region
      _
    $region13: #{net_forward.5} parent=1 // pred_fallthru
      _
    // Predicated region
    $region14: #{net_forward.5} parent=1 // pred_check
      _
    $region15: #{net_forward.5} parent=1 // pred_check_branch
      %18 = sbr.rel (0) target = $region17
    $region16: #{net_forward.5} parent=1 // pred_region
      _
    $region17: #{net_forward.5} parent=1 // pred_fallthru
      _
    // Predicated region
    $region18: #{net_forward.5} parent=1 // pred_check
      _
    $region19: #{net_forward.5} parent=1 // pred_check_branch
      %20 = sbr.rel (0) target = $region21
    $region20: #{net_forward.5} parent=1 // pred_region
      _
    $region21: #{net_forward.5} parent=1 // pred_fallthru
      _
    %v22 = vld [vmem:[%s0] sm:$0xff]
    %v23 = vld [vmem:[%s0 + $0x8] sm:$0xff]
    %v24 = vld [vmem:[%s1] sm:$0xf]
    %v25 = vld [vmem:[%s1 + $0x4] sm:$0xf]
    %v26 = vld [vmem:[%s1 + $0x8] sm:$0xf]
    %v27 = vld [vmem:[%s1 + $0xc] sm:$0xf]
    %v28 = vld [vmem:[%s1 + $0x10] sm:$0xf]
    %v29 = vld [vmem:[%s1 + $0x14] sm:$0xf]
    %v30 = vld [vmem:[%s1 + $0x18] sm:$0xf]
    %v31 = vld [vmem:[%s1 + $0x1c] sm:$0xf]
    %v32 = vld [vmem:[%s1 + $0x20] sm:$0xf]
    %v33 = vld [vmem:[%s1 + $0x24] sm:$0xf]
    %v34 = vld [vmem:[%s1 + $0x28] sm:$0xf]
    %v35 = vld [vmem:[%s1 + $0x2c] sm:$0xf]
    %v36 = vld [vmem:[%s1 + $0x30] sm:$0xf]
    %v37 = vld [vmem:[%s1 + $0x34] sm:$0xf]
    %v38 = vld [vmem:[%s1 + $0x38] sm:$0xf]
    %v39 = vld [vmem:[%s1 + $0x3c] sm:$0xf]
    %v40 = vld [vmem:[%s1 + $0x40] sm:$0xf]
    %v41 = vld [vmem:[%s1 + $0x44] sm:$0xf]
    %v42 = vld [vmem:[%s1 + $0x48] sm:$0xf]
    %v43 = vld [vmem:[%s1 + $0x4c] sm:$0xf]
    %v44 = vld [vmem:[%s1 + $0x50] sm:$0xf]
    %v45 = vld [vmem:[%s1 + $0x54] sm:$0xf]
    %v46 = vld [vmem:[%s1 + $0x58] sm:$0xf]
    %v47 = vld [vmem:[%s1 + $0x5c] sm:$0xf]
    %v48 = vld [vmem:[%s1 + $0x60] sm:$0xf]
    %v49 = vld [vmem:[%s1 + $0x64] sm:$0xf]
    %v50 = vld [vmem:[%s1 + $0x68] sm:$0xf]
    %v51 = vld [vmem:[%s1 + $0x6c] sm:$0xf]
    %v52 = vld [vmem:[%s1 + $0x70] sm:$0xf]
    %v53 = vld [vmem:[%s1 + $0x74] sm:$0xf]
    %v54 = vld [vmem:[%s1 + $0x78] sm:$0xf]
    %v55 = vld [vmem:[%s1 + $0x7c] sm:$0xf]
    %v56 = vld [vmem:[%s1 + $0x80] sm:$0xf]
    %v57 = vld [vmem:[%s1 + $0x84] sm:$0xf]
    %v58 = vld [vmem:[%s1 + $0x88] sm:$0xf]
    %v59 = vld [vmem:[%s1 + $0x8c] sm:$0xf]
    %v60 = vld [vmem:[%s1 + $0x90] sm:$0xf]
    %v61 = vld [vmem:[%s1 + $0x94] sm:$0xf]
    %v62 = vld [vmem:[%s1 + $0x98] sm:$0xf]
    %v63 = vld [vmem:[%s1 + $0x9c] sm:$0xf]
    %v64 = vld [vmem:[%s1 + $0xa0] sm:$0xf]
    %v65 = vld [vmem:[%s1 + $0xa4] sm:$0xf]
    %v66 = vld [vmem:[%s1 + $0xa8] sm:$0xf]
    %v67 = vld [vmem:[%s1 + $0xac] sm:$0xf]
    %v68 = vld [vmem:[%s1 + $0xb0] sm:$0xf]
    %v69 = vld [vmem:[%s1 + $0xb4] sm:$0xf]
    %v70 = vld [vmem:[%s1 + $0xb8] sm:$0xf]
    %v71 = vld [vmem:[%s1 + $0xbc] sm:$0xf]
    %v72 = vld [vmem:[%s1 + $0xc0] sm:$0xf]
    %v73 = vld [vmem:[%s1 + $0xc4] sm:$0xf]
    %v74 = vld [vmem:[%s1 + $0xc8] sm:$0xf]
    %v75 = vld [vmem:[%s1 + $0xcc] sm:$0xf]
    %v76 = vld [vmem:[%s1 + $0xd0] sm:$0xf]
    %v77 = vld [vmem:[%s1 + $0xd4] sm:$0xf]
    %v78 = vld [vmem:[%s1 + $0xd8] sm:$0xf]
    %v79 = vld [vmem:[%s1 + $0xdc] sm:$0xf]
    %v80 = vld [vmem:[%s1 + $0xe0] sm:$0xf]
    %v81 = vld [vmem:[%s1 + $0xe4] sm:$0xf]
    %v82 = vld [vmem:[%s1 + $0xe8] sm:$0xf]
    %v83 = vld [vmem:[%s1 + $0xec] sm:$0xf]
    %v84 = vld [vmem:[%s1 + $0xf0] sm:$0xf]
    %v85 = vld [vmem:[%s1 + $0xf4] sm:$0xf]
    %v86 = vld [vmem:[%s1 + $0xf8] sm:$0xf]
    %v87 = vld [vmem:[%s1 + $0xfc] sm:$0xf]
    %v88 = vld [vmem:[%s1 + $0x100] sm:$0xf]
    %v89 = vld [vmem:[%s1 + $0x104] sm:$0xf]
    %v90 = vld [vmem:[%s1 + $0x108] sm:$0xf]
    %v91 = vld [vmem:[%s1 + $0x10c] sm:$0xf]
    %v92 = vld [vmem:[%s1 + $0x110] sm:$0xf]
    %v93 = vld [vmem:[%s1 + $0x114] sm:$0xf]
    %v94 = vld [vmem:[%s1 + $0x118] sm:$0xf]
    %v95 = vld [vmem:[%s1 + $0x11c] sm:$0xf]
    %v96 = vld [vmem:[%s1 + $0x120] sm:$0xf]
    %v97 = vld [vmem:[%s1 + $0x124] sm:$0xf]
    %v98 = vld [vmem:[%s1 + $0x128] sm:$0xf]
    %v99 = vld [vmem:[%s1 + $0x12c] sm:$0xf]
    %v100 = vld [vmem:[%s1 + $0x130] sm:$0xf]
    %v101 = vld [vmem:[%s1 + $0x134] sm:$0xf]
    %v102 = vld [vmem:[%s1 + $0x138] sm:$0xf]
    %v103 = vld [vmem:[%s1 + $0x13c] sm:$0xf]
    %v104 = vld [vmem:[%s1 + $0x140] sm:$0xf]
    %v105 = vld [vmem:[%s1 + $0x144] sm:$0xf]
    %v106 = vld [vmem:[%s1 + $0x148] sm:$0xf]
    %v107 = vld [vmem:[%s1 + $0x14c] sm:$0xf]
    %v108 = vld [vmem:[%s1 + $0x150] sm:$0xf]
    %v109 = vld [vmem:[%s1 + $0x154] sm:$0xf]
    %v110 = vld [vmem:[%s1 + $0x158] sm:$0xf]
    %v111 = vld [vmem:[%s1 + $0x15c] sm:$0xf]
    %v112 = vld [vmem:[%s1 + $0x160] sm:$0xf]
    %v113 = vld [vmem:[%s1 + $0x164] sm:$0xf]
    %v114 = vld [vmem:[%s1 + $0x168] sm:$0xf]
    %v115 = vld [vmem:[%s1 + $0x16c] sm:$0xf]
    %v116 = vld [vmem:[%s1 + $0x170] sm:$0xf]
    %v117 = vld [vmem:[%s1 + $0x174] sm:$0xf]
    %v118 = vld [vmem:[%s1 + $0x178] sm:$0xf]
    %v119 = vld [vmem:[%s1 + $0x17c] sm:$0xf]
    %v120 = vld [vmem:[%s1 + $0x180] sm:$0xf]
    %v121 = vld [vmem:[%s1 + $0x184] sm:$0xf]
    %v122 = vld [vmem:[%s1 + $0x188] sm:$0xf]
    %v123 = vld [vmem:[%s1 + $0x18c] sm:$0xf]
    %v124 = vld [vmem:[%s1 + $0x190] sm:$0xf]
    %v125 = vld [vmem:[%s1 + $0x194] sm:$0xf]
    %v126 = vld [vmem:[%s1 + $0x198] sm:$0xf]
    %v127 = vld [vmem:[%s1 + $0x19c] sm:$0xf]
    %v128 = vld [vmem:[%s1 + $0x1a0] sm:$0xf]
    %v129 = vld [vmem:[%s1 + $0x1a4] sm:$0xf]
    %v130 = vld [vmem:[%s1 + $0x1a8] sm:$0xf]
    %v131 = vld [vmem:[%s1 + $0x1ac] sm:$0xf]
    %v132 = vld [vmem:[%s1 + $0x1b0] sm:$0xf]
    %v133 = vld [vmem:[%s1 + $0x1b4] sm:$0xf]
    %v134 = vld [vmem:[%s1 + $0x1b8] sm:$0xf]
    %v135 = vld [vmem:[%s1 + $0x1bc] sm:$0xf]
    %v136 = vld [vmem:[%s1 + $0x1c0] sm:$0xf]
    %v137 = vld [vmem:[%s1 + $0x1c4] sm:$0xf]
    %v138 = vld [vmem:[%s1 + $0x1c8] sm:$0xf]
    %v139 = vld [vmem:[%s1 + $0x1cc] sm:$0xf]
    %v140 = vld [vmem:[%s1 + $0x1d0] sm:$0xf]
    %v141 = vld [vmem:[%s1 + $0x1d4] sm:$0xf]
    %v142 = vld [vmem:[%s1 + $0x1d8] sm:$0xf]
    %v143 = vld [vmem:[%s1 + $0x1dc] sm:$0xf]
    %v144 = vld [vmem:[%s1 + $0x1e0] sm:$0xf]
    %v145 = vld [vmem:[%s1 + $0x1e4] sm:$0xf]
    %v146 = vld [vmem:[%s1 + $0x1e8] sm:$0xf]
    %v147 = vld [vmem:[%s1 + $0x1ec] sm:$0xf]
    %v148 = vld [vmem:[%s1 + $0x1f0] sm:$0xf]
    %v149 = vld [vmem:[%s1 + $0x1f4] sm:$0xf]
    %v150 = vld [vmem:[%s1 + $0x1f8] sm:$0xf]
    %v151 = vld [vmem:[%s1 + $0x1fc] sm:$0xf]
    %v152 = vld [vmem:[%s1 + $0x200] sm:$0xf]
    %v153 = vld [vmem:[%s1 + $0x204] sm:$0xf]
    %v154 = vld [vmem:[%s1 + $0x208] sm:$0xf]
    %v155 = vld [vmem:[%s1 + $0x20c] sm:$0xf]
    %v156 = vld [vmem:[%s1 + $0x210] sm:$0xf]
    %v157 = vld [vmem:[%s1 + $0x214] sm:$0xf]
    %v158 = vld [vmem:[%s1 + $0x218] sm:$0xf]
    %v159 = vld [vmem:[%s1 + $0x21c] sm:$0xf]
    %v160 = vld [vmem:[%s1 + $0x220] sm:$0xf]
    %v161 = vld [vmem:[%s1 + $0x224] sm:$0xf]
    %v162 = vld [vmem:[%s1 + $0x228] sm:$0xf]
    %v163 = vld [vmem:[%s1 + $0x22c] sm:$0xf]
    %v164 = vld [vmem:[%s1 + $0x230] sm:$0xf]
    %v165 = vld [vmem:[%s1 + $0x234] sm:$0xf]
    %v166 = vld [vmem:[%s1 + $0x238] sm:$0xf]
    %v167 = vld [vmem:[%s1 + $0x23c] sm:$0xf]
    %v168 = vld [vmem:[%s1 + $0x240] sm:$0xf]
    %v169 = vld [vmem:[%s1 + $0x244] sm:$0xf]
    %v170 = vld [vmem:[%s1 + $0x248] sm:$0xf]
    %v171 = vld [vmem:[%s1 + $0x24c] sm:$0xf]
    %v172 = vld [vmem:[%s1 + $0x250] sm:$0xf]
    %v173 = vld [vmem:[%s1 + $0x254] sm:$0xf]
    %v174 = vld [vmem:[%s1 + $0x258] sm:$0xf]
    %v175 = vld [vmem:[%s1 + $0x25c] sm:$0xf]
    %v176 = vld [vmem:[%s1 + $0x260] sm:$0xf]
    %v177 = vld [vmem:[%s1 + $0x264] sm:$0xf]
    %v178 = vld [vmem:[%s1 + $0x268] sm:$0xf]
    %v179 = vld [vmem:[%s1 + $0x26c] sm:$0xf]
    %v180 = vld [vmem:[%s1 + $0x270] sm:$0xf]
    %v181 = vld [vmem:[%s1 + $0x274] sm:$0xf]
    %v182 = vld [vmem:[%s1 + $0x278] sm:$0xf]
    %v183 = vld [vmem:[%s1 + $0x27c] sm:$0xf]
    %v184 = vld [vmem:[%s1 + $0x280] sm:$0xf]
    %v185 = vld [vmem:[%s1 + $0x284] sm:$0xf]
    %v186 = vld [vmem:[%s1 + $0x288] sm:$0xf]
    %v187 = vld [vmem:[%s1 + $0x28c] sm:$0xf]
    %v188 = vld [vmem:[%s1 + $0x290] sm:$0xf]
    %v189 = vld [vmem:[%s1 + $0x294] sm:$0xf]
    %v190 = vld [vmem:[%s1 + $0x298] sm:$0xf]
    %v191 = vld [vmem:[%s1 + $0x29c] sm:$0xf]
    %v192 = vld [vmem:[%s1 + $0x2a0] sm:$0xf]
    %v193 = vld [vmem:[%s1 + $0x2a4] sm:$0xf]
    %v194 = vld [vmem:[%s1 + $0x2a8] sm:$0xf]
    %v195 = vld [vmem:[%s1 + $0x2ac] sm:$0xf]
    %v196 = vld [vmem:[%s1 + $0x2b0] sm:$0xf]
    %v197 = vld [vmem:[%s1 + $0x2b4] sm:$0xf]
    %v198 = vld [vmem:[%s1 + $0x2b8] sm:$0xf]
    %v199 = vld [vmem:[%s1 + $0x2bc] sm:$0xf]
    %v200 = vld [vmem:[%s1 + $0x2c0] sm:$0xf]
    %v201 = vld [vmem:[%s1 + $0x2c4] sm:$0xf]
    %v202 = vld [vmem:[%s1 + $0x2c8] sm:$0xf]
    %v203 = vld [vmem:[%s1 + $0x2cc] sm:$0xf]
    %v204 = vld [vmem:[%s1 + $0x2d0] sm:$0xf]
    %v205 = vld [vmem:[%s1 + $0x2d4] sm:$0xf]
    %v206 = vld [vmem:[%s1 + $0x2d8] sm:$0xf]
    %v207 = vld [vmem:[%s1 + $0x2dc] sm:$0xf]
    %v208 = vld [vmem:[%s1 + $0x2e0] sm:$0xf]
    %v209 = vld [vmem:[%s1 + $0x2e4] sm:$0xf]
    %v210 = vld [vmem:[%s1 + $0x2e8] sm:$0xf]
    %v211 = vld [vmem:[%s1 + $0x2ec] sm:$0xf]
    %v212 = vld [vmem:[%s1 + $0x2f0] sm:$0xf]
    %v213 = vld [vmem:[%s1 + $0x2f4] sm:$0xf]
    %v214 = vld [vmem:[%s1 + $0x2f8] sm:$0xf]
    %v215 = vld [vmem:[%s1 + $0x2fc] sm:$0xf]
    %v216 = vld [vmem:[%s1 + $0x300] sm:$0xf]
    %v217 = vld [vmem:[%s1 + $0x304] sm:$0xf]
    %v218 = vld [vmem:[%s1 + $0x308] sm:$0xf]
    %v219 = vld [vmem:[%s1 + $0x30c] sm:$0xf]
    %v220 = vld [vmem:[%s1 + $0x310] sm:$0xf]
    %v221 = vld [vmem:[%s1 + $0x314] sm:$0xf]
    %v222 = vld [vmem:[%s1 + $0x318] sm:$0xf]
    %v223 = vld [vmem:[%s1 + $0x31c] sm:$0xf]
    %v224 = vld [vmem:[%s1 + $0x320] sm:$0xf]
    %v225 = vld [vmem:[%s1 + $0x324] sm:$0xf]
    %v226 = vld [vmem:[%s1 + $0x328] sm:$0xf]
    %v227 = vld [vmem:[%s1 + $0x32c] sm:$0xf]
    %v228 = vld [vmem:[%s1 + $0x330] sm:$0xf]
    %v229 = vld [vmem:[%s1 + $0x334] sm:$0xf]
    %v230 = vld [vmem:[%s1 + $0x338] sm:$0xf]
    %v231 = vld [vmem:[%s1 + $0x33c] sm:$0xf]
    %v232 = vld [vmem:[%s1 + $0x340] sm:$0xf]
    %v233 = vld [vmem:[%s1 + $0x344] sm:$0xf]
    %v234 = vld [vmem:[%s1 + $0x348] sm:$0xf]
    %v235 = vld [vmem:[%s1 + $0x34c] sm:$0xf]
    %v236 = vld [vmem:[%s1 + $0x350] sm:$0xf]
    %v237 = vld [vmem:[%s1 + $0x354] sm:$0xf]
    %v238 = vld [vmem:[%s1 + $0x358] sm:$0xf]
    %v239 = vld [vmem:[%s1 + $0x35c] sm:$0xf]
    %v240 = vld [vmem:[%s1 + $0x360] sm:$0xf]
    %v241 = vld [vmem:[%s1 + $0x364] sm:$0xf]
    %v242 = vld [vmem:[%s1 + $0x368] sm:$0xf]
    %v243 = vld [vmem:[%s1 + $0x36c] sm:$0xf]
    %v244 = vld [vmem:[%s1 + $0x370] sm:$0xf]
    %v245 = vld [vmem:[%s1 + $0x374] sm:$0xf]
    %v246 = vld [vmem:[%s1 + $0x378] sm:$0xf]
    %v247 = vld [vmem:[%s1 + $0x37c] sm:$0xf]
    %v248 = vld [vmem:[%s1 + $0x380] sm:$0xf]
    %v249 = vld [vmem:[%s1 + $0x384] sm:$0xf]
    %v250 = vld [vmem:[%s1 + $0x388] sm:$0xf]
    %v251 = vld [vmem:[%s1 + $0x38c] sm:$0xf]
    %v252 = vld [vmem:[%s1 + $0x390] sm:$0xf]
    %v253 = vld [vmem:[%s1 + $0x394] sm:$0xf]
    %v254 = vld [vmem:[%s1 + $0x398] sm:$0xf]
    %v255 = vld [vmem:[%s1 + $0x39c] sm:$0xf]
    %v256 = vld [vmem:[%s1 + $0x3a0] sm:$0xf]
    %v257 = vld [vmem:[%s1 + $0x3a4] sm:$0xf]
    %v258 = vld [vmem:[%s1 + $0x3a8] sm:$0xf]
    %v259 = vld [vmem:[%s1 + $0x3ac] sm:$0xf]
    %v260 = vld [vmem:[%s1 + $0x3b0] sm:$0xf]
    %v261 = vld [vmem:[%s1 + $0x3b4] sm:$0xf]
    %v262 = vld [vmem:[%s1 + $0x3b8] sm:$0xf]
    %v263 = vld [vmem:[%s1 + $0x3bc] sm:$0xf]
    %v264 = vld [vmem:[%s1 + $0x3c0] sm:$0xf]
    %v265 = vld [vmem:[%s1 + $0x3c4] sm:$0xf]
    %v266 = vld [vmem:[%s1 + $0x3c8] sm:$0xf]
    %v267 = vld [vmem:[%s1 + $0x3cc] sm:$0xf]
    %v268 = vld [vmem:[%s1 + $0x3d0] sm:$0xf]
    %v269 = vld [vmem:[%s1 + $0x3d4] sm:$0xf]
    %v270 = vld [vmem:[%s1 + $0x3d8] sm:$0xf]
    %v271 = vld [vmem:[%s1 + $0x3dc] sm:$0xf]
    %v272 = vld [vmem:[%s1 + $0x3e0] sm:$0xf]
    %v273 = vld [vmem:[%s1 + $0x3e4] sm:$0xf]
    %v274 = vld [vmem:[%s1 + $0x3e8] sm:$0xf]
    %v275 = vld [vmem:[%s1 + $0x3ec] sm:$0xf]
    %v276 = vld [vmem:[%s1 + $0x3f0] sm:$0xf]
    %v277 = vld [vmem:[%s1 + $0x3f4] sm:$0xf]
    %v278 = vld [vmem:[%s1 + $0x3f8] sm:$0xf]
    %v279 = vld [vmem:[%s1 + $0x3fc] sm:$0xf]
    %v280 = vld [vmem:[%s2] sm:$0x1]
    %v282 = vlaneseq
    %v283 = vshrl.u32 %v282, 7
    %v284 = vsub.s32 0, %v283
    %v285 = vrot.slane %v280, %v284
    %v289 = vcombine.high %v22, %v22
    %v291 = vunpack.c.l.s4 1966171168
    %v292 = vunpack.c.0.s8 %v291
    %v293 = vlaneseq
    %v294 = vshrl.u32 %v293, 7
    %v295 = vsub.s32 %v292, %v294
    %v296 = vrot.slane %v22, %v295
    %v298 = vunpack.c.l.s4 1966171168
    %v299 = vunpack.c.0.s8 %v298
    %v300 = vlaneseq
    %v301 = vshrl.u32 %v300, 7
    %v302 = vsub.s32 %v299, %v301
    %v303 = vrot.slane %v289, %v302
    %v304 = vcombine.high %v296, %v296
    %v305 = vcombine.high %v303, %v303
    %v307 = vunpack.c.l.s4 1966171168
    %v308 = vunpack.c.0.s8 %v307
    %v309 = vlaneseq
    %v310 = vshrl.u32 %v309, 7
    %v311 = vsub.s32 %v308, %v310
    %v312 = vrot.slane %v296, %v311
    %v314 = vunpack.c.l.s4 1966171168
    %v315 = vunpack.c.0.s8 %v314
    %v316 = vlaneseq
    %v317 = vshrl.u32 %v316, 7
    %v318 = vsub.s32 %v315, %v317
    %v319 = vrot.slane %v303, %v318
    %v321 = vunpack.c.l.s4 1966171168
    %v322 = vunpack.c.0.s8 %v321
    %v323 = vlaneseq
    %v324 = vshrl.u32 %v323, 7
    %v325 = vsub.s32 %v322, %v324
    %v326 = vrot.slane %v304, %v325
    %v328 = vunpack.c.l.s4 1966171168
    %v329 = vunpack.c.0.s8 %v328
    %v330 = vlaneseq
    %v331 = vshrl.u32 %v330, 7
    %v332 = vsub.s32 %v329, %v331
    %v333 = vrot.slane %v305, %v332
    %v334 = vcombine.high %v312, %v312
    %v335 = vcombine.high %v319, %v319
    %v336 = vcombine.high %v326, %v326
    %v337 = vcombine.high %v333, %v333
    %v338 = vcombine.high %v23, %v23
    %v340 = vunpack.c.l.s4 1966171168
    %v341 = vunpack.c.0.s8 %v340
    %v342 = vlaneseq
    %v343 = vshrl.u32 %v342, 7
    %v344 = vsub.s32 %v341, %v343
    %v345 = vrot.slane %v23, %v344
    %v347 = vunpack.c.l.s4 1966171168
    %v348 = vunpack.c.0.s8 %v347
    %v349 = vlaneseq
    %v350 = vshrl.u32 %v349, 7
    %v351 = vsub.s32 %v348, %v350
    %v352 = vrot.slane %v338, %v351
    %v353 = vcombine.high %v345, %v345
    %v354 = vcombine.high %v352, %v352
    %v356 = vunpack.c.l.s4 1966171168
    %v357 = vunpack.c.0.s8 %v356
    %v358 = vlaneseq
    %v359 = vshrl.u32 %v358, 7
    %v360 = vsub.s32 %v357, %v359
    %v361 = vrot.slane %v345, %v360
    %v363 = vunpack.c.l.s4 1966171168
    %v364 = vunpack.c.0.s8 %v363
    %v365 = vlaneseq
    %v366 = vshrl.u32 %v365, 7
    %v367 = vsub.s32 %v364, %v366
    %v368 = vrot.slane %v352, %v367
    %v370 = vunpack.c.l.s4 1966171168
    %v371 = vunpack.c.0.s8 %v370
    %v372 = vlaneseq
    %v373 = vshrl.u32 %v372, 7
    %v374 = vsub.s32 %v371, %v373
    %v375 = vrot.slane %v353, %v374
    %v377 = vunpack.c.l.s4 1966171168
    %v378 = vunpack.c.0.s8 %v377
    %v379 = vlaneseq
    %v380 = vshrl.u32 %v379, 7
    %v381 = vsub.s32 %v378, %v380
    %v382 = vrot.slane %v354, %v381
    %v383 = vcombine.high %v361, %v361
    %v384 = vcombine.high %v368, %v368
    %v385 = vcombine.high %v375, %v375
    %v386 = vcombine.high %v382, %v382
    %v659 = vunpack.c.l.b16 %v24
    %v660 = vunpack.c.l.b16 %v25
    %v661 = vunpack.c.l.b16 %v26
    %v662 = vunpack.c.l.b16 %v27
    %v663 = vunpack.c.l.b16 %v28
    %v664 = vunpack.c.l.b16 %v29
    %v665 = vunpack.c.l.b16 %v30
    %v666 = vunpack.c.l.b16 %v31
    %v667 = vunpack.c.l.b16 %v32
    %v668 = vunpack.c.l.b16 %v33
    %v669 = vunpack.c.l.b16 %v34
    %v670 = vunpack.c.l.b16 %v35
    %v671 = vunpack.c.l.b16 %v36
    %v672 = vunpack.c.l.b16 %v37
    %v673 = vunpack.c.l.b16 %v38
    %v674 = vunpack.c.l.b16 %v39
    %v675 = vunpack.c.l.b16 %v40
    %v676 = vunpack.c.l.b16 %v41
    %v677 = vunpack.c.l.b16 %v42
    %v678 = vunpack.c.l.b16 %v43
    %v679 = vunpack.c.l.b16 %v44
    %v680 = vunpack.c.l.b16 %v45
    %v681 = vunpack.c.l.b16 %v46
    %v682 = vunpack.c.l.b16 %v47
    %v683 = vunpack.c.l.b16 %v48
    %v684 = vunpack.c.l.b16 %v49
    %v685 = vunpack.c.l.b16 %v50
    %v686 = vunpack.c.l.b16 %v51
    %v687 = vunpack.c.l.b16 %v52
    %v688 = vunpack.c.l.b16 %v53
    %v689 = vunpack.c.l.b16 %v54
    %v690 = vunpack.c.l.b16 %v55
    %v691 = vunpack.c.l.b16 %v56
    %v692 = vunpack.c.l.b16 %v57
    %v693 = vunpack.c.l.b16 %v58
    %v694 = vunpack.c.l.b16 %v59
    %v695 = vunpack.c.l.b16 %v60
    %v696 = vunpack.c.l.b16 %v61
    %v697 = vunpack.c.l.b16 %v62
    %v698 = vunpack.c.l.b16 %v63
    %v699 = vunpack.c.l.b16 %v64
    %v700 = vunpack.c.l.b16 %v65
    %v701 = vunpack.c.l.b16 %v66
    %v702 = vunpack.c.l.b16 %v67
    %v703 = vunpack.c.l.b16 %v68
    %v704 = vunpack.c.l.b16 %v69
    %v705 = vunpack.c.l.b16 %v70
    %v706 = vunpack.c.l.b16 %v71
    %v707 = vunpack.c.l.b16 %v72
    %v708 = vunpack.c.l.b16 %v73
    %v709 = vunpack.c.l.b16 %v74
    %v710 = vunpack.c.l.b16 %v75
    %v711 = vunpack.c.l.b16 %v76
    %v712 = vunpack.c.l.b16 %v77
    %v713 = vunpack.c.l.b16 %v78
    %v714 = vunpack.c.l.b16 %v79
    %v715 = vunpack.c.l.b16 %v80
    %v716 = vunpack.c.l.b16 %v81
    %v717 = vunpack.c.l.b16 %v82
    %v718 = vunpack.c.l.b16 %v83
    %v719 = vunpack.c.l.b16 %v84
    %v720 = vunpack.c.l.b16 %v85
    %v721 = vunpack.c.l.b16 %v86
    %v722 = vunpack.c.l.b16 %v87
    %v723 = vunpack.c.l.b16 %v88
    %v724 = vunpack.c.l.b16 %v89
    %v725 = vunpack.c.l.b16 %v90
    %v726 = vunpack.c.l.b16 %v91
    %v727 = vunpack.c.l.b16 %v92
    %v728 = vunpack.c.l.b16 %v93
    %v729 = vunpack.c.l.b16 %v94
    %v730 = vunpack.c.l.b16 %v95
    %v731 = vunpack.c.l.b16 %v96
    %v732 = vunpack.c.l.b16 %v97
    %v733 = vunpack.c.l.b16 %v98
    %v734 = vunpack.c.l.b16 %v99
    %v735 = vunpack.c.l.b16 %v100
    %v736 = vunpack.c.l.b16 %v101
    %v737 = vunpack.c.l.b16 %v102
    %v738 = vunpack.c.l.b16 %v103
    %v739 = vunpack.c.l.b16 %v104
    %v740 = vunpack.c.l.b16 %v105
    %v741 = vunpack.c.l.b16 %v106
    %v742 = vunpack.c.l.b16 %v107
    %v743 = vunpack.c.l.b16 %v108
    %v744 = vunpack.c.l.b16 %v109
    %v745 = vunpack.c.l.b16 %v110
    %v746 = vunpack.c.l.b16 %v111
    %v747 = vunpack.c.l.b16 %v112
    %v748 = vunpack.c.l.b16 %v113
    %v749 = vunpack.c.l.b16 %v114
    %v750 = vunpack.c.l.b16 %v115
    %v751 = vunpack.c.l.b16 %v116
    %v752 = vunpack.c.l.b16 %v117
    %v753 = vunpack.c.l.b16 %v118
    %v754 = vunpack.c.l.b16 %v119
    %v755 = vunpack.c.l.b16 %v120
    %v756 = vunpack.c.l.b16 %v121
    %v757 = vunpack.c.l.b16 %v122
    %v758 = vunpack.c.l.b16 %v123
    %v759 = vunpack.c.l.b16 %v124
    %v760 = vunpack.c.l.b16 %v125
    %v761 = vunpack.c.l.b16 %v126
    %v762 = vunpack.c.l.b16 %v127
    %v763 = vunpack.c.l.b16 %v128
    %v764 = vunpack.c.l.b16 %v129
    %v765 = vunpack.c.l.b16 %v130
    %v766 = vunpack.c.l.b16 %v131
    %v767 = vunpack.c.l.b16 %v132
    %v768 = vunpack.c.l.b16 %v133
    %v769 = vunpack.c.l.b16 %v134
    %v770 = vunpack.c.l.b16 %v135
    %v771 = vunpack.c.l.b16 %v136
    %v772 = vunpack.c.l.b16 %v137
    %v773 = vunpack.c.l.b16 %v138
    %v774 = vunpack.c.l.b16 %v139
    %v775 = vunpack.c.l.b16 %v140
    %v776 = vunpack.c.l.b16 %v141
    %v777 = vunpack.c.l.b16 %v142
    %v778 = vunpack.c.l.b16 %v143
    %v779 = vunpack.c.l.b16 %v144
    %v780 = vunpack.c.l.b16 %v145
    %v781 = vunpack.c.l.b16 %v146
    %v782 = vunpack.c.l.b16 %v147
    %v783 = vunpack.c.l.b16 %v148
    %v784 = vunpack.c.l.b16 %v149
    %v785 = vunpack.c.l.b16 %v150
    %v786 = vunpack.c.l.b16 %v151
    %v787 = vunpack.c.l.b16 %v152
    %v788 = vunpack.c.l.b16 %v153
    %v789 = vunpack.c.l.b16 %v154
    %v790 = vunpack.c.l.b16 %v155
    %v791 = vunpack.c.l.b16 %v156
    %v792 = vunpack.c.l.b16 %v157
    %v793 = vunpack.c.l.b16 %v158
    %v794 = vunpack.c.l.b16 %v159
    %v795 = vunpack.c.l.b16 %v160
    %v796 = vunpack.c.l.b16 %v161
    %v797 = vunpack.c.l.b16 %v162
    %v798 = vunpack.c.l.b16 %v163
    %v799 = vunpack.c.l.b16 %v164
    %v800 = vunpack.c.l.b16 %v165
    %v801 = vunpack.c.l.b16 %v166
    %v802 = vunpack.c.l.b16 %v167
    %v803 = vunpack.c.l.b16 %v168
    %v804 = vunpack.c.l.b16 %v169
    %v805 = vunpack.c.l.b16 %v170
    %v806 = vunpack.c.l.b16 %v171
    %v807 = vunpack.c.l.b16 %v172
    %v808 = vunpack.c.l.b16 %v173
    %v809 = vunpack.c.l.b16 %v174
    %v810 = vunpack.c.l.b16 %v175
    %v811 = vunpack.c.l.b16 %v176
    %v812 = vunpack.c.l.b16 %v177
    %v813 = vunpack.c.l.b16 %v178
    %v814 = vunpack.c.l.b16 %v179
    %v815 = vunpack.c.l.b16 %v180
    %v816 = vunpack.c.l.b16 %v181
    %v817 = vunpack.c.l.b16 %v182
    %v818 = vunpack.c.l.b16 %v183
    %v819 = vunpack.c.l.b16 %v184
    %v820 = vunpack.c.l.b16 %v185
    %v821 = vunpack.c.l.b16 %v186
    %v822 = vunpack.c.l.b16 %v187
    %v823 = vunpack.c.l.b16 %v188
    %v824 = vunpack.c.l.b16 %v189
    %v825 = vunpack.c.l.b16 %v190
    %v826 = vunpack.c.l.b16 %v191
    %v827 = vunpack.c.l.b16 %v192
    %v828 = vunpack.c.l.b16 %v193
    %v829 = vunpack.c.l.b16 %v194
    %v830 = vunpack.c.l.b16 %v195
    %v831 = vunpack.c.l.b16 %v196
    %v832 = vunpack.c.l.b16 %v197
    %v833 = vunpack.c.l.b16 %v198
    %v834 = vunpack.c.l.b16 %v199
    %v835 = vunpack.c.l.b16 %v200
    %v836 = vunpack.c.l.b16 %v201
    %v837 = vunpack.c.l.b16 %v202
    %v838 = vunpack.c.l.b16 %v203
    %v839 = vunpack.c.l.b16 %v204
    %v840 = vunpack.c.l.b16 %v205
    %v841 = vunpack.c.l.b16 %v206
    %v842 = vunpack.c.l.b16 %v207
    %v843 = vunpack.c.l.b16 %v208
    %v844 = vunpack.c.l.b16 %v209
    %v845 = vunpack.c.l.b16 %v210
    %v846 = vunpack.c.l.b16 %v211
    %v847 = vunpack.c.l.b16 %v212
    %v848 = vunpack.c.l.b16 %v213
    %v849 = vunpack.c.l.b16 %v214
    %v850 = vunpack.c.l.b16 %v215
    %v851 = vunpack.c.l.b16 %v216
    %v852 = vunpack.c.l.b16 %v217
    %v853 = vunpack.c.l.b16 %v218
    %v854 = vunpack.c.l.b16 %v219
    %v855 = vunpack.c.l.b16 %v220
    %v856 = vunpack.c.l.b16 %v221
    %v857 = vunpack.c.l.b16 %v222
    %v858 = vunpack.c.l.b16 %v223
    %v859 = vunpack.c.l.b16 %v224
    %v860 = vunpack.c.l.b16 %v225
    %v861 = vunpack.c.l.b16 %v226
    %v862 = vunpack.c.l.b16 %v227
    %v863 = vunpack.c.l.b16 %v228
    %v864 = vunpack.c.l.b16 %v229
    %v865 = vunpack.c.l.b16 %v230
    %v866 = vunpack.c.l.b16 %v231
    %v867 = vunpack.c.l.b16 %v232
    %v868 = vunpack.c.l.b16 %v233
    %v869 = vunpack.c.l.b16 %v234
    %v870 = vunpack.c.l.b16 %v235
    %v871 = vunpack.c.l.b16 %v236
    %v872 = vunpack.c.l.b16 %v237
    %v873 = vunpack.c.l.b16 %v238
    %v874 = vunpack.c.l.b16 %v239
    %v875 = vunpack.c.l.b16 %v240
    %v876 = vunpack.c.l.b16 %v241
    %v877 = vunpack.c.l.b16 %v242
    %v878 = vunpack.c.l.b16 %v243
    %v879 = vunpack.c.l.b16 %v244
    %v880 = vunpack.c.l.b16 %v245
    %v881 = vunpack.c.l.b16 %v246
    %v882 = vunpack.c.l.b16 %v247
    %v883 = vunpack.c.l.b16 %v248
    %v884 = vunpack.c.l.b16 %v249
    %v885 = vunpack.c.l.b16 %v250
    %v886 = vunpack.c.l.b16 %v251
    %v887 = vunpack.c.l.b16 %v252
    %v888 = vunpack.c.l.b16 %v253
    %v889 = vunpack.c.l.b16 %v254
    %v890 = vunpack.c.l.b16 %v255
    %v891 = vunpack.c.l.b16 %v256
    %v892 = vunpack.c.l.b16 %v257
    %v893 = vunpack.c.l.b16 %v258
    %v894 = vunpack.c.l.b16 %v259
    %v895 = vunpack.c.l.b16 %v260
    %v896 = vunpack.c.l.b16 %v261
    %v897 = vunpack.c.l.b16 %v262
    %v898 = vunpack.c.l.b16 %v263
    %v899 = vunpack.c.l.b16 %v264
    %v900 = vunpack.c.l.b16 %v265
    %v901 = vunpack.c.l.b16 %v266
    %v902 = vunpack.c.l.b16 %v267
    %v903 = vunpack.c.l.b16 %v268
    %v904 = vunpack.c.l.b16 %v269
    %v905 = vunpack.c.l.b16 %v270
    %v906 = vunpack.c.l.b16 %v271
    %v907 = vunpack.c.l.b16 %v272
    %v908 = vunpack.c.l.b16 %v273
    %v909 = vunpack.c.l.b16 %v274
    %v910 = vunpack.c.l.b16 %v275
    %v911 = vunpack.c.l.b16 %v276
    %v912 = vunpack.c.l.b16 %v277
    %v913 = vunpack.c.l.b16 %v278
    %v914 = vunpack.c.l.b16 %v279
    %v915 = vpack.c.b16 %v660, %v659
    %v916 = vpack.c.b16 %v662, %v661
    %v917 = vpack.c.b16 %v664, %v663
    %v918 = vpack.c.b16 %v666, %v665
    %v919 = vpack.c.b16 %v668, %v667
    %v920 = vpack.c.b16 %v670, %v669
    %v921 = vpack.c.b16 %v672, %v671
    %v922 = vpack.c.b16 %v674, %v673
    %v923 = vpack.c.b16 %v676, %v675
    %v924 = vpack.c.b16 %v678, %v677
    %v925 = vpack.c.b16 %v680, %v679
    %v926 = vpack.c.b16 %v682, %v681
    %v927 = vpack.c.b16 %v684, %v683
    %v928 = vpack.c.b16 %v686, %v685
    %v929 = vpack.c.b16 %v688, %v687
    %v930 = vpack.c.b16 %v690, %v689
    %v931 = vpack.c.b16 %v692, %v691
    %v932 = vpack.c.b16 %v694, %v693
    %v933 = vpack.c.b16 %v696, %v695
    %v934 = vpack.c.b16 %v698, %v697
    %v935 = vpack.c.b16 %v700, %v699
    %v936 = vpack.c.b16 %v702, %v701
    %v937 = vpack.c.b16 %v704, %v703
    %v938 = vpack.c.b16 %v706, %v705
    %v939 = vpack.c.b16 %v708, %v707
    %v940 = vpack.c.b16 %v710, %v709
    %v941 = vpack.c.b16 %v712, %v711
    %v942 = vpack.c.b16 %v714, %v713
    %v943 = vpack.c.b16 %v716, %v715
    %v944 = vpack.c.b16 %v718, %v717
    %v945 = vpack.c.b16 %v720, %v719
    %v946 = vpack.c.b16 %v722, %v721
    %v947 = vpack.c.b16 %v724, %v723
    %v948 = vpack.c.b16 %v726, %v725
    %v949 = vpack.c.b16 %v728, %v727
    %v950 = vpack.c.b16 %v730, %v729
    %v951 = vpack.c.b16 %v732, %v731
    %v952 = vpack.c.b16 %v734, %v733
    %v953 = vpack.c.b16 %v736, %v735
    %v954 = vpack.c.b16 %v738, %v737
    %v955 = vpack.c.b16 %v740, %v739
    %v956 = vpack.c.b16 %v742, %v741
    %v957 = vpack.c.b16 %v744, %v743
    %v958 = vpack.c.b16 %v746, %v745
    %v959 = vpack.c.b16 %v748, %v747
    %v960 = vpack.c.b16 %v750, %v749
    %v961 = vpack.c.b16 %v752, %v751
    %v962 = vpack.c.b16 %v754, %v753
    %v963 = vpack.c.b16 %v756, %v755
    %v964 = vpack.c.b16 %v758, %v757
    %v965 = vpack.c.b16 %v760, %v759
    %v966 = vpack.c.b16 %v762, %v761
    %v967 = vpack.c.b16 %v764, %v763
    %v968 = vpack.c.b16 %v766, %v765
    %v969 = vpack.c.b16 %v768, %v767
    %v970 = vpack.c.b16 %v770, %v769
    %v971 = vpack.c.b16 %v772, %v771
    %v972 = vpack.c.b16 %v774, %v773
    %v973 = vpack.c.b16 %v776, %v775
    %v974 = vpack.c.b16 %v778, %v777
    %v975 = vpack.c.b16 %v780, %v779
    %v976 = vpack.c.b16 %v782, %v781
    %v977 = vpack.c.b16 %v784, %v783
    %v978 = vpack.c.b16 %v786, %v785
    %v979 = vpack.c.b16 %v788, %v787
    %v980 = vpack.c.b16 %v790, %v789
    %v981 = vpack.c.b16 %v792, %v791
    %v982 = vpack.c.b16 %v794, %v793
    %v983 = vpack.c.b16 %v796, %v795
    %v984 = vpack.c.b16 %v798, %v797
    %v985 = vpack.c.b16 %v800, %v799
    %v986 = vpack.c.b16 %v802, %v801
    %v987 = vpack.c.b16 %v804, %v803
    %v988 = vpack.c.b16 %v806, %v805
    %v989 = vpack.c.b16 %v808, %v807
    %v990 = vpack.c.b16 %v810, %v809
    %v991 = vpack.c.b16 %v812, %v811
    %v992 = vpack.c.b16 %v814, %v813
    %v993 = vpack.c.b16 %v816, %v815
    %v994 = vpack.c.b16 %v818, %v817
    %v995 = vpack.c.b16 %v820, %v819
    %v996 = vpack.c.b16 %v822, %v821
    %v997 = vpack.c.b16 %v824, %v823
    %v998 = vpack.c.b16 %v826, %v825
    %v999 = vpack.c.b16 %v828, %v827
    %v1000 = vpack.c.b16 %v830, %v829
    %v1001 = vpack.c.b16 %v832, %v831
    %v1002 = vpack.c.b16 %v834, %v833
    %v1003 = vpack.c.b16 %v836, %v835
    %v1004 = vpack.c.b16 %v838, %v837
    %v1005 = vpack.c.b16 %v840, %v839
    %v1006 = vpack.c.b16 %v842, %v841
    %v1007 = vpack.c.b16 %v844, %v843
    %v1008 = vpack.c.b16 %v846, %v845
    %v1009 = vpack.c.b16 %v848, %v847
    %v1010 = vpack.c.b16 %v850, %v849
    %v1011 = vpack.c.b16 %v852, %v851
    %v1012 = vpack.c.b16 %v854, %v853
    %v1013 = vpack.c.b16 %v856, %v855
    %v1014 = vpack.c.b16 %v858, %v857
    %v1015 = vpack.c.b16 %v860, %v859
    %v1016 = vpack.c.b16 %v862, %v861
    %v1017 = vpack.c.b16 %v864, %v863
    %v1018 = vpack.c.b16 %v866, %v865
    %v1019 = vpack.c.b16 %v868, %v867
    %v1020 = vpack.c.b16 %v870, %v869
    %v1021 = vpack.c.b16 %v872, %v871
    %v1022 = vpack.c.b16 %v874, %v873
    %v1023 = vpack.c.b16 %v876, %v875
    %v1024 = vpack.c.b16 %v878, %v877
    %v1025 = vpack.c.b16 %v880, %v879
    %v1026 = vpack.c.b16 %v882, %v881
    %v1027 = vpack.c.b16 %v884, %v883
    %v1028 = vpack.c.b16 %v886, %v885
    %v1029 = vpack.c.b16 %v888, %v887
    %v1030 = vpack.c.b16 %v890, %v889
    %v1031 = vpack.c.b16 %v892, %v891
    %v1032 = vpack.c.b16 %v894, %v893
    %v1033 = vpack.c.b16 %v896, %v895
    %v1034 = vpack.c.b16 %v898, %v897
    %v1035 = vpack.c.b16 %v900, %v899
    %v1036 = vpack.c.b16 %v902, %v901
    %v1037 = vpack.c.b16 %v904, %v903
    %v1038 = vpack.c.b16 %v906, %v905
    %v1039 = vpack.c.b16 %v908, %v907
    %v1040 = vpack.c.b16 %v910, %v909
    %v1041 = vpack.c.b16 %v912, %v911
    %v1042 = vpack.c.b16 %v914, %v913
    %1171 = vmatprep.subr.bf16.mxu0 0
    %1172 = vmatpush1.bf16.msra.mxu0 %v915
    %1173 = vmatprep.subr.bf16.mxu0 0
    %1174 = vmatpush1.bf16.msra.mxu0 %v916
    %1175 = vmatprep.subr.bf16.mxu0 0
    %1176 = vmatpush1.bf16.msra.mxu0 %v917
    %1177 = vmatprep.subr.bf16.mxu0 0
    %1178 = vmatpush1.bf16.msra.mxu0 %v918
    %1179 = vmatprep.subr.bf16.mxu0 0
    %1180 = vmatpush1.bf16.msra.mxu0 %v919
    %1181 = vmatprep.subr.bf16.mxu0 0
    %1182 = vmatpush1.bf16.msra.mxu0 %v920
    %1183 = vmatprep.subr.bf16.mxu0 0
    %1184 = vmatpush1.bf16.msra.mxu0 %v921
    %1185 = vmatprep.subr.bf16.mxu0 0
    %1186 = vmatpush1.bf16.msra.mxu0 %v922
    %1187 = vmatprep.subr.bf16.mxu0 0
    %1188 = vmatpush1.bf16.msra.mxu0 %v923
    %1189 = vmatprep.subr.bf16.mxu0 0
    %1190 = vmatpush1.bf16.msra.mxu0 %v924
    %1191 = vmatprep.subr.bf16.mxu0 0
    %1192 = vmatpush1.bf16.msra.mxu0 %v925
    %1193 = vmatprep.subr.bf16.mxu0 0
    %1194 = vmatpush1.bf16.msra.mxu0 %v926
    %1195 = vmatprep.subr.bf16.mxu0 0
    %1196 = vmatpush1.bf16.msra.mxu0 %v927
    %1197 = vmatprep.subr.bf16.mxu0 0
    %1198 = vmatpush1.bf16.msra.mxu0 %v928
    %1199 = vmatprep.subr.bf16.mxu0 0
    %1200 = vmatpush1.bf16.msra.mxu0 %v929
    %1201 = vmatprep.subr.bf16.mxu0 0
    %1202 = vmatpush1.bf16.msra.mxu0 %v930
    %1203 = vmatprep.mubr.bf16.mxu0 %v326
    %1204 = vmatmul.mubr.bf16.gmra.mrb[0].mxu0 %v312
    %v1205 = vpop.f32.mrb[0].mxu0
    %v1206 = vadd.f32 %v285, %v1205
    %v1207 = vpop.f32.mrb[0].mxu0
    %v1208 = vpop.f32.mrb[0].mxu0
    %v1209 = vpop.f32.mrb[0].mxu0
    %1210 = vdwg.mxu0
    %1211 = vmatprep.subr.bf16.mxu0 0
    %1212 = vmatpush1.bf16.msra.mxu0 %v931
    %1213 = vmatprep.subr.bf16.mxu0 0
    %1214 = vmatpush1.bf16.msra.mxu0 %v932
    %1215 = vmatprep.subr.bf16.mxu0 0
    %1216 = vmatpush1.bf16.msra.mxu0 %v933
    %1217 = vmatprep.subr.bf16.mxu0 0
    %1218 = vmatpush1.bf16.msra.mxu0 %v934
    %1219 = vmatprep.subr.bf16.mxu0 0
    %1220 = vmatpush1.bf16.msra.mxu0 %v935
    %1221 = vmatprep.subr.bf16.mxu0 0
    %1222 = vmatpush1.bf16.msra.mxu0 %v936
    %1223 = vmatprep.subr.bf16.mxu0 0
    %1224 = vmatpush1.bf16.msra.mxu0 %v937
    %1225 = vmatprep.subr.bf16.mxu0 0
    %1226 = vmatpush1.bf16.msra.mxu0 %v938
    %1227 = vmatprep.subr.bf16.mxu0 0
    %1228 = vmatpush1.bf16.msra.mxu0 %v939
    %1229 = vmatprep.subr.bf16.mxu0 0
    %1230 = vmatpush1.bf16.msra.mxu0 %v940
    %1231 = vmatprep.subr.bf16.mxu0 0
    %1232 = vmatpush1.bf16.msra.mxu0 %v941
    %1233 = vmatprep.subr.bf16.mxu0 0
    %1234 = vmatpush1.bf16.msra.mxu0 %v942
    %1235 = vmatprep.subr.bf16.mxu0 0
    %1236 = vmatpush1.bf16.msra.mxu0 %v943
    %1237 = vmatprep.subr.bf16.mxu0 0
    %1238 = vmatpush1.bf16.msra.mxu0 %v944
    %1239 = vmatprep.subr.bf16.mxu0 0
    %1240 = vmatpush1.bf16.msra.mxu0 %v945
    %1241 = vmatprep.subr.bf16.mxu0 0
    %1242 = vmatpush1.bf16.msra.mxu0 %v946
    %1243 = vmatprep.mubr.bf16.mxu0 %v336
    %1244 = vmatmul.mubr.bf16.gmra.mrb[0].mxu0 %v334
    %v1245 = vpop.f32.mrb[0].mxu0
    %v1246 = vadd.f32 %v1206, %v1245
    %v1247 = vpop.f32.mrb[0].mxu0
    %v1248 = vpop.f32.mrb[0].mxu0
    %v1249 = vpop.f32.mrb[0].mxu0
    %1250 = vdwg.mxu0
    %1251 = vmatprep.subr.bf16.mxu0 0
    %1252 = vmatpush1.bf16.msra.mxu0 %v947
    %1253 = vmatprep.subr.bf16.mxu0 0
    %1254 = vmatpush1.bf16.msra.mxu0 %v948
    %1255 = vmatprep.subr.bf16.mxu0 0
    %1256 = vmatpush1.bf16.msra.mxu0 %v949
    %1257 = vmatprep.subr.bf16.mxu0 0
    %1258 = vmatpush1.bf16.msra.mxu0 %v950
    %1259 = vmatprep.subr.bf16.mxu0 0
    %1260 = vmatpush1.bf16.msra.mxu0 %v951
    %1261 = vmatprep.subr.bf16.mxu0 0
    %1262 = vmatpush1.bf16.msra.mxu0 %v952
    %1263 = vmatprep.subr.bf16.mxu0 0
    %1264 = vmatpush1.bf16.msra.mxu0 %v953
    %1265 = vmatprep.subr.bf16.mxu0 0
    %1266 = vmatpush1.bf16.msra.mxu0 %v954
    %1267 = vmatprep.subr.bf16.mxu0 0
    %1268 = vmatpush1.bf16.msra.mxu0 %v955
    %1269 = vmatprep.subr.bf16.mxu0 0
    %1270 = vmatpush1.bf16.msra.mxu0 %v956
    %1271 = vmatprep.subr.bf16.mxu0 0
    %1272 = vmatpush1.bf16.msra.mxu0 %v957
    %1273 = vmatprep.subr.bf16.mxu0 0
    %1274 = vmatpush1.bf16.msra.mxu0 %v958
    %1275 = vmatprep.subr.bf16.mxu0 0
    %1276 = vmatpush1.bf16.msra.mxu0 %v959
    %1277 = vmatprep.subr.bf16.mxu0 0
    %1278 = vmatpush1.bf16.msra.mxu0 %v960
    %1279 = vmatprep.subr.bf16.mxu0 0
    %1280 = vmatpush1.bf16.msra.mxu0 %v961
    %1281 = vmatprep.subr.bf16.mxu0 0
    %1282 = vmatpush1.bf16.msra.mxu0 %v962
    %1283 = vmatprep.mubr.bf16.mxu0 %v333
    %1284 = vmatmul.mubr.bf16.gmra.mrb[0].mxu0 %v319
    %v1285 = vpop.f32.mrb[0].mxu0
    %v1286 = vadd.f32 %v1246, %v1285
    %v1287 = vpop.f32.mrb[0].mxu0
    %v1288 = vpop.f32.mrb[0].mxu0
    %v1289 = vpop.f32.mrb[0].mxu0
    %1290 = vdwg.mxu0
    %1291 = vmatprep.subr.bf16.mxu0 0
    %1292 = vmatpush1.bf16.msra.mxu0 %v963
    %1293 = vmatprep.subr.bf16.mxu0 0
    %1294 = vmatpush1.bf16.msra.mxu0 %v964
    %1295 = vmatprep.subr.bf16.mxu0 0
    %1296 = vmatpush1.bf16.msra.mxu0 %v965
    %1297 = vmatprep.subr.bf16.mxu0 0
    %1298 = vmatpush1.bf16.msra.mxu0 %v966
    %1299 = vmatprep.subr.bf16.mxu0 0
    %1300 = vmatpush1.bf16.msra.mxu0 %v967
    %1301 = vmatprep.subr.bf16.mxu0 0
    %1302 = vmatpush1.bf16.msra.mxu0 %v968
    %1303 = vmatprep.subr.bf16.mxu0 0
    %1304 = vmatpush1.bf16.msra.mxu0 %v969
    %1305 = vmatprep.subr.bf16.mxu0 0
    %1306 = vmatpush1.bf16.msra.mxu0 %v970
    %1307 = vmatprep.subr.bf16.mxu0 0
    %1308 = vmatpush1.bf16.msra.mxu0 %v971
    %1309 = vmatprep.subr.bf16.mxu0 0
    %1310 = vmatpush1.bf16.msra.mxu0 %v972
    %1311 = vmatprep.subr.bf16.mxu0 0
    %1312 = vmatpush1.bf16.msra.mxu0 %v973
    %1313 = vmatprep.subr.bf16.mxu0 0
    %1314 = vmatpush1.bf16.msra.mxu0 %v974
    %1315 = vmatprep.subr.bf16.mxu0 0
    %1316 = vmatpush1.bf16.msra.mxu0 %v975
    %1317 = vmatprep.subr.bf16.mxu0 0
    %1318 = vmatpush1.bf16.msra.mxu0 %v976
    %1319 = vmatprep.subr.bf16.mxu0 0
    %1320 = vmatpush1.bf16.msra.mxu0 %v977
    %1321 = vmatprep.subr.bf16.mxu0 0
    %1322 = vmatpush1.bf16.msra.mxu0 %v978
    %1323 = vmatprep.mubr.bf16.mxu0 %v337
    %1324 = vmatmul.mubr.bf16.gmra.mrb[0].mxu0 %v335
    %v1325 = vpop.f32.mrb[0].mxu0
    %v1326 = vadd.f32 %v1286, %v1325
    %v1327 = vpop.f32.mrb[0].mxu0
    %v1328 = vpop.f32.mrb[0].mxu0
    %v1329 = vpop.f32.mrb[0].mxu0
    %1330 = vdwg.mxu0
    %1331 = vmatprep.subr.bf16.mxu0 0
    %1332 = vmatpush1.bf16.msra.mxu0 %v979
    %1333 = vmatprep.subr.bf16.mxu0 0
    %1334 = vmatpush1.bf16.msra.mxu0 %v980
    %1335 = vmatprep.subr.bf16.mxu0 0
    %1336 = vmatpush1.bf16.msra.mxu0 %v981
    %1337 = vmatprep.subr.bf16.mxu0 0
    %1338 = vmatpush1.bf16.msra.mxu0 %v982
    %1339 = vmatprep.subr.bf16.mxu0 0
    %1340 = vmatpush1.bf16.msra.mxu0 %v983
    %1341 = vmatprep.subr.bf16.mxu0 0
    %1342 = vmatpush1.bf16.msra.mxu0 %v984
    %1343 = vmatprep.subr.bf16.mxu0 0
    %1344 = vmatpush1.bf16.msra.mxu0 %v985
    %1345 = vmatprep.subr.bf16.mxu0 0
    %1346 = vmatpush1.bf16.msra.mxu0 %v986
    %1347 = vmatprep.subr.bf16.mxu0 0
    %1348 = vmatpush1.bf16.msra.mxu0 %v987
    %1349 = vmatprep.subr.bf16.mxu0 0
    %1350 = vmatpush1.bf16.msra.mxu0 %v988
    %1351 = vmatprep.subr.bf16.mxu0 0
    %1352 = vmatpush1.bf16.msra.mxu0 %v989
    %1353 = vmatprep.subr.bf16.mxu0 0
    %1354 = vmatpush1.bf16.msra.mxu0 %v990
    %1355 = vmatprep.subr.bf16.mxu0 0
    %1356 = vmatpush1.bf16.msra.mxu0 %v991
    %1357 = vmatprep.subr.bf16.mxu0 0
    %1358 = vmatpush1.bf16.msra.mxu0 %v992
    %1359 = vmatprep.subr.bf16.mxu0 0
    %1360 = vmatpush1.bf16.msra.mxu0 %v993
    %1361 = vmatprep.subr.bf16.mxu0 0
    %1362 = vmatpush1.bf16.msra.mxu0 %v994
    %1363 = vmatprep.mubr.bf16.mxu0 %v375
    %1364 = vmatmul.mubr.bf16.gmra.mrb[0].mxu0 %v361
    %v1365 = vpop.f32.mrb[0].mxu0
    %v1366 = vadd.f32 %v1326, %v1365
    %v1367 = vpop.f32.mrb[0].mxu0
    %v1368 = vpop.f32.mrb[0].mxu0
    %v1369 = vpop.f32.mrb[0].mxu0
    %1370 = vdwg.mxu0
    %1371 = vmatprep.subr.bf16.mxu0 0
    %1372 = vmatpush1.bf16.msra.mxu0 %v995
    %1373 = vmatprep.subr.bf16.mxu0 0
    %1374 = vmatpush1.bf16.msra.mxu0 %v996
    %1375 = vmatprep.subr.bf16.mxu0 0
    %1376 = vmatpush1.bf16.msra.mxu0 %v997
    %1377 = vmatprep.subr.bf16.mxu0 0
    %1378 = vmatpush1.bf16.msra.mxu0 %v998
    %1379 = vmatprep.subr.bf16.mxu0 0
    %1380 = vmatpush1.bf16.msra.mxu0 %v999
    %1381 = vmatprep.subr.bf16.mxu0 0
    %1382 = vmatpush1.bf16.msra.mxu0 %v1000
    %1383 = vmatprep.subr.bf16.mxu0 0
    %1384 = vmatpush1.bf16.msra.mxu0 %v1001
    %1385 = vmatprep.subr.bf16.mxu0 0
    %1386 = vmatpush1.bf16.msra.mxu0 %v1002
    %1387 = vmatprep.subr.bf16.mxu0 0
    %1388 = vmatpush1.bf16.msra.mxu0 %v1003
    %1389 = vmatprep.subr.bf16.mxu0 0
    %1390 = vmatpush1.bf16.msra.mxu0 %v1004
    %1391 = vmatprep.subr.bf16.mxu0 0
    %1392 = vmatpush1.bf16.msra.mxu0 %v1005
    %1393 = vmatprep.subr.bf16.mxu0 0
    %1394 = vmatpush1.bf16.msra.mxu0 %v1006
    %1395 = vmatprep.subr.bf16.mxu0 0
    %1396 = vmatpush1.bf16.msra.mxu0 %v1007
    %1397 = vmatprep.subr.bf16.mxu0 0
    %1398 = vmatpush1.bf16.msra.mxu0 %v1008
    %1399 = vmatprep.subr.bf16.mxu0 0
    %1400 = vmatpush1.bf16.msra.mxu0 %v1009
    %1401 = vmatprep.subr.bf16.mxu0 0
    %1402 = vmatpush1.bf16.msra.mxu0 %v1010
    %1403 = vmatprep.mubr.bf16.mxu0 %v385
    %1404 = vmatmul.mubr.bf16.gmra.mrb[0].mxu0 %v383
    %v1405 = vpop.f32.mrb[0].mxu0
    %v1406 = vadd.f32 %v1366, %v1405
    %v1407 = vpop.f32.mrb[0].mxu0
    %v1408 = vpop.f32.mrb[0].mxu0
    %v1409 = vpop.f32.mrb[0].mxu0
    %1410 = vdwg.mxu0
    %1411 = vmatprep.subr.bf16.mxu0 0
    %1412 = vmatpush1.bf16.msra.mxu0 %v1011
    %1413 = vmatprep.subr.bf16.mxu0 0
    %1414 = vmatpush1.bf16.msra.mxu0 %v1012
    %1415 = vmatprep.subr.bf16.mxu0 0
    %1416 = vmatpush1.bf16.msra.mxu0 %v1013
    %1417 = vmatprep.subr.bf16.mxu0 0
    %1418 = vmatpush1.bf16.msra.mxu0 %v1014
    %1419 = vmatprep.subr.bf16.mxu0 0
    %1420 = vmatpush1.bf16.msra.mxu0 %v1015
    %1421 = vmatprep.subr.bf16.mxu0 0
    %1422 = vmatpush1.bf16.msra.mxu0 %v1016
    %1423 = vmatprep.subr.bf16.mxu0 0
    %1424 = vmatpush1.bf16.msra.mxu0 %v1017
    %1425 = vmatprep.subr.bf16.mxu0 0
    %1426 = vmatpush1.bf16.msra.mxu0 %v1018
    %1427 = vmatprep.subr.bf16.mxu0 0
    %1428 = vmatpush1.bf16.msra.mxu0 %v1019
    %1429 = vmatprep.subr.bf16.mxu0 0
    %1430 = vmatpush1.bf16.msra.mxu0 %v1020
    %1431 = vmatprep.subr.bf16.mxu0 0
    %1432 = vmatpush1.bf16.msra.mxu0 %v1021
    %1433 = vmatprep.subr.bf16.mxu0 0
    %1434 = vmatpush1.bf16.msra.mxu0 %v1022
    %1435 = vmatprep.subr.bf16.mxu0 0
    %1436 = vmatpush1.bf16.msra.mxu0 %v1023
    %1437 = vmatprep.subr.bf16.mxu0 0
    %1438 = vmatpush1.bf16.msra.mxu0 %v1024
    %1439 = vmatprep.subr.bf16.mxu0 0
    %1440 = vmatpush1.bf16.msra.mxu0 %v1025
    %1441 = vmatprep.subr.bf16.mxu0 0
    %1442 = vmatpush1.bf16.msra.mxu0 %v1026
    %1443 = vmatprep.mubr.bf16.mxu0 %v382
    %1444 = vmatmul.mubr.bf16.gmra.mrb[0].mxu0 %v368
    %v1445 = vpop.f32.mrb[0].mxu0
    %v1446 = vadd.f32 %v1406, %v1445
    %v1447 = vpop.f32.mrb[0].mxu0
    %v1448 = vpop.f32.mrb[0].mxu0
    %v1449 = vpop.f32.mrb[0].mxu0
    %1450 = vdwg.mxu0
    %1451 = vmatprep.subr.bf16.mxu0 0
    %1452 = vmatpush1.bf16.msra.mxu0 %v1027
    %1453 = vmatprep.subr.bf16.mxu0 0
    %1454 = vmatpush1.bf16.msra.mxu0 %v1028
    %1455 = vmatprep.subr.bf16.mxu0 0
    %1456 = vmatpush1.bf16.msra.mxu0 %v1029
    %1457 = vmatprep.subr.bf16.mxu0 0
    %1458 = vmatpush1.bf16.msra.mxu0 %v1030
    %1459 = vmatprep.subr.bf16.mxu0 0
    %1460 = vmatpush1.bf16.msra.mxu0 %v1031
    %1461 = vmatprep.subr.bf16.mxu0 0
    %1462 = vmatpush1.bf16.msra.mxu0 %v1032
    %1463 = vmatprep.subr.bf16.mxu0 0
    %1464 = vmatpush1.bf16.msra.mxu0 %v1033
    %1465 = vmatprep.subr.bf16.mxu0 0
    %1466 = vmatpush1.bf16.msra.mxu0 %v1034
    %1467 = vmatprep.subr.bf16.mxu0 0
    %1468 = vmatpush1.bf16.msra.mxu0 %v1035
    %1469 = vmatprep.subr.bf16.mxu0 0
    %1470 = vmatpush1.bf16.msra.mxu0 %v1036
    %1471 = vmatprep.subr.bf16.mxu0 0
    %1472 = vmatpush1.bf16.msra.mxu0 %v1037
    %1473 = vmatprep.subr.bf16.mxu0 0
    %1474 = vmatpush1.bf16.msra.mxu0 %v1038
    %1475 = vmatprep.subr.bf16.mxu0 0
    %1476 = vmatpush1.bf16.msra.mxu0 %v1039
    %1477 = vmatprep.subr.bf16.mxu0 0
    %1478 = vmatpush1.bf16.msra.mxu0 %v1040
    %1479 = vmatprep.subr.bf16.mxu0 0
    %1480 = vmatpush1.bf16.msra.mxu0 %v1041
    %1481 = vmatprep.subr.bf16.mxu0 0
    %1482 = vmatpush1.bf16.msra.mxu0 %v1042
    %1483 = vmatprep.mubr.bf16.mxu0 %v386
    %1484 = vmatmul.mubr.bf16.gmra.mrb[0].mxu0 %v384
    %v1485 = vpop.f32.mrb[0].mxu0
    %v1486 = vadd.f32 %v1446, %v1485
    %v1487 = vpop.f32.mrb[0].mxu0
    %v1488 = vpop.f32.mrb[0].mxu0
    %v1489 = vpop.f32.mrb[0].mxu0
    %1490 = vdwg.mxu0
    %v1491 = vmax.f32 %v1486, 0.0
    %v1492 = vpack.c.bf16 %v1491, %v1491
    %v1493 = vld [vmem:[%s3] sm:$0xf]
    %v1494 = vld [vmem:[%s3 + $0x4] sm:$0xf]
    %v1495 = vld [vmem:[%s3 + $0x8] sm:$0xf]
    %v1496 = vld [vmem:[%s3 + $0xc] sm:$0xf]
    %v1497 = vld [vmem:[%s3 + $0x10] sm:$0xf]
    %v1498 = vld [vmem:[%s3 + $0x14] sm:$0xf]
    %v1499 = vld [vmem:[%s3 + $0x18] sm:$0xf]
    %v1500 = vld [vmem:[%s3 + $0x1c] sm:$0xf]
    %v1501 = vld [vmem:[%s3 + $0x20] sm:$0xf]
    %v1502 = vld [vmem:[%s3 + $0x24] sm:$0xf]
    %v1503 = vld [vmem:[%s3 + $0x28] sm:$0xf]
    %v1504 = vld [vmem:[%s3 + $0x2c] sm:$0xf]
    %v1505 = vld [vmem:[%s3 + $0x30] sm:$0xf]
    %v1506 = vld [vmem:[%s3 + $0x34] sm:$0xf]
    %v1507 = vld [vmem:[%s3 + $0x38] sm:$0xf]
    %v1508 = vld [vmem:[%s3 + $0x3c] sm:$0xf]
    %v1509 = vld [vmem:[%s4] sm:$0x1]
    %v1511 = vlaneseq
    %v1512 = vshrl.u32 %v1511, 7
    %v1513 = vsub.s32 0, %v1512
    %v1514 = vrot.slane %v1509, %v1513
    %v1532 = vunpack.c.l.b16 %v1493
    %v1533 = vunpack.c.l.b16 %v1494
    %v1534 = vunpack.c.l.b16 %v1495
    %v1535 = vunpack.c.l.b16 %v1496
    %v1536 = vunpack.c.l.b16 %v1497
    %v1537 = vunpack.c.l.b16 %v1498
    %v1538 = vunpack.c.l.b16 %v1499
    %v1539 = vunpack.c.l.b16 %v1500
    %v1540 = vunpack.c.l.b16 %v1501
    %v1541 = vunpack.c.l.b16 %v1502
    %v1542 = vunpack.c.l.b16 %v1503
    %v1543 = vunpack.c.l.b16 %v1504
    %v1544 = vunpack.c.l.b16 %v1505
    %v1545 = vunpack.c.l.b16 %v1506
    %v1546 = vunpack.c.l.b16 %v1507
    %v1547 = vunpack.c.l.b16 %v1508
    %v1548 = vpack.c.b16 %v1533, %v1532
    %v1549 = vpack.c.b16 %v1535, %v1534
    %v1550 = vpack.c.b16 %v1537, %v1536
    %v1551 = vpack.c.b16 %v1539, %v1538
    %v1552 = vpack.c.b16 %v1541, %v1540
    %v1553 = vpack.c.b16 %v1543, %v1542
    %v1554 = vpack.c.b16 %v1545, %v1544
    %v1555 = vpack.c.b16 %v1547, %v1546
    %1564 = vmatprep.subr.bf16.mxu0 0
    %1565 = vmatpush1.bf16.msra.mxu0 %v1548
    %1566 = vmatprep.subr.bf16.mxu0 0
    %1567 = vmatpush1.bf16.msra.mxu0 %v1549
    %1568 = vmatprep.subr.bf16.mxu0 0
    %1569 = vmatpush1.bf16.msra.mxu0 %v1550
    %1570 = vmatprep.subr.bf16.mxu0 0
    %1571 = vmatpush1.bf16.msra.mxu0 %v1551
    %1572 = vmatprep.subr.bf16.mxu0 0
    %1573 = vmatpush1.bf16.msra.mxu0 %v1552
    %1574 = vmatprep.subr.bf16.mxu0 0
    %1575 = vmatpush1.bf16.msra.mxu0 %v1553
    %1576 = vmatprep.subr.bf16.mxu0 0
    %1577 = vmatpush1.bf16.msra.mxu0 %v1554
    %1578 = vmatprep.subr.bf16.mxu0 0
    %1579 = vmatpush1.bf16.msra.mxu0 %v1555
    %1580 = vmatprep.subr.bf16.mxu0 0
    %1581 = vmatpush1.bf16.msra.mxu0 0
    %1582 = vmatprep.subr.bf16.mxu0 0
    %1583 = vmatpush1.bf16.msra.mxu0 0
    %1584 = vmatprep.subr.bf16.mxu0 0
    %1585 = vmatpush1.bf16.msra.mxu0 0
    %1586 = vmatprep.subr.bf16.mxu0 0
    %1587 = vmatpush1.bf16.msra.mxu0 0
    %1588 = vmatprep.subr.bf16.mxu0 0
    %1589 = vmatpush1.bf16.msra.mxu0 0
    %1590 = vmatprep.subr.bf16.mxu0 0
    %1591 = vmatpush1.bf16.msra.mxu0 0
    %1592 = vmatprep.subr.bf16.mxu0 0
    %1593 = vmatpush1.bf16.msra.mxu0 0
    %1594 = vmatprep.subr.bf16.mxu0 0
    %1595 = vmatpush1.bf16.msra.mxu0 0
    %1596 = vmatprep.mubr.bf16.mxu0 0
    %1597 = vmatmul.mubr.bf16.gmra.mrb[0].mxu0 %v1492
    %v1598 = vpop.f32.mrb[0].mxu0
    %v1599 = vadd.f32 %v1514, %v1598
    %v1600 = vpop.f32.mrb[0].mxu0
    %v1601 = vpop.f32.mrb[0].mxu0
    %v1602 = vpop.f32.mrb[0].mxu0
    %1603 = vdwg.mxu0
    %v1604 = vlaneseq
    %v1605 = vand.u32 %v1604, 127
    %vm1606 = vcmp.lt.s32.totalorder %v1605, 10
    %v1607 = vsel %vm1606, %v1599, -1e+30
    %vm1608 = vcmask 1041408
    %v1609 = vsel %vm1608, %v1607, -inf
    %1610 = vmax.xlane.f32.xlu0 %v1609
    %v1611 = vpop.xlane.xlu0 %1610
    %v1612 = vsub.f32 %v1607, %v1611
    %v1613 = vmul.f32 %v1612, 1.442695
    %v1614 = vpow.pop %v1613
    %v1615 = vsel %vm1608, %v1614, 0.0
    %1616 = vadd.xlane.f32.xlu0 %v1615
    %v1617 = vpop.xlane.xlu0 %1616
    %v1618 = vlog2.pop %v1617
    %v1619 = vmul.f32 %v1618, 0.6931472
    %v1620 = vsub.f32 %v1612, %v1619
    %1621 = vst [vmem:[#allocation2] sm:$0x3] %v1620
    // Predicated region
    $region22: #{net_forward.5} parent=1 // pred_check
      _
    $region23: #{net_forward.5} parent=1 // pred_check_branch
      %1623 = sbr.rel (0) target = $region25
    $region24: #{net_forward.5} parent=1 // pred_region
      %s1625 = ssub.s32 32, 32
      %1626 = vsyncadd [#allocation3], %s1625
      %s1628 = sshll.u32 [#allocation2], 4
      %s1629 = int_to_ptr.vmem [resolvable:$true] %s1628
      %1631 = dma.vmem_to_hbm [thread:$0]  %s1629, 32, %s5, [#allocation3]
    $region25: #{net_forward.5} parent=1 // pred_fallthru
      _
    // Predicated region
    $region26: #{net_forward.5} parent=1 // pred_check
      _
    $region27: #{net_forward.5} parent=1 // pred_check_branch
      %1633 = sbr.rel (0) target = $region29
    $region28: #{net_forward.5} parent=1 // pred_region
      %1634 = dma.done [#allocation3], 32
    $region29: #{net_forward.5} parent=1 // pred_fallthru
      _
    %1635 = vsyncpa [#allocation3], 1

</llo_original>
